<compile_context>
chip_gen: v7x
topology: tpu7x:2x2x1
jax: 0.10.0
libtpu: 0.0.40
codegen_flags: <defaults>
</compile_context>

<pallas_src>
import functools

import jax
import jax.numpy as jnp
import numpy as np
from jax import lax
from jax.experimental import pallas as pl
from jax.experimental.pallas import tpu as pltpu


# ----------------------------------------------------------------------------
# Fused kernel: per-batch QKV projection (all heads) + softmax attention +
# fc projection accumulation.
#   grid = (B,)
#   xq/xk/xv : [B, HW, C]            block (1, HW, C)
#   wq/wk    : [C, n_head*d_k]       resident (constant index map)
#   wv       : [C, n_head*d_v]       resident
#   wfc      : [n_head*d_v, C]       resident
#   out      : [B, HW, C]
#   attn     : [B, n_head, HW, HW]
# ----------------------------------------------------------------------------
def _mha_kernel(xq_ref, xk_ref, xv_ref, wq_ref, wk_ref, wv_ref, wfc_ref,
                out_ref, attn_ref, *, n_head, d_k, d_v):
    xq = xq_ref[0]                      # [HW, C]
    xk = xk_ref[0]
    xv = xv_ref[0]

    # One projection matmul per tensor covering all heads (1x1 conv == matmul).
    q_all = jnp.dot(xq, wq_ref[...], preferred_element_type=jnp.float32)  # [HW, n_head*d_k]
    k_all = jnp.dot(xk, wk_ref[...], preferred_element_type=jnp.float32)  # [HW, n_head*d_k]
    v_all = jnp.dot(xv, wv_ref[...], preferred_element_type=jnp.float32)  # [HW, n_head*d_v]

    hw = q_all.shape[0]
    c_out = out_ref.shape[-1]
    scale = 1.0 / (float(hw) ** 0.5)    # matches repo: q / N**0.5 with N = H*W

    out_acc = jnp.zeros((hw, c_out), jnp.float32)

    # Short static head loop (n_head is small); fully unrolled at trace time.
    # TODO(synk): for large H*W (e.g. >= 1024 on v7x's 64 MiB VMEM) tile the KV
    # axis with an online/flash-style softmax instead of the full [HW,HW] block.
    for h in range(n_head):
        q = q_all[:, h * d_k:(h + 1) * d_k] * scale      # [HW, d_k]
        k = k_all[:, h * d_k:(h + 1) * d_k]              # [HW, d_k]
        v = v_all[:, h * d_v:(h + 1) * d_v]              # [HW, d_v]

        # Contract over d_k directly (no k.T relayout on the XLU).
        s = lax.dot_general(q, k, (((1,), (1,)), ((), ())),
                            preferred_element_type=jnp.float32)   # [HW, HW]

        m = jnp.max(s, axis=-1, keepdims=True)
        p = jnp.exp(s - m)
        attn = p * pl.reciprocal(jnp.sum(p, axis=-1, keepdims=True), approx=False)

        o = jnp.dot(attn, v, preferred_element_type=jnp.float32)  # [HW, d_v]

        # Fused fc: accumulate this head's contribution to the final output.
        out_acc = out_acc + jnp.dot(o, wfc_ref[h * d_v:(h + 1) * d_v, :],
                                    preferred_element_type=jnp.float32)

        attn_ref[0, h] = attn.astype(attn_ref.dtype)

    out_ref[0] = out_acc.astype(out_ref.dtype)


def our_multihead_attention(xq, xk, xv, w_qs, w_ks, w_vs, w_fc, n_head):
    """Forward pass of OurMultiheadAttention (attn_type='softmax').

    Args:
      xq, xk, xv: [B, C, H, W] float32 (NCHW, as in PyTorch).
      w_qs, w_ks: [n_head*d_k, C] 1x1 conv weights (spatial dims squeezed).
      w_vs:       [n_head*d_v, C].
      w_fc:       [C, n_head*d_v].
    Returns:
      (out [B, C, H, W], attn [B, n_head, HW, HW])
    """
    B, C, H, W = xq.shape
    HW = H * W
    d_k = w_qs.shape[0] // n_head
    d_v = w_vs.shape[0] // n_head

    # NCHW -> [B, HW, C]  (layout glue, plain JAX)
    def to_seq(x):
        return jnp.transpose(x, (0, 2, 3, 1)).reshape(B, HW, C)

    xq_s, xk_s, xv_s = to_seq(xq), to_seq(xk), to_seq(xv)

    # Conv weights as right-multiply matrices; head h owns columns/rows
    # [h*d : (h+1)*d] (head-major channel order, matching torch's reshape).
    wq_all = jnp.transpose(w_qs)     # [C, n_head*d_k]
    wk_all = jnp.transpose(w_ks)     # [C, n_head*d_k]
    wv_all = jnp.transpose(w_vs)     # [C, n_head*d_v]
    wfc_rhs = jnp.transpose(w_fc)    # [n_head*d_v, C]

    kernel = functools.partial(_mha_kernel, n_head=n_head, d_k=d_k, d_v=d_v)

    seq_spec = pl.BlockSpec((1, HW, C), lambda b: (b, 0, 0))
    # Constant index maps -> weights DMA'd once and stay resident across batch.
    wq_spec = pl.BlockSpec((C, n_head * d_k), lambda b: (0, 0))
    wk_spec = pl.BlockSpec((C, n_head * d_k), lambda b: (0, 0))
    wv_spec = pl.BlockSpec((C, n_head * d_v), lambda b: (0, 0))
    wfc_spec = pl.BlockSpec((n_head * d_v, C), lambda b: (0, 0))

    out_seq, attn = pl.pallas_call(
        kernel,
        out_shape=(
            jax.ShapeDtypeStruct((B, HW, C), jnp.float32),
            jax.ShapeDtypeStruct((B, n_head, HW, HW), jnp.float32),
        ),
        grid_spec=pltpu.PrefetchScalarGridSpec(
            num_scalar_prefetch=0,
            grid=(B,),
            in_specs=[seq_spec, seq_spec, seq_spec,
                      wq_spec, wk_spec, wv_spec, wfc_spec],
            out_specs=[
                pl.BlockSpec((1, HW, C), lambda b: (b, 0, 0)),
                pl.BlockSpec((1, n_head, HW, HW), lambda b: (b, 0, 0, 0)),
            ],
        ),
        compiler_params=pltpu.CompilerParams(
            dimension_semantics=("parallel",)),
    )(xq_s, xk_s, xv_s, wq_all, wk_all, wv_all, wfc_rhs)

    # [B, HW, C] -> NCHW
    out = jnp.transpose(out_seq.reshape(B, H, W, C), (0, 3, 1, 2))
    return out, attn


# ----------------------------------------------------------------------------
# Pure-JAX reference (mirrors the PyTorch module's semantics) for validation.
# ----------------------------------------------------------------------------
def _reference(xq, xk, xv, w_qs, w_ks, w_vs, w_fc, n_head):
    B, C, H, W = xq.shape
    HW = H * W
    d_k = w_qs.shape[0] // n_head
    d_v = w_vs.shape[0] // n_head

    def conv1x1(x, wm):  # wm: [out, in]
        return jnp.einsum('oc,bchw->bohw', wm, x)

    q = conv1x1(xq, w_qs).reshape(B, n_head, d_k, H, W)
    k = conv1x1(xk, w_ks).reshape(B, n_head, d_k, H, W)
    v = conv1x1(xv, w_vs).reshape(B, n_head, d_v, H, W)

    qf = jnp.swapaxes(q.reshape(B, n_head, d_k, HW), -2, -1)  # [B,n,HW,d_k]
    kf = k.reshape(B, n_head, d_k, HW)                        # [B,n,d_k,HW]
    vf = jnp.swapaxes(v.reshape(B, n_head, d_v, HW), -2, -1)  # [B,n,HW,d_v]

    attn = jnp.matmul(qf / jnp.sqrt(jnp.float32(HW)), kf)
    attn = jax.nn.softmax(attn, axis=-1)
    o = jnp.matmul(attn, vf)                                  # [B,n,HW,d_v]

    o = jnp.swapaxes(o, -2, -1).reshape(B, n_head * d_v, H, W)
    o = conv1x1(o, w_fc)
    return o, attn


if __name__ == "__main__":
    B, feat_dim, H, W = 2, 32, 8, 8
    n_head = 4
    d_k = feat_dim // n_head
    d_v = feat_dim // n_head

    key = jax.random.PRNGKey(0)
    k_q, k_k, k_v, k_wq, k_wk, k_wv, k_fc = jax.random.split(key, 7)

    xq = jax.random.normal(k_q, (B, feat_dim, H, W), jnp.float32)
    xk = jax.random.normal(k_k, (B, feat_dim, H, W), jnp.float32)
    xv = jax.random.normal(k_v, (B, feat_dim, H, W), jnp.float32)

    # Deterministic synthetic weights (1x1 conv kernels, spatial dims squeezed).
    w_qs = 0.1 * jax.random.normal(k_wq, (n_head * d_k, feat_dim), jnp.float32)
    w_ks = 0.1 * jax.random.normal(k_wk, (n_head * d_k, feat_dim), jnp.float32)
    w_vs = 0.1 * jax.random.normal(k_wv, (n_head * d_v, feat_dim), jnp.float32)
    w_fc = 0.1 * jax.random.normal(k_fc, (feat_dim, n_head * d_v), jnp.float32)

    fwd = jax.jit(functools.partial(our_multihead_attention, n_head=n_head))
    out, attn = fwd(xq, xk, xv, w_qs, w_ks, w_vs, w_fc)
    out, attn = jax.block_until_ready((out, attn))

    ref_out, ref_attn = _reference(xq, xk, xv, w_qs, w_ks, w_vs, w_fc, n_head)
    np.testing.assert_allclose(np.asarray(out), np.asarray(ref_out),
                               rtol=1e-4, atol=1e-4)
    np.testing.assert_allclose(np.asarray(attn), np.asarray(ref_attn),
                               rtol=1e-4, atol=1e-5)

    assert out.shape == (B, feat_dim, H, W)
    assert attn.shape == (B, n_head, H * W, H * W)
    print("KERNEL_OK")
</pallas_src>

<mosaic_0001>
module attributes {stable_mosaic.version = 11 : i64} {
  func.func @_mha_kernel(%arg0: i32, %arg1: memref<1x64x32xf32, #tpu.memory_space<vmem>>, %arg2: memref<1x64x32xf32, #tpu.memory_space<vmem>>, %arg3: memref<1x64x32xf32, #tpu.memory_space<vmem>>, %arg4: memref<32x32xf32, #tpu.memory_space<vmem>>, %arg5: memref<32x32xf32, #tpu.memory_space<vmem>>, %arg6: memref<32x32xf32, #tpu.memory_space<vmem>>, %arg7: memref<32x32xf32, #tpu.memory_space<vmem>>, %arg8: memref<1x64x32xf32, #tpu.memory_space<vmem>>, %arg9: memref<1x4x64x64xf32, #tpu.memory_space<vmem>>) attributes {dimension_semantics = [#tpu.dimension_semantics<parallel>], iteration_bounds = array<i64: 2>, scalar_prefetch = 0 : i64, scratch_operands = 0 : i64, tpu.core_type = #tpu.core_type<tc>, window_params = [{transform_indices = @transform_0, window_bounds = array<i64: 1, 64, 32>}, {transform_indices = @transform_1, window_bounds = array<i64: 1, 64, 32>}, {transform_indices = @transform_2, window_bounds = array<i64: 1, 64, 32>}, {pipeline_mode = #tpu.pipeline_mode<synchronous>, transform_indices = @transform_3, window_bounds = array<i64: 32, 32>}, {pipeline_mode = #tpu.pipeline_mode<synchronous>, transform_indices = @transform_4, window_bounds = array<i64: 32, 32>}, {pipeline_mode = #tpu.pipeline_mode<synchronous>, transform_indices = @transform_5, window_bounds = array<i64: 32, 32>}, {pipeline_mode = #tpu.pipeline_mode<synchronous>, transform_indices = @transform_6, window_bounds = array<i64: 32, 32>}, {transform_indices = @transform_7, window_bounds = array<i64: 1, 64, 32>}, {transform_indices = @transform_8, window_bounds = array<i64: 1, 4, 64, 64>}]} {
    %c0 = arith.constant 0 : index
    %c0_0 = arith.constant 0 : index
    %c0_1 = arith.constant 0 : index
    %0 = vector.load %arg1[%c0, %c0_0, %c0_1] : memref<1x64x32xf32, #tpu.memory_space<vmem>>, vector<1x64x32xf32>
    %1 = vector.shape_cast %0 : vector<1x64x32xf32> to vector<64x32xf32>
    %c0_2 = arith.constant 0 : index
    %c0_3 = arith.constant 0 : index
    %c0_4 = arith.constant 0 : index
    %2 = vector.load %arg2[%c0_2, %c0_3, %c0_4] : memref<1x64x32xf32, #tpu.memory_space<vmem>>, vector<1x64x32xf32>
    %3 = vector.shape_cast %2 : vector<1x64x32xf32> to vector<64x32xf32>
    %c0_5 = arith.constant 0 : index
    %c0_6 = arith.constant 0 : index
    %c0_7 = arith.constant 0 : index
    %4 = vector.load %arg3[%c0_5, %c0_6, %c0_7] : memref<1x64x32xf32, #tpu.memory_space<vmem>>, vector<1x64x32xf32>
    %5 = vector.shape_cast %4 : vector<1x64x32xf32> to vector<64x32xf32>
    %c0_8 = arith.constant 0 : index
    %c0_9 = arith.constant 0 : index
    %6 = vector.load %arg4[%c0_8, %c0_9] : memref<32x32xf32, #tpu.memory_space<vmem>>, vector<32x32xf32>
    %cst = arith.constant dense<0.000000e+00> : vector<64x32xf32>
    %7 = tpu.matmul %1, %6, %cst {dimension_numbers = #tpu.dot_dimension_numbers<[1], [0], [0], [1], [0, 0, 1, 1], [], []>} : vector<64x32xf32>, vector<32x32xf32>, vector<64x32xf32> -> vector<64x32xf32>
    %c0_10 = arith.constant 0 : index
    %c0_11 = arith.constant 0 : index
    %8 = vector.load %arg5[%c0_10, %c0_11] : memref<32x32xf32, #tpu.memory_space<vmem>>, vector<32x32xf32>
    %cst_12 = arith.constant dense<0.000000e+00> : vector<64x32xf32>
    %9 = tpu.matmul %3, %8, %cst_12 {dimension_numbers = #tpu.dot_dimension_numbers<[1], [0], [0], [1], [0, 0, 1, 1], [], []>} : vector<64x32xf32>, vector<32x32xf32>, vector<64x32xf32> -> vector<64x32xf32>
    %c0_13 = arith.constant 0 : index
    %c0_14 = arith.constant 0 : index
    %10 = vector.load %arg6[%c0_13, %c0_14] : memref<32x32xf32, #tpu.memory_space<vmem>>, vector<32x32xf32>
    %cst_15 = arith.constant dense<0.000000e+00> : vector<64x32xf32>
    %11 = tpu.matmul %5, %10, %cst_15 {dimension_numbers = #tpu.dot_dimension_numbers<[1], [0], [0], [1], [0, 0, 1, 1], [], []>} : vector<64x32xf32>, vector<32x32xf32>, vector<64x32xf32> -> vector<64x32xf32>
    %cst_16 = arith.constant 0.000000e+00 : f32
    %12 = vector.broadcast %cst_16 : f32 to vector<64x32xf32>
    %13 = vector.extract_strided_slice %7 {offsets = [0, 0], sizes = [64, 8], strides = [1, 1]} : vector<64x32xf32> to vector<64x8xf32>
    %cst_17 = arith.constant 1.250000e-01 : f32
    %14 = vector.broadcast %cst_17 : f32 to vector<64x8xf32>
    %15 = arith.mulf %13, %14 : vector<64x8xf32>
    %16 = vector.extract_strided_slice %9 {offsets = [0, 0], sizes = [64, 8], strides = [1, 1]} : vector<64x32xf32> to vector<64x8xf32>
    %17 = vector.extract_strided_slice %11 {offsets = [0, 0], sizes = [64, 8], strides = [1, 1]} : vector<64x32xf32> to vector<64x8xf32>
    %cst_18 = arith.constant dense<0.000000e+00> : vector<64x64xf32>
    %18 = tpu.matmul %15, %16, %cst_18 {dimension_numbers = #tpu.dot_dimension_numbers<[1], [1], [0], [0], [0, 0, 1, 0], [], []>} : vector<64x8xf32>, vector<64x8xf32>, vector<64x64xf32> -> vector<64x64xf32>
    %cst_19 = arith.constant dense<0xFF800000> : vector<64xf32>
    %19 = vector.multi_reduction <maximumf>, %18, %cst_19 [1] : vector<64x64xf32> to vector<64xf32>
    %20 = vector.shape_cast %19 : vector<64xf32> to vector<64x1xf32>
    %21 = vector.broadcast %20 : vector<64x1xf32> to vector<64x64xf32>
    %22 = arith.subf %18, %21 : vector<64x64xf32>
    %23 = math.exp %22 : vector<64x64xf32>
    %cst_20 = arith.constant dense<0.000000e+00> : vector<64xf32>
    %24 = vector.multi_reduction <add>, %23, %cst_20 [1] : vector<64x64xf32> to vector<64xf32>
    %25 = vector.shape_cast %24 : vector<64xf32> to vector<64x1xf32>
    %26 = tpu.reciprocal %25 : vector<64x1xf32> -> vector<64x1xf32>
    %27 = vector.broadcast %26 : vector<64x1xf32> to vector<64x64xf32>
    %28 = arith.mulf %23, %27 : vector<64x64xf32>
    %cst_21 = arith.constant dense<0.000000e+00> : vector<64x8xf32>
    %29 = tpu.matmul %28, %17, %cst_21 {dimension_numbers = #tpu.dot_dimension_numbers<[1], [0], [0], [1], [0, 0, 1, 1], [], []>} : vector<64x64xf32>, vector<64x8xf32>, vector<64x8xf32> -> vector<64x8xf32>
    %c0_22 = arith.constant 0 : index
    %c0_23 = arith.constant 0 : index
    %30 = vector.load %arg7[%c0_22, %c0_23] : memref<32x32xf32, #tpu.memory_space<vmem>>, vector<8x32xf32>
    %cst_24 = arith.constant dense<0.000000e+00> : vector<64x32xf32>
    %31 = tpu.matmul %29, %30, %cst_24 {dimension_numbers = #tpu.dot_dimension_numbers<[1], [0], [0], [1], [0, 0, 1, 1], [], []>} : vector<64x8xf32>, vector<8x32xf32>, vector<64x32xf32> -> vector<64x32xf32>
    %32 = arith.addf %12, %31 : vector<64x32xf32>
    %c0_25 = arith.constant 0 : index
    %c0_26 = arith.constant 0 : index
    %c0_27 = arith.constant 0 : index
    %c0_28 = arith.constant 0 : index
    %33 = vector.load %arg9[%c0_25, %c0_26, %c0_27, %c0_28] : memref<1x4x64x64xf32, #tpu.memory_space<vmem>>, vector<1x1x64x64xf32>
    %34 = vector.shape_cast %33 : vector<1x1x64x64xf32> to vector<64x64xf32>
    %35 = vector.shape_cast %28 : vector<64x64xf32> to vector<1x1x64x64xf32>
    tpu.vector_store %arg9[%c0_25, %c0_26, %c0_27, %c0_28], %35 {strides = array<i32>} : memref<1x4x64x64xf32, #tpu.memory_space<vmem>>, vector<1x1x64x64xf32>,
    %36 = vector.extract_strided_slice %7 {offsets = [0, 8], sizes = [64, 8], strides = [1, 1]} : vector<64x32xf32> to vector<64x8xf32>
    %cst_29 = arith.constant 1.250000e-01 : f32
    %37 = vector.broadcast %cst_29 : f32 to vector<64x8xf32>
    %38 = arith.mulf %36, %37 : vector<64x8xf32>
    %39 = vector.extract_strided_slice %9 {offsets = [0, 8], sizes = [64, 8], strides = [1, 1]} : vector<64x32xf32> to vector<64x8xf32>
    %40 = vector.extract_strided_slice %11 {offsets = [0, 8], sizes = [64, 8], strides = [1, 1]} : vector<64x32xf32> to vector<64x8xf32>
    %cst_30 = arith.constant dense<0.000000e+00> : vector<64x64xf32>
    %41 = tpu.matmul %38, %39, %cst_30 {dimension_numbers = #tpu.dot_dimension_numbers<[1], [1], [0], [0], [0, 0, 1, 0], [], []>} : vector<64x8xf32>, vector<64x8xf32>, vector<64x64xf32> -> vector<64x64xf32>
    %cst_31 = arith.constant dense<0xFF800000> : vector<64xf32>
    %42 = vector.multi_reduction <maximumf>, %41, %cst_31 [1] : vector<64x64xf32> to vector<64xf32>
    %43 = vector.shape_cast %42 : vector<64xf32> to vector<64x1xf32>
    %44 = vector.broadcast %43 : vector<64x1xf32> to vector<64x64xf32>
    %45 = arith.subf %41, %44 : vector<64x64xf32>
    %46 = math.exp %45 : vector<64x64xf32>
    %cst_32 = arith.constant dense<0.000000e+00> : vector<64xf32>
    %47 = vector.multi_reduction <add>, %46, %cst_32 [1] : vector<64x64xf32> to vector<64xf32>
    %48 = vector.shape_cast %47 : vector<64xf32> to vector<64x1xf32>
    %49 = tpu.reciprocal %48 : vector<64x1xf32> -> vector<64x1xf32>
    %50 = vector.broadcast %49 : vector<64x1xf32> to vector<64x64xf32>
    %51 = arith.mulf %46, %50 : vector<64x64xf32>
    %cst_33 = arith.constant dense<0.000000e+00> : vector<64x8xf32>
    %52 = tpu.matmul %51, %40, %cst_33 {dimension_numbers = #tpu.dot_dimension_numbers<[1], [0], [0], [1], [0, 0, 1, 1], [], []>} : vector<64x64xf32>, vector<64x8xf32>, vector<64x8xf32> -> vector<64x8xf32>
    %c8 = arith.constant 8 : index
    %c0_34 = arith.constant 0 : index
    %53 = vector.load %arg7[%c8, %c0_34] : memref<32x32xf32, #tpu.memory_space<vmem>>, vector<8x32xf32>
    %cst_35 = arith.constant dense<0.000000e+00> : vector<64x32xf32>
    %54 = tpu.matmul %52, %53, %cst_35 {dimension_numbers = #tpu.dot_dimension_numbers<[1], [0], [0], [1], [0, 0, 1, 1], [], []>} : vector<64x8xf32>, vector<8x32xf32>, vector<64x32xf32> -> vector<64x32xf32>
    %55 = arith.addf %32, %54 : vector<64x32xf32>
    %c0_36 = arith.constant 0 : index
    %c1 = arith.constant 1 : index
    %c0_37 = arith.constant 0 : index
    %c0_38 = arith.constant 0 : index
    %56 = vector.load %arg9[%c0_36, %c1, %c0_37, %c0_38] : memref<1x4x64x64xf32, #tpu.memory_space<vmem>>, vector<1x1x64x64xf32>
    %57 = vector.shape_cast %56 : vector<1x1x64x64xf32> to vector<64x64xf32>
    %58 = vector.shape_cast %51 : vector<64x64xf32> to vector<1x1x64x64xf32>
    tpu.vector_store %arg9[%c0_36, %c1, %c0_37, %c0_38], %58 {strides = array<i32>} : memref<1x4x64x64xf32, #tpu.memory_space<vmem>>, vector<1x1x64x64xf32>,
    %59 = vector.extract_strided_slice %7 {offsets = [0, 16], sizes = [64, 8], strides = [1, 1]} : vector<64x32xf32> to vector<64x8xf32>
    %cst_39 = arith.constant 1.250000e-01 : f32
    %60 = vector.broadcast %cst_39 : f32 to vector<64x8xf32>
    %61 = arith.mulf %59, %60 : vector<64x8xf32>
    %62 = vector.extract_strided_slice %9 {offsets = [0, 16], sizes = [64, 8], strides = [1, 1]} : vector<64x32xf32> to vector<64x8xf32>
    %63 = vector.extract_strided_slice %11 {offsets = [0, 16], sizes = [64, 8], strides = [1, 1]} : vector<64x32xf32> to vector<64x8xf32>
    %cst_40 = arith.constant dense<0.000000e+00> : vector<64x64xf32>
    %64 = tpu.matmul %61, %62, %cst_40 {dimension_numbers = #tpu.dot_dimension_numbers<[1], [1], [0], [0], [0, 0, 1, 0], [], []>} : vector<64x8xf32>, vector<64x8xf32>, vector<64x64xf32> -> vector<64x64xf32>
    %cst_41 = arith.constant dense<0xFF800000> : vector<64xf32>
    %65 = vector.multi_reduction <maximumf>, %64, %cst_41 [1] : vector<64x64xf32> to vector<64xf32>
    %66 = vector.shape_cast %65 : vector<64xf32> to vector<64x1xf32>
    %67 = vector.broadcast %66 : vector<64x1xf32> to vector<64x64xf32>
    %68 = arith.subf %64, %67 : vector<64x64xf32>
    %69 = math.exp %68 : vector<64x64xf32>
    %cst_42 = arith.constant dense<0.000000e+00> : vector<64xf32>
    %70 = vector.multi_reduction <add>, %69, %cst_42 [1] : vector<64x64xf32> to vector<64xf32>
    %71 = vector.shape_cast %70 : vector<64xf32> to vector<64x1xf32>
    %72 = tpu.reciprocal %71 : vector<64x1xf32> -> vector<64x1xf32>
    %73 = vector.broadcast %72 : vector<64x1xf32> to vector<64x64xf32>
    %74 = arith.mulf %69, %73 : vector<64x64xf32>
    %cst_43 = arith.constant dense<0.000000e+00> : vector<64x8xf32>
    %75 = tpu.matmul %74, %63, %cst_43 {dimension_numbers = #tpu.dot_dimension_numbers<[1], [0], [0], [1], [0, 0, 1, 1], [], []>} : vector<64x64xf32>, vector<64x8xf32>, vector<64x8xf32> -> vector<64x8xf32>
    %c16 = arith.constant 16 : index
    %c0_44 = arith.constant 0 : index
    %76 = vector.load %arg7[%c16, %c0_44] : memref<32x32xf32, #tpu.memory_space<vmem>>, vector<8x32xf32>
    %cst_45 = arith.constant dense<0.000000e+00> : vector<64x32xf32>
    %77 = tpu.matmul %75, %76, %cst_45 {dimension_numbers = #tpu.dot_dimension_numbers<[1], [0], [0], [1], [0, 0, 1, 1], [], []>} : vector<64x8xf32>, vector<8x32xf32>, vector<64x32xf32> -> vector<64x32xf32>
    %78 = arith.addf %55, %77 : vector<64x32xf32>
    %c0_46 = arith.constant 0 : index
    %c2 = arith.constant 2 : index
    %c0_47 = arith.constant 0 : index
    %c0_48 = arith.constant 0 : index
    %79 = vector.load %arg9[%c0_46, %c2, %c0_47, %c0_48] : memref<1x4x64x64xf32, #tpu.memory_space<vmem>>, vector<1x1x64x64xf32>
    %80 = vector.shape_cast %79 : vector<1x1x64x64xf32> to vector<64x64xf32>
    %81 = vector.shape_cast %74 : vector<64x64xf32> to vector<1x1x64x64xf32>
    tpu.vector_store %arg9[%c0_46, %c2, %c0_47, %c0_48], %81 {strides = array<i32>} : memref<1x4x64x64xf32, #tpu.memory_space<vmem>>, vector<1x1x64x64xf32>,
    %82 = vector.extract_strided_slice %7 {offsets = [0, 24], sizes = [64, 8], strides = [1, 1]} : vector<64x32xf32> to vector<64x8xf32>
    %cst_49 = arith.constant 1.250000e-01 : f32
    %83 = vector.broadcast %cst_49 : f32 to vector<64x8xf32>
    %84 = arith.mulf %82, %83 : vector<64x8xf32>
    %85 = vector.extract_strided_slice %9 {offsets = [0, 24], sizes = [64, 8], strides = [1, 1]} : vector<64x32xf32> to vector<64x8xf32>
    %86 = vector.extract_strided_slice %11 {offsets = [0, 24], sizes = [64, 8], strides = [1, 1]} : vector<64x32xf32> to vector<64x8xf32>
    %cst_50 = arith.constant dense<0.000000e+00> : vector<64x64xf32>
    %87 = tpu.matmul %84, %85, %cst_50 {dimension_numbers = #tpu.dot_dimension_numbers<[1], [1], [0], [0], [0, 0, 1, 0], [], []>} : vector<64x8xf32>, vector<64x8xf32>, vector<64x64xf32> -> vector<64x64xf32>
    %cst_51 = arith.constant dense<0xFF800000> : vector<64xf32>
    %88 = vector.multi_reduction <maximumf>, %87, %cst_51 [1] : vector<64x64xf32> to vector<64xf32>
    %89 = vector.shape_cast %88 : vector<64xf32> to vector<64x1xf32>
    %90 = vector.broadcast %89 : vector<64x1xf32> to vector<64x64xf32>
    %91 = arith.subf %87, %90 : vector<64x64xf32>
    %92 = math.exp %91 : vector<64x64xf32>
    %cst_52 = arith.constant dense<0.000000e+00> : vector<64xf32>
    %93 = vector.multi_reduction <add>, %92, %cst_52 [1] : vector<64x64xf32> to vector<64xf32>
    %94 = vector.shape_cast %93 : vector<64xf32> to vector<64x1xf32>
    %95 = tpu.reciprocal %94 : vector<64x1xf32> -> vector<64x1xf32>
    %96 = vector.broadcast %95 : vector<64x1xf32> to vector<64x64xf32>
    %97 = arith.mulf %92, %96 : vector<64x64xf32>
    %cst_53 = arith.constant dense<0.000000e+00> : vector<64x8xf32>
    %98 = tpu.matmul %97, %86, %cst_53 {dimension_numbers = #tpu.dot_dimension_numbers<[1], [0], [0], [1], [0, 0, 1, 1], [], []>} : vector<64x64xf32>, vector<64x8xf32>, vector<64x8xf32> -> vector<64x8xf32>
    %c24 = arith.constant 24 : index
    %c0_54 = arith.constant 0 : index
    %99 = vector.load %arg7[%c24, %c0_54] : memref<32x32xf32, #tpu.memory_space<vmem>>, vector<8x32xf32>
    %cst_55 = arith.constant dense<0.000000e+00> : vector<64x32xf32>
    %100 = tpu.matmul %98, %99, %cst_55 {dimension_numbers = #tpu.dot_dimension_numbers<[1], [0], [0], [1], [0, 0, 1, 1], [], []>} : vector<64x8xf32>, vector<8x32xf32>, vector<64x32xf32> -> vector<64x32xf32>
    %101 = arith.addf %78, %100 : vector<64x32xf32>
    %c0_56 = arith.constant 0 : index
    %c3 = arith.constant 3 : index
    %c0_57 = arith.constant 0 : index
    %c0_58 = arith.constant 0 : index
    %102 = vector.load %arg9[%c0_56, %c3, %c0_57, %c0_58] : memref<1x4x64x64xf32, #tpu.memory_space<vmem>>, vector<1x1x64x64xf32>
    %103 = vector.shape_cast %102 : vector<1x1x64x64xf32> to vector<64x64xf32>
    %104 = vector.shape_cast %97 : vector<64x64xf32> to vector<1x1x64x64xf32>
    tpu.vector_store %arg9[%c0_56, %c3, %c0_57, %c0_58], %104 {strides = array<i32>} : memref<1x4x64x64xf32, #tpu.memory_space<vmem>>, vector<1x1x64x64xf32>,
    %c0_59 = arith.constant 0 : index
    %c0_60 = arith.constant 0 : index
    %c0_61 = arith.constant 0 : index
    %105 = vector.load %arg8[%c0_59, %c0_60, %c0_61] : memref<1x64x32xf32, #tpu.memory_space<vmem>>, vector<1x64x32xf32>
    %106 = vector.shape_cast %105 : vector<1x64x32xf32> to vector<64x32xf32>
    %107 = vector.shape_cast %101 : vector<64x32xf32> to vector<1x64x32xf32>
    tpu.vector_store %arg8[%c0_59, %c0_60, %c0_61], %107 {strides = array<i32>} : memref<1x64x32xf32, #tpu.memory_space<vmem>>, vector<1x64x32xf32>,
    return
  }
  func.func @transform_0(%arg0: i32) -> (i32, i32, i32) {
    %c0_i32 = arith.constant 0 : i32
    %c0_i32_0 = arith.constant 0 : i32
    %c0_i32_1 = arith.constant 0 : i32
    return %arg0, %c0_i32, %c0_i32_0 : i32, i32, i32
  }
  func.func @transform_1(%arg0: i32) -> (i32, i32, i32) {
    %c0_i32 = arith.constant 0 : i32
    %c0_i32_0 = arith.constant 0 : i32
    %c0_i32_1 = arith.constant 0 : i32
    return %arg0, %c0_i32, %c0_i32_0 : i32, i32, i32
  }
  func.func @transform_2(%arg0: i32) -> (i32, i32, i32) {
    %c0_i32 = arith.constant 0 : i32
    %c0_i32_0 = arith.constant 0 : i32
    %c0_i32_1 = arith.constant 0 : i32
    return %arg0, %c0_i32, %c0_i32_0 : i32, i32, i32
  }
  func.func @transform_3(%arg0: i32) -> (i32, i32) {
    %c0_i32 = arith.constant 0 : i32
    %c0_i32_0 = arith.constant 0 : i32
    %c0_i32_1 = arith.constant 0 : i32
    return %c0_i32, %c0_i32_0 : i32, i32
  }
  func.func @transform_4(%arg0: i32) -> (i32, i32) {
    %c0_i32 = arith.constant 0 : i32
    %c0_i32_0 = arith.constant 0 : i32
    %c0_i32_1 = arith.constant 0 : i32
    return %c0_i32, %c0_i32_0 : i32, i32
  }
  func.func @transform_5(%arg0: i32) -> (i32, i32) {
    %c0_i32 = arith.constant 0 : i32
    %c0_i32_0 = arith.constant 0 : i32
    %c0_i32_1 = arith.constant 0 : i32
    return %c0_i32, %c0_i32_0 : i32, i32
  }
  func.func @transform_6(%arg0: i32) -> (i32, i32) {
    %c0_i32 = arith.constant 0 : i32
    %c0_i32_0 = arith.constant 0 : i32
    %c0_i32_1 = arith.constant 0 : i32
    return %c0_i32, %c0_i32_0 : i32, i32
  }
  func.func @transform_7(%arg0: i32) -> (i32, i32, i32) {
    %c0_i32 = arith.constant 0 : i32
    %c0_i32_0 = arith.constant 0 : i32
    %c0_i32_1 = arith.constant 0 : i32
    return %arg0, %c0_i32, %c0_i32_0 : i32, i32, i32
  }
  func.func @transform_8(%arg0: i32) -> (i32, i32, i32, i32) {
    %c0_i32 = arith.constant 0 : i32
    %c0_i32_0 = arith.constant 0 : i32
    %c0_i32_1 = arith.constant 0 : i32
    %c0_i32_2 = arith.constant 0 : i32
    return %arg0, %c0_i32, %c0_i32_0, %c0_i32_1 : i32, i32, i32, i32
  }
}

</mosaic_0001>

<llo_original>
// kernel: our_multihead_attention.1
$region0: #{our_multihead_attention.1}
  #allocation0 [shape = 'u32[]', space=smem, size = 0x4, offset = 0x4, fixed_abs, tag = 'smem constant byte address 0x4 - core index']
  #allocation1 [shape = 'u32[144,128]{1,0:T(1,128)}', space=vmem, size = 0x12000, scoped, tag = 'internal scratch']
  %s0 = inlined_call_operand.vmem [shape: f32[2,64,32], index: 0, kind: input, shape index: {}]
  %s1 = inlined_call_operand.vmem [shape: f32[2,64,32], index: 1, kind: input, shape index: {}]
  %s2 = inlined_call_operand.hbm [shape: f32[2,64,32], index: 2, kind: input, shape index: {}]
  %s3 = inlined_call_operand.vmem [shape: f32[32,32], index: 3, kind: input, shape index: {}]
  %s4 = inlined_call_operand.vmem [shape: f32[32,32], index: 4, kind: input, shape index: {}]
  %s5 = inlined_call_operand.vmem [shape: f32[32,32], index: 5, kind: input, shape index: {}]
  %s6 = inlined_call_operand.vmem [shape: f32[32,32], index: 6, kind: input, shape index: {}]
  %s7 = inlined_call_operand.hbm [shape: f32[2,64,32], index: 7, kind: output, shape index: {0}]
  %s8 = inlined_call_operand.hbm [shape: f32[2,4,64,64], index: 8, kind: output, shape index: {1}]
  %9 = xla_tuple %s7, %s8
  %s10 = sld [smem:[#allocation0]]
  $region73: #{our_multihead_attention.1} parent=0
    _
  %s12 = ssub.s32 1, %s10
  %s13 = scalar_select 0, %s12, %s10
  $region1: #{our_multihead_attention.1} parent=0
    #allocation2 [shape = 'u8[65536]{0}', space=vmem, size = 0x10000, scoped, tag = 'input window, operand 2']
    #allocation3 [shape = 's32[2]{0}', space=sflag, size = 0x8, scoped, tag = 'scoped memory for our_multihead_attention.1']
    #allocation4 [shape = 's32[2]{0}', space=sflag, size = 0x8, scoped, tag = 'scoped memory for our_multihead_attention.1']
    #allocation5 [shape = 'u8[65536]{0}', space=vmem, size = 0x10000, scoped, tag = 'output window, operand 0']
    #allocation6 [shape = 'u8[262144]{0}', space=vmem, size = 0x40000, scoped, tag = 'output window, operand 1']
    #allocation7 [shape = 's32[2]{0}', space=sflag, size = 0x8, scoped, tag = 'scoped memory for our_multihead_attention.1']
    %14 = vsyncpa [#allocation3], 0
    %s15 = scalar_lea.sflag [#allocation3], 1
    %16 = vsyncpa %s15, 0
    %17 = vsyncpa [#allocation4], 0
    %s18 = scalar_lea.sflag [#allocation4], 1
    %19 = vsyncpa %s18, 0
    %20 = vsyncpa [#allocation7], 0
    %s21 = scalar_lea.sflag [#allocation7], 1
    %22 = vsyncpa %s21, 0
    loop: start=0, step=1, limit=4
    $region2: #{our_multihead_attention.1} parent=1 // loop_pre_header
      _
    $region3: #{our_multihead_attention.1} parent=1 // loop_header
      %s24 = sphi 0, %s28
      %p25 = scmp.ge.s32.totalorder %s24, 4
      %s34 = sphi 0, %s36
      %s37 = sphi 0, %s34
      %s38 = sphi 0, %s37
      %s54 = sphi 0, %s38
      %s60 = sphi 0, %s62
      %s63 = sphi 0, %s60
      %s64 = sphi 0, %s63
      %s80 = sphi 0, %s64
      %s86 = sphi 0, %s88
      %s89 = sphi 0, %s86
      %s90 = sphi 0, %s89
      %s106 = sphi 0, %s90
      %s110 = sphi 0, %s110
      %s112 = sphi 0, %s110
      %s113 = sphi 0, %s112
      %s127 = sphi 0, %s113
      %s131 = sphi 0, %s131
      %s133 = sphi 0, %s131
      %s134 = sphi 0, %s133
      %s148 = sphi 0, %s134
      %s152 = sphi 0, %s152
      %s154 = sphi 0, %s152
      %s155 = sphi 0, %s154
      %s169 = sphi 0, %s155
      %s173 = sphi 0, %s173
      %s175 = sphi 0, %s173
      %s176 = sphi 0, %s175
      %s190 = sphi 0, %s176
      %s196 = sphi 0, %s198
      %s199 = sphi 0, %s196
      %s200 = sphi 0, %s199
      %s216 = sphi 0, %s200
      %s222 = sphi 0, %s224
      %s225 = sphi 0, %s222
      %s226 = sphi 0, %s225
      %s242 = sphi 0, %s226
    $region4: #{our_multihead_attention.1} parent=1 // loop_header_branch
      %27 = sbr.rel (%p25) target = $region8
    $region5: #{our_multihead_attention.1} parent=1 // loop_body
      %s29 = ssub.s32 %s24, 1
      %s30 = ssub.s32 %s24, 2
      %s31 = sadd.s32 %s24, 1
      %s32 = ssub.s32 %s24, %s31
      %p33 = scmp.eq.s32.totalorder %s32, 0
      %s35 = sadd.s32 %s34, 1
      %s36 = scalar_select %p33, %s34, %s35
      %p39 = pneg %p33
      %p40 = scmp.eq.s32.totalorder %s24, 1
      %p41 = por %p39, %p40
      %p42 = scmp.ne.s32.totalorder %s34, %s37
      %p43 = scmp.eq.s32.totalorder %s24, 0
      %p44 = por %p42, %p43
      %p45 = scmp.ne.s32.totalorder %s34, %s37
      %p46 = scmp.eq.s32.totalorder %s29, 1
      %p47 = por %p45, %p46
      %p48 = scmp.ne.s32.totalorder %s37, %s38
      %p49 = scmp.eq.s32.totalorder %s29, 0
      %p50 = por %p48, %p49
      %p51 = scmp.ne.s32.totalorder %s37, %s38
      %p52 = scmp.eq.s32.totalorder %s30, 1
      %p53 = por %p51, %p52
      %p55 = scmp.ne.s32.totalorder %s38, %s54
      %p56 = scmp.eq.s32.totalorder %s30, 0
      %p57 = por %p55, %p56
      %s58 = ssub.s32 %s24, %s31
      %p59 = scmp.eq.s32.totalorder %s58, 0
      %s61 = sadd.s32 %s60, 1
      %s62 = scalar_select %p59, %s60, %s61
      %p65 = pneg %p59
      %p66 = scmp.eq.s32.totalorder %s24, 1
      %p67 = por %p65, %p66
      %p68 = scmp.ne.s32.totalorder %s60, %s63
      %p69 = scmp.eq.s32.totalorder %s24, 0
      %p70 = por %p68, %p69
      %p71 = scmp.ne.s32.totalorder %s60, %s63
      %p72 = scmp.eq.s32.totalorder %s29, 1
      %p73 = por %p71, %p72
      %p74 = scmp.ne.s32.totalorder %s63, %s64
      %p75 = scmp.eq.s32.totalorder %s29, 0
      %p76 = por %p74, %p75
      %p77 = scmp.ne.s32.totalorder %s63, %s64
      %p78 = scmp.eq.s32.totalorder %s30, 1
      %p79 = por %p77, %p78
      %p81 = scmp.ne.s32.totalorder %s64, %s80
      %p82 = scmp.eq.s32.totalorder %s30, 0
      %p83 = por %p81, %p82
      %s84 = ssub.s32 %s24, %s31
      %p85 = scmp.eq.s32.totalorder %s84, 0
      %s87 = sadd.s32 %s86, 1
      %s88 = scalar_select %p85, %s86, %s87
      %p91 = pneg %p85
      %p92 = scmp.eq.s32.totalorder %s24, 1
      %p93 = por %p91, %p92
      %p94 = scmp.ne.s32.totalorder %s86, %s89
      %p95 = scmp.eq.s32.totalorder %s24, 0
      %p96 = por %p94, %p95
      %p97 = scmp.ne.s32.totalorder %s86, %s89
      %p98 = scmp.eq.s32.totalorder %s29, 1
      %p99 = por %p97, %p98
      %p100 = scmp.ne.s32.totalorder %s89, %s90
      %p101 = scmp.eq.s32.totalorder %s29, 0
      %p102 = por %p100, %p101
      %p103 = scmp.ne.s32.totalorder %s89, %s90
      %p104 = scmp.eq.s32.totalorder %s30, 1
      %p105 = por %p103, %p104
      %p107 = scmp.ne.s32.totalorder %s90, %s106
      %p108 = scmp.eq.s32.totalorder %s30, 0
      %p109 = por %p107, %p108
      %s111 = sadd.s32 %s110, 1
      %p114 = scmp.eq.s32.totalorder %s24, 1
      %p115 = scmp.ne.s32.totalorder %s110, %s112
      %p116 = scmp.eq.s32.totalorder %s24, 0
      %p117 = por %p115, %p116
      %p118 = scmp.ne.s32.totalorder %s110, %s112
      %p119 = scmp.eq.s32.totalorder %s29, 1
      %p120 = por %p118, %p119
      %p121 = scmp.ne.s32.totalorder %s112, %s113
      %p122 = scmp.eq.s32.totalorder %s29, 0
      %p123 = por %p121, %p122
      %p124 = scmp.ne.s32.totalorder %s112, %s113
      %p125 = scmp.eq.s32.totalorder %s30, 1
      %p126 = por %p124, %p125
      %p128 = scmp.ne.s32.totalorder %s113, %s127
      %p129 = scmp.eq.s32.totalorder %s30, 0
      %p130 = por %p128, %p129
      %s132 = sadd.s32 %s131, 1
      %p135 = scmp.eq.s32.totalorder %s24, 1
      %p136 = scmp.ne.s32.totalorder %s131, %s133
      %p137 = scmp.eq.s32.totalorder %s24, 0
      %p138 = por %p136, %p137
      %p139 = scmp.ne.s32.totalorder %s131, %s133
      %p140 = scmp.eq.s32.totalorder %s29, 1
      %p141 = por %p139, %p140
      %p142 = scmp.ne.s32.totalorder %s133, %s134
      %p143 = scmp.eq.s32.totalorder %s29, 0
      %p144 = por %p142, %p143
      %p145 = scmp.ne.s32.totalorder %s133, %s134
      %p146 = scmp.eq.s32.totalorder %s30, 1
      %p147 = por %p145, %p146
      %p149 = scmp.ne.s32.totalorder %s134, %s148
      %p150 = scmp.eq.s32.totalorder %s30, 0
      %p151 = por %p149, %p150
      %s153 = sadd.s32 %s152, 1
      %p156 = scmp.eq.s32.totalorder %s24, 1
      %p157 = scmp.ne.s32.totalorder %s152, %s154
      %p158 = scmp.eq.s32.totalorder %s24, 0
      %p159 = por %p157, %p158
      %p160 = scmp.ne.s32.totalorder %s152, %s154
      %p161 = scmp.eq.s32.totalorder %s29, 1
      %p162 = por %p160, %p161
      %p163 = scmp.ne.s32.totalorder %s154, %s155
      %p164 = scmp.eq.s32.totalorder %s29, 0
      %p165 = por %p163, %p164
      %p166 = scmp.ne.s32.totalorder %s154, %s155
      %p167 = scmp.eq.s32.totalorder %s30, 1
      %p168 = por %p166, %p167
      %p170 = scmp.ne.s32.totalorder %s155, %s169
      %p171 = scmp.eq.s32.totalorder %s30, 0
      %p172 = por %p170, %p171
      %s174 = sadd.s32 %s173, 1
      %p177 = scmp.eq.s32.totalorder %s24, 1
      %p178 = scmp.ne.s32.totalorder %s173, %s175
      %p179 = scmp.eq.s32.totalorder %s24, 0
      %p180 = por %p178, %p179
      %p181 = scmp.ne.s32.totalorder %s173, %s175
      %p182 = scmp.eq.s32.totalorder %s29, 1
      %p183 = por %p181, %p182
      %p184 = scmp.ne.s32.totalorder %s175, %s176
      %p185 = scmp.eq.s32.totalorder %s29, 0
      %p186 = por %p184, %p185
      %p187 = scmp.ne.s32.totalorder %s175, %s176
      %p188 = scmp.eq.s32.totalorder %s30, 1
      %p189 = por %p187, %p188
      %p191 = scmp.ne.s32.totalorder %s176, %s190
      %p192 = scmp.eq.s32.totalorder %s30, 0
      %p193 = por %p191, %p192
      %s194 = ssub.s32 %s24, %s31
      %p195 = scmp.eq.s32.totalorder %s194, 0
      %s197 = sadd.s32 %s196, 1
      %s198 = scalar_select %p195, %s196, %s197
      %p201 = pneg %p195
      %p202 = scmp.eq.s32.totalorder %s24, 1
      %p203 = por %p201, %p202
      %p204 = scmp.ne.s32.totalorder %s196, %s199
      %p205 = scmp.eq.s32.totalorder %s24, 0
      %p206 = por %p204, %p205
      %p207 = scmp.ne.s32.totalorder %s196, %s199
      %p208 = scmp.eq.s32.totalorder %s29, 1
      %p209 = por %p207, %p208
      %p210 = scmp.ne.s32.totalorder %s199, %s200
      %p211 = scmp.eq.s32.totalorder %s29, 0
      %p212 = por %p210, %p211
      %p213 = scmp.ne.s32.totalorder %s199, %s200
      %p214 = scmp.eq.s32.totalorder %s30, 1
      %p215 = por %p213, %p214
      %p217 = scmp.ne.s32.totalorder %s200, %s216
      %p218 = scmp.eq.s32.totalorder %s30, 0
      %p219 = por %p217, %p218
      %s220 = ssub.s32 %s24, %s31
      %p221 = scmp.eq.s32.totalorder %s220, 0
      %s223 = sadd.s32 %s222, 1
      %s224 = scalar_select %p221, %s222, %s223
      %p227 = pneg %p221
      %p228 = scmp.eq.s32.totalorder %s24, 1
      %p229 = por %p227, %p228
      %p230 = scmp.ne.s32.totalorder %s222, %s225
      %p231 = scmp.eq.s32.totalorder %s24, 0
      %p232 = por %p230, %p231
      %p233 = scmp.ne.s32.totalorder %s222, %s225
      %p234 = scmp.eq.s32.totalorder %s29, 1
      %p235 = por %p233, %p234
      %p236 = scmp.ne.s32.totalorder %s225, %s226
      %p237 = scmp.eq.s32.totalorder %s29, 0
      %p238 = por %p236, %p237
      %p239 = scmp.ne.s32.totalorder %s225, %s226
      %p240 = scmp.eq.s32.totalorder %s30, 1
      %p241 = por %p239, %p240
      %p243 = scmp.ne.s32.totalorder %s226, %s242
      %p244 = scmp.eq.s32.totalorder %s30, 0
      %p245 = por %p243, %p244
      %p246 = scmp.le.s32.totalorder 1, %s24
      %p247 = scmp.lt.s32.totalorder %s24, 3
      %p248 = pnand %p246, %p247
      %p249 = pneg %p248
      // Predicated region
      $region9: #{our_multihead_attention.1} parent=5 // pred_check
        _
      $region10: #{our_multihead_attention.1} parent=5 // pred_check_branch
        %251 = sbr.rel (%p248) target = $region12
      $region11: #{our_multihead_attention.1} parent=5 // pred_region
        %s252 = ssub.s32 %s24, 1
        // Predicated region
        $region13: #{our_multihead_attention.1} parent=11 // pred_check
          %p253 = pneg %p123
        $region14: #{our_multihead_attention.1} parent=11 // pred_check_branch
          %255 = sbr.rel (%p253) target = $region16
        $region15: #{our_multihead_attention.1} parent=11 // pred_region
          _
        $region16: #{our_multihead_attention.1} parent=11 // pred_fallthru
          _
        // Predicated region
        $region17: #{our_multihead_attention.1} parent=11 // pred_check
          %p256 = pneg %p144
        $region18: #{our_multihead_attention.1} parent=11 // pred_check_branch
          %258 = sbr.rel (%p256) target = $region20
        $region19: #{our_multihead_attention.1} parent=11 // pred_region
          _
        $region20: #{our_multihead_attention.1} parent=11 // pred_fallthru
          _
        // Predicated region
        $region21: #{our_multihead_attention.1} parent=11 // pred_check
          %p259 = pneg %p165
        $region22: #{our_multihead_attention.1} parent=11 // pred_check_branch
          %261 = sbr.rel (%p259) target = $region24
        $region23: #{our_multihead_attention.1} parent=11 // pred_region
          _
        $region24: #{our_multihead_attention.1} parent=11 // pred_fallthru
          _
        // Predicated region
        $region25: #{our_multihead_attention.1} parent=11 // pred_check
          %p262 = pneg %p186
        $region26: #{our_multihead_attention.1} parent=11 // pred_check_branch
          %264 = sbr.rel (%p262) target = $region28
        $region27: #{our_multihead_attention.1} parent=11 // pred_region
          _
        $region28: #{our_multihead_attention.1} parent=11 // pred_fallthru
          _
      $region12: #{our_multihead_attention.1} parent=5 // pred_fallthru
        _
      %p265 = scmp.lt.s32.totalorder %s24, 2
      // Predicated region
      $region29: #{our_multihead_attention.1} parent=5 // pred_check
        %p266 = pneg %p265
      $region30: #{our_multihead_attention.1} parent=5 // pred_check_branch
        %268 = sbr.rel (%p266) target = $region32
      $region31: #{our_multihead_attention.1} parent=5 // pred_region
        // Predicated region
        $region33: #{our_multihead_attention.1} parent=31 // pred_check
          %p269 = pneg %p44
        $region34: #{our_multihead_attention.1} parent=31 // pred_check_branch
          %271 = sbr.rel (%p269) target = $region36
        $region35: #{our_multihead_attention.1} parent=31 // pred_region
          %p272 = scmp.lt.s32.totalorder %s24, 1
          %s273 = scalar_select %p272, %s24, 1
          %s274 = smul.addr %s273, 8
          %s275 = smul.addr %s274, 8
          %s276 = scalar_lea.vmem %s0, %s275
        $region36: #{our_multihead_attention.1} parent=31 // pred_fallthru
          _
        // Predicated region
        $region37: #{our_multihead_attention.1} parent=31 // pred_check
          %p277 = pneg %p70
        $region38: #{our_multihead_attention.1} parent=31 // pred_check_branch
          %279 = sbr.rel (%p277) target = $region40
        $region39: #{our_multihead_attention.1} parent=31 // pred_region
          %p280 = scmp.lt.s32.totalorder %s24, 1
          %s281 = scalar_select %p280, %s24, 1
          %s282 = smul.addr %s281, 8
          %s283 = smul.addr %s282, 8
          %s284 = scalar_lea.vmem %s1, %s283
        $region40: #{our_multihead_attention.1} parent=31 // pred_fallthru
          _
        // Predicated region
        $region41: #{our_multihead_attention.1} parent=31 // pred_check
          %p285 = pneg %p96
        $region42: #{our_multihead_attention.1} parent=31 // pred_check_branch
          %287 = sbr.rel (%p285) target = $region44
        $region43: #{our_multihead_attention.1} parent=31 // pred_region
          %s288 = sand.u32 %s86, 1
          %s289 = scalar_lea.sflag [#allocation3], %s288
          %s290 = sand.u32 %s86, 1
          %s291 = smul.addr %s290, 64
          %s292 = scalar_lea.vmem [#allocation2], %s291
          %s294 = ssub.s32 1024, 1024
          %295 = vsyncadd %s289, %s294
          %s296 = smul.addr %s24, 8
          %s297 = smul.addr %s296, 128
          %s298 = scalar_lea.hbm %s2, %s297
          %s299 = sshll.u32 %s292, 4
          %s300 = int_to_ptr.vmem [resolvable:$true] %s299
          %305 = dma.hbm_to_vmem [thread:$0]  %s298, 1024, %s300, %s289, 128, 128, 8
        $region44: #{our_multihead_attention.1} parent=31 // pred_fallthru
          _
      $region32: #{our_multihead_attention.1} parent=5 // pred_fallthru
        _
      %p306 = scmp.le.s32.totalorder 1, %s24
      %p307 = scmp.lt.s32.totalorder %s24, 3
      %p308 = pnand %p306, %p307
      %p309 = pneg %p308
      // Predicated region
      $region45: #{our_multihead_attention.1} parent=5 // pred_check
        _
      $region46: #{our_multihead_attention.1} parent=5 // pred_check_branch
        %311 = sbr.rel (%p308) target = $region48
      $region47: #{our_multihead_attention.1} parent=5 // pred_region
        %s312 = ssub.s32 %s24, 1
        %s313 = sand.u32 %s89, 1
        %s314 = scalar_lea.sflag [#allocation3], %s313
        %s315 = sand.u32 %s89, 1
        %s316 = smul.addr %s315, 64
        %s317 = scalar_lea.vmem [#allocation2], %s316
        // Predicated region
        $region49: #{our_multihead_attention.1} parent=47 // pred_check
          %p318 = pneg %p102
        $region50: #{our_multihead_attention.1} parent=47 // pred_check_branch
          %320 = sbr.rel (%p318) target = $region52
        $region51: #{our_multihead_attention.1} parent=47 // pred_region
          %321 = dma.done %s314, 1024
        $region52: #{our_multihead_attention.1} parent=47 // pred_fallthru
          _
        %p322 = scmp.lt.s32.totalorder %s29, 1
        %s323 = scalar_select %p322, %s29, 1
        %s324 = smul.addr %s323, 8
        %s325 = smul.addr %s324, 8
        %s326 = scalar_lea.vmem %s0, %s325
        %p327 = pneg %p50
        %p328 = pneg %p47
        %p329 = scmp.lt.s32.totalorder %s29, 1
        %s330 = scalar_select %p329, %s29, 1
        %s331 = smul.addr %s330, 8
        %s332 = smul.addr %s331, 8
        %s333 = scalar_lea.vmem %s1, %s332
        %p334 = pneg %p76
        %p335 = pneg %p73
        %s336 = sand.u32 %s89, 1
        %s337 = scalar_lea.sflag [#allocation3], %s336
        %s338 = sand.u32 %s89, 1
        %s339 = smul.addr %s338, 64
        %s340 = scalar_lea.vmem [#allocation2], %s339
        %p341 = pneg %p102
        %p342 = pneg %p99
        %p343 = pneg %p123
        %p344 = pneg %p120
        %p345 = pneg %p144
        %p346 = pneg %p141
        %p347 = pneg %p165
        %p348 = pneg %p162
        %p349 = pneg %p186
        %p350 = pneg %p183
        %p351 = pneg %p212
        %p352 = pneg %p209
        %s353 = sand.u32 %s199, 1
        %s354 = scalar_lea.sflag [#allocation4], %s353
        %s355 = sand.u32 %s199, 1
        %s356 = smul.addr %s355, 64
        %s357 = scalar_lea.vmem [#allocation5], %s356
        %p358 = pneg %p238
        %p359 = pneg %p235
        %s360 = sand.u32 %s225, 1
        %s361 = scalar_lea.sflag [#allocation7], %s360
        %s362 = sand.u32 %s225, 1
        %s363 = smul.addr %s362, 256
        %s364 = scalar_lea.vmem [#allocation6], %s363
        %p365 = scmp.lt.s32.totalorder %s29, 1
        %s366 = scalar_select %p365, %s29, 1
        %s367 = smul.addr %s366, 8
        %s368 = smul.addr %s367, 8
        %s369 = scalar_lea.vmem %s0, %s368
        %p370 = scmp.lt.s32.totalorder %s29, 1
        %s371 = scalar_select %p370, %s29, 1
        %s372 = smul.addr %s371, 8
        %s373 = smul.addr %s372, 8
        %s374 = scalar_lea.vmem %s1, %s373
        %v375 = vld [vmem:[%s369] sm:$0xff]
        %v376 = vld [vmem:[%s369 + $0x8] sm:$0xff]
        %v377 = vld [vmem:[%s369 + $0x10] sm:$0xff]
        %v378 = vld [vmem:[%s369 + $0x18] sm:$0xff]
        %v379 = vld [vmem:[%s369 + $0x20] sm:$0xff]
        %v380 = vld [vmem:[%s369 + $0x28] sm:$0xff]
        %v381 = vld [vmem:[%s369 + $0x30] sm:$0xff]
        %v382 = vld [vmem:[%s369 + $0x38] sm:$0xff]
        %v383 = vld [vmem:[%s374] sm:$0xff]
        %v384 = vld [vmem:[%s374 + $0x8] sm:$0xff]
        %v385 = vld [vmem:[%s374 + $0x10] sm:$0xff]
        %v386 = vld [vmem:[%s374 + $0x18] sm:$0xff]
        %v387 = vld [vmem:[%s374 + $0x20] sm:$0xff]
        %v388 = vld [vmem:[%s374 + $0x28] sm:$0xff]
        %v389 = vld [vmem:[%s374 + $0x30] sm:$0xff]
        %v390 = vld [vmem:[%s374 + $0x38] sm:$0xff]
        %v391 = vld [vmem:[%s317] sm:$0xff]
        %v392 = vld [vmem:[%s317 + $0x8] sm:$0xff]
        %v393 = vld [vmem:[%s317 + $0x10] sm:$0xff]
        %v394 = vld [vmem:[%s317 + $0x18] sm:$0xff]
        %v395 = vld [vmem:[%s317 + $0x20] sm:$0xff]
        %v396 = vld [vmem:[%s317 + $0x28] sm:$0xff]
        %v397 = vld [vmem:[%s317 + $0x30] sm:$0xff]
        %v398 = vld [vmem:[%s317 + $0x38] sm:$0xff]
        %v399 = vld [vmem:[%s3] sm:$0xff]
        %v400 = vld [vmem:[%s3 + $0x8] sm:$0xff]
        %v401 = vld [vmem:[%s3 + $0x10] sm:$0xff]
        %v402 = vld [vmem:[%s3 + $0x18] sm:$0xff]
        %vm403 = vcmask 261120
        %v405 = vsel %vm403, %v375, 0
        %v408 = vsel %vm403, %v376, 0
        %v411 = vsel %vm403, %v377, 0
        %v414 = vsel %vm403, %v378, 0
        %v417 = vsel %vm403, %v379, 0
        %v420 = vsel %vm403, %v380, 0
        %v423 = vsel %vm403, %v381, 0
        %v426 = vsel %vm403, %v382, 0
        %428 = vmatprep.subr.mxu0 0.0
        %429 = vmatpush1.msra.mxu0 %v399
        %430 = vmatprep.subr.mxu0 0.0
        %431 = vmatpush1.msra.mxu0 %v400
        %432 = vmatprep.subr.mxu0 0.0
        %433 = vmatpush1.msra.mxu0 %v401
        %434 = vmatprep.subr.mxu0 0.0
        %435 = vmatpush1.msra.mxu0 %v402
        %436 = vmatprep.subr.mxu0 0.0
        %437 = vmatpush1.msra.mxu0 0.0
        %438 = vmatprep.subr.mxu0 0.0
        %439 = vmatpush1.msra.mxu0 0.0
        %440 = vmatprep.subr.mxu0 0.0
        %441 = vmatpush1.msra.mxu0 0.0
        %442 = vmatprep.subr.mxu0 0.0
        %443 = vmatpush1.msra.mxu0 0.0
        %444 = vmatprep.subr.mxu0 0.0
        %445 = vmatpush1.msra.mxu0 0.0
        %446 = vmatprep.subr.mxu0 0.0
        %447 = vmatpush1.msra.mxu0 0.0
        %448 = vmatprep.subr.mxu0 0.0
        %449 = vmatpush1.msra.mxu0 0.0
        %450 = vmatprep.subr.mxu0 0.0
        %451 = vmatpush1.msra.mxu0 0.0
        %452 = vmatprep.subr.mxu0 0.0
        %453 = vmatpush1.msra.mxu0 0.0
        %454 = vmatprep.subr.mxu0 0.0
        %455 = vmatpush1.msra.mxu0 0.0
        %456 = vmatprep.subr.mxu0 0.0
        %457 = vmatpush1.msra.mxu0 0.0
        %458 = vmatprep.subr.mxu0 0.0
        %459 = vmatpush1.msra.mxu0 0.0
        %460 = vmatprep.subr.mxu0 0.0
        %461 = vmatpush1.msra.mxu0 0.0
        %462 = vmatprep.subr.mxu0 0.0
        %463 = vmatpush1.msra.mxu0 0.0
        %464 = vmatprep.subr.mxu0 0.0
        %465 = vmatpush1.msra.mxu0 0.0
        %466 = vmatprep.subr.mxu0 0.0
        %467 = vmatpush1.msra.mxu0 0.0
        %468 = vmatprep.subr.mxu0 0.0
        %469 = vmatpush1.msra.mxu0 0.0
        %470 = vmatprep.subr.mxu0 0.0
        %471 = vmatpush1.msra.mxu0 0.0
        %472 = vmatprep.subr.mxu0 0.0
        %473 = vmatpush1.msra.mxu0 0.0
        %474 = vmatprep.subr.mxu0 0.0
        %475 = vmatpush1.msra.mxu0 0.0
        %476 = vmatprep.subr.mxu0 0.0
        %477 = vmatpush1.msra.mxu0 0.0
        %478 = vmatprep.subr.mxu0 0.0
        %479 = vmatpush1.msra.mxu0 0.0
        %480 = vmatprep.subr.mxu0 0.0
        %481 = vmatpush1.msra.mxu0 0.0
        %482 = vmatprep.subr.mxu0 0.0
        %483 = vmatpush1.msra.mxu0 0.0
        %484 = vmatprep.subr.mxu0 0.0
        %485 = vmatpush1.msra.mxu0 0.0
        %486 = vmatprep.subr.mxu0 0.0
        %487 = vmatpush1.msra.mxu0 0.0
        %488 = vmatprep.subr.mxu0 0.0
        %489 = vmatpush1.msra.mxu0 0.0
        %490 = vmatprep.subr.mxu0 0.0
        %491 = vmatpush1.msra.mxu0 0.0
        %492 = vmatprep.mubr.f32.mxu0 0.0
        %493 = vmatmul.mubr.f32.gmra.mrb[0].mxu0 %v405
        %v494 = vpop.f32.mrb[0].mxu0
        %v495 = vadd.f32 0.0, %v494
        %v496 = vpop.f32.mrb[0].mxu0
        %497 = vmatprep.mubr.f32.mxu0 0.0
        %498 = vmatmul.mubr.f32.gmra.mrb[0].mxu0 %v408
        %v499 = vpop.f32.mrb[0].mxu0
        %v500 = vadd.f32 0.0, %v499
        %v501 = vpop.f32.mrb[0].mxu0
        %502 = vmatprep.mubr.f32.mxu0 0.0
        %503 = vmatmul.mubr.f32.gmra.mrb[0].mxu0 %v411
        %v504 = vpop.f32.mrb[0].mxu0
        %v505 = vadd.f32 0.0, %v504
        %v506 = vpop.f32.mrb[0].mxu0
        %507 = vmatprep.mubr.f32.mxu0 0.0
        %508 = vmatmul.mubr.f32.gmra.mrb[0].mxu0 %v414
        %v509 = vpop.f32.mrb[0].mxu0
        %v510 = vadd.f32 0.0, %v509
        %v511 = vpop.f32.mrb[0].mxu0
        %512 = vmatprep.mubr.f32.mxu0 0.0
        %513 = vmatmul.mubr.f32.gmra.mrb[0].mxu0 %v417
        %v514 = vpop.f32.mrb[0].mxu0
        %v515 = vadd.f32 0.0, %v514
        %v516 = vpop.f32.mrb[0].mxu0
        %517 = vmatprep.mubr.f32.mxu0 0.0
        %518 = vmatmul.mubr.f32.gmra.mrb[0].mxu0 %v420
        %v519 = vpop.f32.mrb[0].mxu0
        %v520 = vadd.f32 0.0, %v519
        %v521 = vpop.f32.mrb[0].mxu0
        %522 = vmatprep.mubr.f32.mxu0 0.0
        %523 = vmatmul.mubr.f32.gmra.mrb[0].mxu0 %v423
        %v524 = vpop.f32.mrb[0].mxu0
        %v525 = vadd.f32 0.0, %v524
        %v526 = vpop.f32.mrb[0].mxu0
        %527 = vmatprep.mubr.f32.mxu0 0.0
        %528 = vmatmul.mubr.f32.gmra.mrb[0].mxu0 %v426
        %v529 = vpop.f32.mrb[0].mxu0
        %v530 = vadd.f32 0.0, %v529
        %v531 = vpop.f32.mrb[0].mxu0
        %532 = vdwg.mxu0
        %v533 = vld [vmem:[%s4] sm:$0xff]
        %v534 = vld [vmem:[%s4 + $0x8] sm:$0xff]
        %v535 = vld [vmem:[%s4 + $0x10] sm:$0xff]
        %v536 = vld [vmem:[%s4 + $0x18] sm:$0xff]
        %v538 = vsel %vm403, %v383, 0
        %v541 = vsel %vm403, %v384, 0
        %v544 = vsel %vm403, %v385, 0
        %v547 = vsel %vm403, %v386, 0
        %v550 = vsel %vm403, %v387, 0
        %v553 = vsel %vm403, %v388, 0
        %v556 = vsel %vm403, %v389, 0
        %v559 = vsel %vm403, %v390, 0
        %561 = vmatprep.subr.mxu0 0.0
        %562 = vmatpush1.msra.mxu0 %v533
        %563 = vmatprep.subr.mxu0 0.0
        %564 = vmatpush1.msra.mxu0 %v534
        %565 = vmatprep.subr.mxu0 0.0
        %566 = vmatpush1.msra.mxu0 %v535
        %567 = vmatprep.subr.mxu0 0.0
        %568 = vmatpush1.msra.mxu0 %v536
        %569 = vmatprep.subr.mxu0 0.0
        %570 = vmatpush1.msra.mxu0 0.0
        %571 = vmatprep.subr.mxu0 0.0
        %572 = vmatpush1.msra.mxu0 0.0
        %573 = vmatprep.subr.mxu0 0.0
        %574 = vmatpush1.msra.mxu0 0.0
        %575 = vmatprep.subr.mxu0 0.0
        %576 = vmatpush1.msra.mxu0 0.0
        %577 = vmatprep.subr.mxu0 0.0
        %578 = vmatpush1.msra.mxu0 0.0
        %579 = vmatprep.subr.mxu0 0.0
        %580 = vmatpush1.msra.mxu0 0.0
        %581 = vmatprep.subr.mxu0 0.0
        %582 = vmatpush1.msra.mxu0 0.0
        %583 = vmatprep.subr.mxu0 0.0
        %584 = vmatpush1.msra.mxu0 0.0
        %585 = vmatprep.subr.mxu0 0.0
        %586 = vmatpush1.msra.mxu0 0.0
        %587 = vmatprep.subr.mxu0 0.0
        %588 = vmatpush1.msra.mxu0 0.0
        %589 = vmatprep.subr.mxu0 0.0
        %590 = vmatpush1.msra.mxu0 0.0
        %591 = vmatprep.subr.mxu0 0.0
        %592 = vmatpush1.msra.mxu0 0.0
        %593 = vmatprep.subr.mxu0 0.0
        %594 = vmatpush1.msra.mxu0 0.0
        %595 = vmatprep.subr.mxu0 0.0
        %596 = vmatpush1.msra.mxu0 0.0
        %597 = vmatprep.subr.mxu0 0.0
        %598 = vmatpush1.msra.mxu0 0.0
        %599 = vmatprep.subr.mxu0 0.0
        %600 = vmatpush1.msra.mxu0 0.0
        %601 = vmatprep.subr.mxu0 0.0
        %602 = vmatpush1.msra.mxu0 0.0
        %603 = vmatprep.subr.mxu0 0.0
        %604 = vmatpush1.msra.mxu0 0.0
        %605 = vmatprep.subr.mxu0 0.0
        %606 = vmatpush1.msra.mxu0 0.0
        %607 = vmatprep.subr.mxu0 0.0
        %608 = vmatpush1.msra.mxu0 0.0
        %609 = vmatprep.subr.mxu0 0.0
        %610 = vmatpush1.msra.mxu0 0.0
        %611 = vmatprep.subr.mxu0 0.0
        %612 = vmatpush1.msra.mxu0 0.0
        %613 = vmatprep.subr.mxu0 0.0
        %614 = vmatpush1.msra.mxu0 0.0
        %615 = vmatprep.subr.mxu0 0.0
        %616 = vmatpush1.msra.mxu0 0.0
        %617 = vmatprep.subr.mxu0 0.0
        %618 = vmatpush1.msra.mxu0 0.0
        %619 = vmatprep.subr.mxu0 0.0
        %620 = vmatpush1.msra.mxu0 0.0
        %621 = vmatprep.subr.mxu0 0.0
        %622 = vmatpush1.msra.mxu0 0.0
        %623 = vmatprep.subr.mxu0 0.0
        %624 = vmatpush1.msra.mxu0 0.0
        %625 = vmatprep.mubr.f32.mxu0 0.0
        %626 = vmatmul.mubr.f32.gmra.mrb[0].mxu0 %v538
        %v627 = vpop.f32.mrb[0].mxu0
        %v628 = vadd.f32 0.0, %v627
        %v629 = vpop.f32.mrb[0].mxu0
        %630 = vmatprep.mubr.f32.mxu0 0.0
        %631 = vmatmul.mubr.f32.gmra.mrb[0].mxu0 %v541
        %v632 = vpop.f32.mrb[0].mxu0
        %v633 = vadd.f32 0.0, %v632
        %v634 = vpop.f32.mrb[0].mxu0
        %635 = vmatprep.mubr.f32.mxu0 0.0
        %636 = vmatmul.mubr.f32.gmra.mrb[0].mxu0 %v544
        %v637 = vpop.f32.mrb[0].mxu0
        %v638 = vadd.f32 0.0, %v637
        %v639 = vpop.f32.mrb[0].mxu0
        %640 = vmatprep.mubr.f32.mxu0 0.0
        %641 = vmatmul.mubr.f32.gmra.mrb[0].mxu0 %v547
        %v642 = vpop.f32.mrb[0].mxu0
        %v643 = vadd.f32 0.0, %v642
        %v644 = vpop.f32.mrb[0].mxu0
        %645 = vmatprep.mubr.f32.mxu0 0.0
        %646 = vmatmul.mubr.f32.gmra.mrb[0].mxu0 %v550
        %v647 = vpop.f32.mrb[0].mxu0
        %v648 = vadd.f32 0.0, %v647
        %v649 = vpop.f32.mrb[0].mxu0
        %650 = vmatprep.mubr.f32.mxu0 0.0
        %651 = vmatmul.mubr.f32.gmra.mrb[0].mxu0 %v553
        %v652 = vpop.f32.mrb[0].mxu0
        %v653 = vadd.f32 0.0, %v652
        %v654 = vpop.f32.mrb[0].mxu0
        %655 = vmatprep.mubr.f32.mxu0 0.0
        %656 = vmatmul.mubr.f32.gmra.mrb[0].mxu0 %v556
        %v657 = vpop.f32.mrb[0].mxu0
        %v658 = vadd.f32 0.0, %v657
        %v659 = vpop.f32.mrb[0].mxu0
        %660 = vmatprep.mubr.f32.mxu0 0.0
        %661 = vmatmul.mubr.f32.gmra.mrb[0].mxu0 %v559
        %v662 = vpop.f32.mrb[0].mxu0
        %v663 = vadd.f32 0.0, %v662
        %v664 = vpop.f32.mrb[0].mxu0
        %665 = vdwg.mxu0
        %v666 = vld [vmem:[%s5] sm:$0xff]
        %v667 = vld [vmem:[%s5 + $0x8] sm:$0xff]
        %v668 = vld [vmem:[%s5 + $0x10] sm:$0xff]
        %v669 = vld [vmem:[%s5 + $0x18] sm:$0xff]
        %v671 = vsel %vm403, %v391, 0
        %v674 = vsel %vm403, %v392, 0
        %v677 = vsel %vm403, %v393, 0
        %v680 = vsel %vm403, %v394, 0
        %v683 = vsel %vm403, %v395, 0
        %v686 = vsel %vm403, %v396, 0
        %v689 = vsel %vm403, %v397, 0
        %v692 = vsel %vm403, %v398, 0
        %694 = vmatprep.subr.mxu0 0.0
        %695 = vmatpush1.msra.mxu0 %v666
        %696 = vmatprep.subr.mxu0 0.0
        %697 = vmatpush1.msra.mxu0 %v667
        %698 = vmatprep.subr.mxu0 0.0
        %699 = vmatpush1.msra.mxu0 %v668
        %700 = vmatprep.subr.mxu0 0.0
        %701 = vmatpush1.msra.mxu0 %v669
        %702 = vmatprep.subr.mxu0 0.0
        %703 = vmatpush1.msra.mxu0 0.0
        %704 = vmatprep.subr.mxu0 0.0
        %705 = vmatpush1.msra.mxu0 0.0
        %706 = vmatprep.subr.mxu0 0.0
        %707 = vmatpush1.msra.mxu0 0.0
        %708 = vmatprep.subr.mxu0 0.0
        %709 = vmatpush1.msra.mxu0 0.0
        %710 = vmatprep.subr.mxu0 0.0
        %711 = vmatpush1.msra.mxu0 0.0
        %712 = vmatprep.subr.mxu0 0.0
        %713 = vmatpush1.msra.mxu0 0.0
        %714 = vmatprep.subr.mxu0 0.0
        %715 = vmatpush1.msra.mxu0 0.0
        %716 = vmatprep.subr.mxu0 0.0
        %717 = vmatpush1.msra.mxu0 0.0
        %718 = vmatprep.subr.mxu0 0.0
        %719 = vmatpush1.msra.mxu0 0.0
        %720 = vmatprep.subr.mxu0 0.0
        %721 = vmatpush1.msra.mxu0 0.0
        %722 = vmatprep.subr.mxu0 0.0
        %723 = vmatpush1.msra.mxu0 0.0
        %724 = vmatprep.subr.mxu0 0.0
        %725 = vmatpush1.msra.mxu0 0.0
        %726 = vmatprep.subr.mxu0 0.0
        %727 = vmatpush1.msra.mxu0 0.0
        %728 = vmatprep.subr.mxu0 0.0
        %729 = vmatpush1.msra.mxu0 0.0
        %730 = vmatprep.subr.mxu0 0.0
        %731 = vmatpush1.msra.mxu0 0.0
        %732 = vmatprep.subr.mxu0 0.0
        %733 = vmatpush1.msra.mxu0 0.0
        %734 = vmatprep.subr.mxu0 0.0
        %735 = vmatpush1.msra.mxu0 0.0
        %736 = vmatprep.subr.mxu0 0.0
        %737 = vmatpush1.msra.mxu0 0.0
        %738 = vmatprep.subr.mxu0 0.0
        %739 = vmatpush1.msra.mxu0 0.0
        %740 = vmatprep.subr.mxu0 0.0
        %741 = vmatpush1.msra.mxu0 0.0
        %742 = vmatprep.subr.mxu0 0.0
        %743 = vmatpush1.msra.mxu0 0.0
        %744 = vmatprep.subr.mxu0 0.0
        %745 = vmatpush1.msra.mxu0 0.0
        %746 = vmatprep.subr.mxu0 0.0
        %747 = vmatpush1.msra.mxu0 0.0
        %748 = vmatprep.subr.mxu0 0.0
        %749 = vmatpush1.msra.mxu0 0.0
        %750 = vmatprep.subr.mxu0 0.0
        %751 = vmatpush1.msra.mxu0 0.0
        %752 = vmatprep.subr.mxu0 0.0
        %753 = vmatpush1.msra.mxu0 0.0
        %754 = vmatprep.subr.mxu0 0.0
        %755 = vmatpush1.msra.mxu0 0.0
        %756 = vmatprep.subr.mxu0 0.0
        %757 = vmatpush1.msra.mxu0 0.0
        %758 = vmatprep.mubr.f32.mxu0 0.0
        %759 = vmatmul.mubr.f32.gmra.mrb[0].mxu0 %v671
        %v760 = vpop.f32.mrb[0].mxu0
        %v761 = vadd.f32 0.0, %v760
        %v762 = vpop.f32.mrb[0].mxu0
        %763 = vmatprep.mubr.f32.mxu0 0.0
        %764 = vmatmul.mubr.f32.gmra.mrb[0].mxu0 %v674
        %v765 = vpop.f32.mrb[0].mxu0
        %v766 = vadd.f32 0.0, %v765
        %v767 = vpop.f32.mrb[0].mxu0
        %768 = vmatprep.mubr.f32.mxu0 0.0
        %769 = vmatmul.mubr.f32.gmra.mrb[0].mxu0 %v677
        %v770 = vpop.f32.mrb[0].mxu0
        %v771 = vadd.f32 0.0, %v770
        %v772 = vpop.f32.mrb[0].mxu0
        %773 = vmatprep.mubr.f32.mxu0 0.0
        %774 = vmatmul.mubr.f32.gmra.mrb[0].mxu0 %v680
        %v775 = vpop.f32.mrb[0].mxu0
        %v776 = vadd.f32 0.0, %v775
        %v777 = vpop.f32.mrb[0].mxu0
        %778 = vmatprep.mubr.f32.mxu0 0.0
        %779 = vmatmul.mubr.f32.gmra.mrb[0].mxu0 %v683
        %v780 = vpop.f32.mrb[0].mxu0
        %v781 = vadd.f32 0.0, %v780
        %v782 = vpop.f32.mrb[0].mxu0
        %783 = vmatprep.mubr.f32.mxu0 0.0
        %784 = vmatmul.mubr.f32.gmra.mrb[0].mxu0 %v686
        %v785 = vpop.f32.mrb[0].mxu0
        %v786 = vadd.f32 0.0, %v785
        %v787 = vpop.f32.mrb[0].mxu0
        %788 = vmatprep.mubr.f32.mxu0 0.0
        %789 = vmatmul.mubr.f32.gmra.mrb[0].mxu0 %v689
        %v790 = vpop.f32.mrb[0].mxu0
        %v791 = vadd.f32 0.0, %v790
        %v792 = vpop.f32.mrb[0].mxu0
        %793 = vmatprep.mubr.f32.mxu0 0.0
        %794 = vmatmul.mubr.f32.gmra.mrb[0].mxu0 %v692
        %v795 = vpop.f32.mrb[0].mxu0
        %v796 = vadd.f32 0.0, %v795
        %v797 = vpop.f32.mrb[0].mxu0
        %798 = vdwg.mxu0
        %v799 = vmul.f32 %v495, 0.125
        %v800 = vmul.f32 %v500, 0.125
        %v801 = vmul.f32 %v505, 0.125
        %v802 = vmul.f32 %v510, 0.125
        %v803 = vmul.f32 %v515, 0.125
        %v804 = vmul.f32 %v520, 0.125
        %v805 = vmul.f32 %v525, 0.125
        %v806 = vmul.f32 %v530, 0.125
        %vm807 = vcmask 64512
        %v809 = vsel %vm807, %v799, 0
        %v812 = vsel %vm807, %v800, 0
        %v815 = vsel %vm807, %v801, 0
        %v818 = vsel %vm807, %v802, 0
        %v821 = vsel %vm807, %v803, 0
        %v824 = vsel %vm807, %v804, 0
        %v827 = vsel %vm807, %v805, 0
        %v830 = vsel %vm807, %v806, 0
        %v833 = vsel %vm807, %v628, 0
        %v836 = vsel %vm807, %v633, 0
        %v839 = vsel %vm807, %v638, 0
        %v842 = vsel %vm807, %v643, 0
        %v845 = vsel %vm807, %v648, 0
        %v848 = vsel %vm807, %v653, 0
        %v851 = vsel %vm807, %v658, 0
        %v854 = vsel %vm807, %v663, 0
        %856 = vmatprep.subr.mxu0 0.0
        %857 = vmatpush1.xpose.msra.mxu0 %v833
        %858 = vmatprep.subr.mxu0 0.0
        %859 = vmatpush1.xpose.msra.mxu0 %v836
        %860 = vmatprep.subr.mxu0 0.0
        %861 = vmatpush1.xpose.msra.mxu0 %v839
        %862 = vmatprep.subr.mxu0 0.0
        %863 = vmatpush1.xpose.msra.mxu0 %v842
        %864 = vmatprep.subr.mxu0 0.0
        %865 = vmatpush1.xpose.msra.mxu0 %v845
        %866 = vmatprep.subr.mxu0 0.0
        %867 = vmatpush1.xpose.msra.mxu0 %v848
        %868 = vmatprep.subr.mxu0 0.0
        %869 = vmatpush1.xpose.msra.mxu0 %v851
        %870 = vmatprep.subr.mxu0 0.0
        %871 = vmatpush1.xpose.msra.mxu0 %v854
        %872 = vmatprep.subr.mxu0 0.0
        %873 = vmatpush1.xpose.msra.mxu0 0.0
        %874 = vmatprep.subr.mxu0 0.0
        %875 = vmatpush1.xpose.msra.mxu0 0.0
        %876 = vmatprep.subr.mxu0 0.0
        %877 = vmatpush1.xpose.msra.mxu0 0.0
        %878 = vmatprep.subr.mxu0 0.0
        %879 = vmatpush1.xpose.msra.mxu0 0.0
        %880 = vmatprep.subr.mxu0 0.0
        %881 = vmatpush1.xpose.msra.mxu0 0.0
        %882 = vmatprep.subr.mxu0 0.0
        %883 = vmatpush1.xpose.msra.mxu0 0.0
        %884 = vmatprep.subr.mxu0 0.0
        %885 = vmatpush1.xpose.msra.mxu0 0.0
        %886 = vmatprep.subr.mxu0 0.0
        %887 = vmatpush1.xpose.msra.mxu0 0.0
        %888 = vmatprep.subr.mxu0 0.0
        %889 = vmatpush1.xpose.msra.mxu0 0.0
        %890 = vmatprep.subr.mxu0 0.0
        %891 = vmatpush1.xpose.msra.mxu0 0.0
        %892 = vmatprep.subr.mxu0 0.0
        %893 = vmatpush1.xpose.msra.mxu0 0.0
        %894 = vmatprep.subr.mxu0 0.0
        %895 = vmatpush1.xpose.msra.mxu0 0.0
        %896 = vmatprep.subr.mxu0 0.0
        %897 = vmatpush1.xpose.msra.mxu0 0.0
        %898 = vmatprep.subr.mxu0 0.0
        %899 = vmatpush1.xpose.msra.mxu0 0.0
        %900 = vmatprep.subr.mxu0 0.0
        %901 = vmatpush1.xpose.msra.mxu0 0.0
        %902 = vmatprep.subr.mxu0 0.0
        %903 = vmatpush1.xpose.msra.mxu0 0.0
        %904 = vmatprep.subr.mxu0 0.0
        %905 = vmatpush1.xpose.msra.mxu0 0.0
        %906 = vmatprep.subr.mxu0 0.0
        %907 = vmatpush1.xpose.msra.mxu0 0.0
        %908 = vmatprep.subr.mxu0 0.0
        %909 = vmatpush1.xpose.msra.mxu0 0.0
        %910 = vmatprep.subr.mxu0 0.0
        %911 = vmatpush1.xpose.msra.mxu0 0.0
        %912 = vmatprep.subr.mxu0 0.0
        %913 = vmatpush1.xpose.msra.mxu0 0.0
        %914 = vmatprep.subr.mxu0 0.0
        %915 = vmatpush1.xpose.msra.mxu0 0.0
        %916 = vmatprep.subr.mxu0 0.0
        %917 = vmatpush1.xpose.msra.mxu0 0.0
        %918 = vmatprep.subr.mxu0 0.0
        %919 = vmatpush1.xpose.msra.mxu0 0.0
        %920 = vmatprep.mubr.f32.mxu0 0.0
        %921 = vmatmul.mubr.f32.gmra.mrb[0].mxu0 %v809
        %v922 = vpop.f32.mrb[0].mxu0
        %v923 = vadd.f32 0.0, %v922
        %v924 = vpop.f32.mrb[0].mxu0
        %925 = vmatprep.mubr.f32.mxu0 0.0
        %926 = vmatmul.mubr.f32.gmra.mrb[0].mxu0 %v812
        %v927 = vpop.f32.mrb[0].mxu0
        %v928 = vadd.f32 0.0, %v927
        %v929 = vpop.f32.mrb[0].mxu0
        %930 = vmatprep.mubr.f32.mxu0 0.0
        %931 = vmatmul.mubr.f32.gmra.mrb[0].mxu0 %v815
        %v932 = vpop.f32.mrb[0].mxu0
        %v933 = vadd.f32 0.0, %v932
        %v934 = vpop.f32.mrb[0].mxu0
        %935 = vmatprep.mubr.f32.mxu0 0.0
        %936 = vmatmul.mubr.f32.gmra.mrb[0].mxu0 %v818
        %v937 = vpop.f32.mrb[0].mxu0
        %v938 = vadd.f32 0.0, %v937
        %v939 = vpop.f32.mrb[0].mxu0
        %940 = vmatprep.mubr.f32.mxu0 0.0
        %941 = vmatmul.mubr.f32.gmra.mrb[0].mxu0 %v821
        %v942 = vpop.f32.mrb[0].mxu0
        %v943 = vadd.f32 0.0, %v942
        %v944 = vpop.f32.mrb[0].mxu0
        %945 = vmatprep.mubr.f32.mxu0 0.0
        %946 = vmatmul.mubr.f32.gmra.mrb[0].mxu0 %v824
        %v947 = vpop.f32.mrb[0].mxu0
        %v948 = vadd.f32 0.0, %v947
        %v949 = vpop.f32.mrb[0].mxu0
        %950 = vmatprep.mubr.f32.mxu0 0.0
        %951 = vmatmul.mubr.f32.gmra.mrb[0].mxu0 %v827
        %v952 = vpop.f32.mrb[0].mxu0
        %v953 = vadd.f32 0.0, %v952
        %v954 = vpop.f32.mrb[0].mxu0
        %955 = vmatprep.mubr.f32.mxu0 0.0
        %956 = vmatmul.mubr.f32.gmra.mrb[0].mxu0 %v830
        %v957 = vpop.f32.mrb[0].mxu0
        %v958 = vadd.f32 0.0, %v957
        %v959 = vpop.f32.mrb[0].mxu0
        %960 = vdwg.mxu0
        %vm961 = vcmask 523264
        %v962 = vsel %vm961, %v923, -inf
        %963 = vmax.xlane.f32.xlu0 %v962
        %v964 = vpop.xlane.xlu0 %963
        %v965 = vsel %vm961, %v928, -inf
        %966 = vmax.xlane.f32.xlu0 %v965
        %v967 = vpop.xlane.xlu0 %966
        %v968 = vsel %vm961, %v933, -inf
        %969 = vmax.xlane.f32.xlu0 %v968
        %v970 = vpop.xlane.xlu0 %969
        %v971 = vsel %vm961, %v938, -inf
        %972 = vmax.xlane.f32.xlu0 %v971
        %v973 = vpop.xlane.xlu0 %972
        %v974 = vsel %vm961, %v943, -inf
        %975 = vmax.xlane.f32.xlu0 %v974
        %v976 = vpop.xlane.xlu0 %975
        %v977 = vsel %vm961, %v948, -inf
        %978 = vmax.xlane.f32.xlu0 %v977
        %v979 = vpop.xlane.xlu0 %978
        %v980 = vsel %vm961, %v953, -inf
        %981 = vmax.xlane.f32.xlu0 %v980
        %v982 = vpop.xlane.xlu0 %981
        %v983 = vsel %vm961, %v958, -inf
        %984 = vmax.xlane.f32.xlu0 %v983
        %v985 = vpop.xlane.xlu0 %984
        %v986 = vsub.f32 %v923, %v964
        %v987 = vsub.f32 %v928, %v967
        %v988 = vsub.f32 %v933, %v970
        %v989 = vsub.f32 %v938, %v973
        %v990 = vsub.f32 %v943, %v976
        %v991 = vsub.f32 %v948, %v979
        %v992 = vsub.f32 %v953, %v982
        %v993 = vsub.f32 %v958, %v985
        %v994 = vmul.f32 %v986, 1.442695
        %v995 = vpow.pop %v994
        %v996 = vmul.f32 %v987, 1.442695
        %v997 = vpow.pop %v996
        %v998 = vmul.f32 %v988, 1.442695
        %v999 = vpow.pop %v998
        %v1000 = vmul.f32 %v989, 1.442695
        %v1001 = vpow.pop %v1000
        %v1002 = vmul.f32 %v990, 1.442695
        %v1003 = vpow.pop %v1002
        %v1004 = vmul.f32 %v991, 1.442695
        %v1005 = vpow.pop %v1004
        %v1006 = vmul.f32 %v992, 1.442695
        %v1007 = vpow.pop %v1006
        %v1008 = vmul.f32 %v993, 1.442695
        %v1009 = vpow.pop %v1008
        %v1010 = vsel %vm961, %v995, 0.0
        %1011 = vadd.xlane.f32.xlu0 %v1010
        %v1012 = vpop.xlane.xlu0 %1011
        %v1013 = vsel %vm961, %v997, 0.0
        %1014 = vadd.xlane.f32.xlu0 %v1013
        %v1015 = vpop.xlane.xlu0 %1014
        %v1016 = vsel %vm961, %v999, 0.0
        %1017 = vadd.xlane.f32.xlu0 %v1016
        %v1018 = vpop.xlane.xlu0 %1017
        %v1019 = vsel %vm961, %v1001, 0.0
        %1020 = vadd.xlane.f32.xlu0 %v1019
        %v1021 = vpop.xlane.xlu0 %1020
        %v1022 = vsel %vm961, %v1003, 0.0
        %1023 = vadd.xlane.f32.xlu0 %v1022
        %v1024 = vpop.xlane.xlu0 %1023
        %v1025 = vsel %vm961, %v1005, 0.0
        %1026 = vadd.xlane.f32.xlu0 %v1025
        %v1027 = vpop.xlane.xlu0 %1026
        %v1028 = vsel %vm961, %v1007, 0.0
        %1029 = vadd.xlane.f32.xlu0 %v1028
        %v1030 = vpop.xlane.xlu0 %1029
        %v1031 = vsel %vm961, %v1009, 0.0
        %1032 = vadd.xlane.f32.xlu0 %v1031
        %v1033 = vpop.xlane.xlu0 %1032
        %v1034 = vrcp.pop %v1012
        %v1035 = vrcp.pop %v1015
        %v1036 = vrcp.pop %v1018
        %v1037 = vrcp.pop %v1021
        %v1038 = vrcp.pop %v1024
        %v1039 = vrcp.pop %v1027
        %v1040 = vrcp.pop %v1030
        %v1041 = vrcp.pop %v1033
        %v1042 = vmul.f32 %v995, %v1034
        %v1043 = vmul.f32 %v997, %v1035
        %v1044 = vmul.f32 %v999, %v1036
        %v1045 = vmul.f32 %v1001, %v1037
        %v1046 = vmul.f32 %v1003, %v1038
        %v1047 = vmul.f32 %v1005, %v1039
        %v1048 = vmul.f32 %v1007, %v1040
        %v1049 = vmul.f32 %v1009, %v1041
        %v1051 = vsel %vm961, %v1042, 0
        %v1054 = vsel %vm961, %v1043, 0
        %v1057 = vsel %vm961, %v1044, 0
        %v1060 = vsel %vm961, %v1045, 0
        %v1063 = vsel %vm961, %v1046, 0
        %v1066 = vsel %vm961, %v1047, 0
        %v1069 = vsel %vm961, %v1048, 0
        %v1072 = vsel %vm961, %v1049, 0
        %1074 = vmatprep.subr.mxu0 0.0
        %1075 = vmatpush1.msra.mxu0 %v761
        %1076 = vmatprep.subr.mxu0 0.0
        %1077 = vmatpush1.msra.mxu0 %v766
        %1078 = vmatprep.subr.mxu0 0.0
        %1079 = vmatpush1.msra.mxu0 %v771
        %1080 = vmatprep.subr.mxu0 0.0
        %1081 = vmatpush1.msra.mxu0 %v776
        %1082 = vmatprep.subr.mxu0 0.0
        %1083 = vmatpush1.msra.mxu0 %v781
        %1084 = vmatprep.subr.mxu0 0.0
        %1085 = vmatpush1.msra.mxu0 %v786
        %1086 = vmatprep.subr.mxu0 0.0
        %1087 = vmatpush1.msra.mxu0 %v791
        %1088 = vmatprep.subr.mxu0 0.0
        %1089 = vmatpush1.msra.mxu0 %v796
        %1090 = vmatprep.subr.mxu0 0.0
        %1091 = vmatpush1.msra.mxu0 0.0
        %1092 = vmatprep.subr.mxu0 0.0
        %1093 = vmatpush1.msra.mxu0 0.0
        %1094 = vmatprep.subr.mxu0 0.0
        %1095 = vmatpush1.msra.mxu0 0.0
        %1096 = vmatprep.subr.mxu0 0.0
        %1097 = vmatpush1.msra.mxu0 0.0
        %1098 = vmatprep.subr.mxu0 0.0
        %1099 = vmatpush1.msra.mxu0 0.0
        %1100 = vmatprep.subr.mxu0 0.0
        %1101 = vmatpush1.msra.mxu0 0.0
        %1102 = vmatprep.subr.mxu0 0.0
        %1103 = vmatpush1.msra.mxu0 0.0
        %1104 = vmatprep.subr.mxu0 0.0
        %1105 = vmatpush1.msra.mxu0 0.0
        %1106 = vmatprep.subr.mxu0 0.0
        %1107 = vmatpush1.msra.mxu0 0.0
        %1108 = vmatprep.subr.mxu0 0.0
        %1109 = vmatpush1.msra.mxu0 0.0
        %1110 = vmatprep.subr.mxu0 0.0
        %1111 = vmatpush1.msra.mxu0 0.0
        %1112 = vmatprep.subr.mxu0 0.0
        %1113 = vmatpush1.msra.mxu0 0.0
        %1114 = vmatprep.subr.mxu0 0.0
        %1115 = vmatpush1.msra.mxu0 0.0
        %1116 = vmatprep.subr.mxu0 0.0
        %1117 = vmatpush1.msra.mxu0 0.0
        %1118 = vmatprep.subr.mxu0 0.0
        %1119 = vmatpush1.msra.mxu0 0.0
        %1120 = vmatprep.subr.mxu0 0.0
        %1121 = vmatpush1.msra.mxu0 0.0
        %1122 = vmatprep.subr.mxu0 0.0
        %1123 = vmatpush1.msra.mxu0 0.0
        %1124 = vmatprep.subr.mxu0 0.0
        %1125 = vmatpush1.msra.mxu0 0.0
        %1126 = vmatprep.subr.mxu0 0.0
        %1127 = vmatpush1.msra.mxu0 0.0
        %1128 = vmatprep.subr.mxu0 0.0
        %1129 = vmatpush1.msra.mxu0 0.0
        %1130 = vmatprep.subr.mxu0 0.0
        %1131 = vmatpush1.msra.mxu0 0.0
        %1132 = vmatprep.subr.mxu0 0.0
        %1133 = vmatpush1.msra.mxu0 0.0
        %1134 = vmatprep.subr.mxu0 0.0
        %1135 = vmatpush1.msra.mxu0 0.0
        %1136 = vmatprep.subr.mxu0 0.0
        %1137 = vmatpush1.msra.mxu0 0.0
        %1138 = vmatprep.mubr.f32.mxu0 0.0
        %1139 = vmatmul.mubr.f32.gmra.mrb[0].mxu0 %v1051
        %v1140 = vpop.f32.mrb[0].mxu0
        %v1141 = vadd.f32 0.0, %v1140
        %v1142 = vpop.f32.mrb[0].mxu0
        %1143 = vmatprep.mubr.f32.mxu0 0.0
        %1144 = vmatmul.mubr.f32.gmra.mrb[0].mxu0 %v1054
        %v1145 = vpop.f32.mrb[0].mxu0
        %v1146 = vadd.f32 0.0, %v1145
        %v1147 = vpop.f32.mrb[0].mxu0
        %1148 = vmatprep.mubr.f32.mxu0 0.0
        %1149 = vmatmul.mubr.f32.gmra.mrb[0].mxu0 %v1057
        %v1150 = vpop.f32.mrb[0].mxu0
        %v1151 = vadd.f32 0.0, %v1150
        %v1152 = vpop.f32.mrb[0].mxu0
        %1153 = vmatprep.mubr.f32.mxu0 0.0
        %1154 = vmatmul.mubr.f32.gmra.mrb[0].mxu0 %v1060
        %v1155 = vpop.f32.mrb[0].mxu0
        %v1156 = vadd.f32 0.0, %v1155
        %v1157 = vpop.f32.mrb[0].mxu0
        %1158 = vmatprep.mubr.f32.mxu0 0.0
        %1159 = vmatmul.mubr.f32.gmra.mrb[0].mxu0 %v1063
        %v1160 = vpop.f32.mrb[0].mxu0
        %v1161 = vadd.f32 0.0, %v1160
        %v1162 = vpop.f32.mrb[0].mxu0
        %1163 = vmatprep.mubr.f32.mxu0 0.0
        %1164 = vmatmul.mubr.f32.gmra.mrb[0].mxu0 %v1066
        %v1165 = vpop.f32.mrb[0].mxu0
        %v1166 = vadd.f32 0.0, %v1165
        %v1167 = vpop.f32.mrb[0].mxu0
        %1168 = vmatprep.mubr.f32.mxu0 0.0
        %1169 = vmatmul.mubr.f32.gmra.mrb[0].mxu0 %v1069
        %v1170 = vpop.f32.mrb[0].mxu0
        %v1171 = vadd.f32 0.0, %v1170
        %v1172 = vpop.f32.mrb[0].mxu0
        %1173 = vmatprep.mubr.f32.mxu0 0.0
        %1174 = vmatmul.mubr.f32.gmra.mrb[0].mxu0 %v1072
        %v1175 = vpop.f32.mrb[0].mxu0
        %v1176 = vadd.f32 0.0, %v1175
        %v1177 = vpop.f32.mrb[0].mxu0
        %1178 = vdwg.mxu0
        %v1179 = vld [vmem:[%s6] sm:$0xff]
        %1180 = vst.msk [vmem:[%s364] sm:$0xff] %vm961, %v1042
        %1181 = vst.msk [vmem:[%s364 + $0x8] sm:$0xff] %vm961, %v1043
        %1182 = vst.msk [vmem:[%s364 + $0x10] sm:$0xff] %vm961, %v1044
        %1183 = vst.msk [vmem:[%s364 + $0x18] sm:$0xff] %vm961, %v1045
        %1184 = vst.msk [vmem:[%s364 + $0x20] sm:$0xff] %vm961, %v1046
        %1185 = vst.msk [vmem:[%s364 + $0x28] sm:$0xff] %vm961, %v1047
        %1186 = vst.msk [vmem:[%s364 + $0x30] sm:$0xff] %vm961, %v1048
        %1187 = vst.msk [vmem:[%s364 + $0x38] sm:$0xff] %vm961, %v1049
        %1188 = vrot.lane.b32.xlu0 %v799, 120
        %v1189 = vpop.permute.xlu0 %1188
        %1190 = vrot.lane.b32.xlu0 %v800, 120
        %v1191 = vpop.permute.xlu0 %1190
        %1192 = vrot.lane.b32.xlu0 %v801, 120
        %v1193 = vpop.permute.xlu0 %1192
        %1194 = vrot.lane.b32.xlu0 %v802, 120
        %v1195 = vpop.permute.xlu0 %1194
        %1196 = vrot.lane.b32.xlu0 %v803, 120
        %v1197 = vpop.permute.xlu0 %1196
        %1198 = vrot.lane.b32.xlu0 %v804, 120
        %v1199 = vpop.permute.xlu0 %1198
        %1200 = vrot.lane.b32.xlu0 %v805, 120
        %v1201 = vpop.permute.xlu0 %1200
        %1202 = vrot.lane.b32.xlu0 %v806, 120
        %v1203 = vpop.permute.xlu0 %1202
        %1204 = vrot.lane.b32.xlu0 %v628, 120
        %v1205 = vpop.permute.xlu0 %1204
        %1206 = vrot.lane.b32.xlu0 %v633, 120
        %v1207 = vpop.permute.xlu0 %1206
        %1208 = vrot.lane.b32.xlu0 %v638, 120
        %v1209 = vpop.permute.xlu0 %1208
        %1210 = vrot.lane.b32.xlu0 %v643, 120
        %v1211 = vpop.permute.xlu0 %1210
        %1212 = vrot.lane.b32.xlu0 %v648, 120
        %v1213 = vpop.permute.xlu0 %1212
        %1214 = vrot.lane.b32.xlu0 %v653, 120
        %v1215 = vpop.permute.xlu0 %1214
        %1216 = vrot.lane.b32.xlu0 %v658, 120
        %v1217 = vpop.permute.xlu0 %1216
        %1218 = vrot.lane.b32.xlu0 %v663, 120
        %v1219 = vpop.permute.xlu0 %1218
        %v1220 = vsel %vm807, %v1189, 0
        %v1222 = vsel %vm807, %v1191, 0
        %v1224 = vsel %vm807, %v1193, 0
        %v1226 = vsel %vm807, %v1195, 0
        %v1228 = vsel %vm807, %v1197, 0
        %v1230 = vsel %vm807, %v1199, 0
        %v1232 = vsel %vm807, %v1201, 0
        %v1234 = vsel %vm807, %v1203, 0
        %v1236 = vsel %vm807, %v1205, 0
        %v1238 = vsel %vm807, %v1207, 0
        %v1240 = vsel %vm807, %v1209, 0
        %v1242 = vsel %vm807, %v1211, 0
        %v1244 = vsel %vm807, %v1213, 0
        %v1246 = vsel %vm807, %v1215, 0
        %v1248 = vsel %vm807, %v1217, 0
        %v1250 = vsel %vm807, %v1219, 0
        %1252 = vmatprep.subr.mxu0 0.0
        %1253 = vmatpush1.xpose.msra.mxu0 %v1236
        %1254 = vmatprep.subr.mxu0 0.0
        %1255 = vmatpush1.xpose.msra.mxu0 %v1238
        %1256 = vmatprep.subr.mxu0 0.0
        %1257 = vmatpush1.xpose.msra.mxu0 %v1240
        %1258 = vmatprep.subr.mxu0 0.0
        %1259 = vmatpush1.xpose.msra.mxu0 %v1242
        %1260 = vmatprep.subr.mxu0 0.0
        %1261 = vmatpush1.xpose.msra.mxu0 %v1244
        %1262 = vmatprep.subr.mxu0 0.0
        %1263 = vmatpush1.xpose.msra.mxu0 %v1246
        %1264 = vmatprep.subr.mxu0 0.0
        %1265 = vmatpush1.xpose.msra.mxu0 %v1248
        %1266 = vmatprep.subr.mxu0 0.0
        %1267 = vmatpush1.xpose.msra.mxu0 %v1250
        %1268 = vmatprep.subr.mxu0 0.0
        %1269 = vmatpush1.xpose.msra.mxu0 0.0
        %1270 = vmatprep.subr.mxu0 0.0
        %1271 = vmatpush1.xpose.msra.mxu0 0.0
        %1272 = vmatprep.subr.mxu0 0.0
        %1273 = vmatpush1.xpose.msra.mxu0 0.0
        %1274 = vmatprep.subr.mxu0 0.0
        %1275 = vmatpush1.xpose.msra.mxu0 0.0
        %1276 = vmatprep.subr.mxu0 0.0
        %1277 = vmatpush1.xpose.msra.mxu0 0.0
        %1278 = vmatprep.subr.mxu0 0.0
        %1279 = vmatpush1.xpose.msra.mxu0 0.0
        %1280 = vmatprep.subr.mxu0 0.0
        %1281 = vmatpush1.xpose.msra.mxu0 0.0
        %1282 = vmatprep.subr.mxu0 0.0
        %1283 = vmatpush1.xpose.msra.mxu0 0.0
        %1284 = vmatprep.subr.mxu0 0.0
        %1285 = vmatpush1.xpose.msra.mxu0 0.0
        %1286 = vmatprep.subr.mxu0 0.0
        %1287 = vmatpush1.xpose.msra.mxu0 0.0
        %1288 = vmatprep.subr.mxu0 0.0
        %1289 = vmatpush1.xpose.msra.mxu0 0.0
        %1290 = vmatprep.subr.mxu0 0.0
        %1291 = vmatpush1.xpose.msra.mxu0 0.0
        %1292 = vmatprep.subr.mxu0 0.0
        %1293 = vmatpush1.xpose.msra.mxu0 0.0
        %1294 = vmatprep.subr.mxu0 0.0
        %1295 = vmatpush1.xpose.msra.mxu0 0.0
        %1296 = vmatprep.subr.mxu0 0.0
        %1297 = vmatpush1.xpose.msra.mxu0 0.0
        %1298 = vmatprep.subr.mxu0 0.0
        %1299 = vmatpush1.xpose.msra.mxu0 0.0
        %1300 = vmatprep.subr.mxu0 0.0
        %1301 = vmatpush1.xpose.msra.mxu0 0.0
        %1302 = vmatprep.subr.mxu0 0.0
        %1303 = vmatpush1.xpose.msra.mxu0 0.0
        %1304 = vmatprep.subr.mxu0 0.0
        %1305 = vmatpush1.xpose.msra.mxu0 0.0
        %1306 = vmatprep.subr.mxu0 0.0
        %1307 = vmatpush1.xpose.msra.mxu0 0.0
        %1308 = vmatprep.subr.mxu0 0.0
        %1309 = vmatpush1.xpose.msra.mxu0 0.0
        %1310 = vmatprep.subr.mxu0 0.0
        %1311 = vmatpush1.xpose.msra.mxu0 0.0
        %1312 = vmatprep.subr.mxu0 0.0
        %1313 = vmatpush1.xpose.msra.mxu0 0.0
        %1314 = vmatprep.subr.mxu0 0.0
        %1315 = vmatpush1.xpose.msra.mxu0 0.0
        %1316 = vmatprep.mubr.f32.mxu0 0.0
        %1317 = vmatmul.mubr.f32.gmra.mrb[0].mxu0 %v1220
        %v1318 = vpop.f32.mrb[0].mxu0
        %v1319 = vadd.f32 0.0, %v1318
        %v1320 = vpop.f32.mrb[0].mxu0
        %1321 = vmatprep.mubr.f32.mxu0 0.0
        %1322 = vmatmul.mubr.f32.gmra.mrb[0].mxu0 %v1222
        %v1323 = vpop.f32.mrb[0].mxu0
        %v1324 = vadd.f32 0.0, %v1323
        %v1325 = vpop.f32.mrb[0].mxu0
        %1326 = vmatprep.mubr.f32.mxu0 0.0
        %1327 = vmatmul.mubr.f32.gmra.mrb[0].mxu0 %v1224
        %v1328 = vpop.f32.mrb[0].mxu0
        %v1329 = vadd.f32 0.0, %v1328
        %v1330 = vpop.f32.mrb[0].mxu0
        %1331 = vmatprep.mubr.f32.mxu0 0.0
        %1332 = vmatmul.mubr.f32.gmra.mrb[0].mxu0 %v1226
        %v1333 = vpop.f32.mrb[0].mxu0
        %v1334 = vadd.f32 0.0, %v1333
        %v1335 = vpop.f32.mrb[0].mxu0
        %1336 = vmatprep.mubr.f32.mxu0 0.0
        %1337 = vmatmul.mubr.f32.gmra.mrb[0].mxu0 %v1228
        %v1338 = vpop.f32.mrb[0].mxu0
        %v1339 = vadd.f32 0.0, %v1338
        %v1340 = vpop.f32.mrb[0].mxu0
        %1341 = vmatprep.mubr.f32.mxu0 0.0
        %1342 = vmatmul.mubr.f32.gmra.mrb[0].mxu0 %v1230
        %v1343 = vpop.f32.mrb[0].mxu0
        %v1344 = vadd.f32 0.0, %v1343
        %v1345 = vpop.f32.mrb[0].mxu0
        %1346 = vmatprep.mubr.f32.mxu0 0.0
        %1347 = vmatmul.mubr.f32.gmra.mrb[0].mxu0 %v1232
        %v1348 = vpop.f32.mrb[0].mxu0
        %v1349 = vadd.f32 0.0, %v1348
        %v1350 = vpop.f32.mrb[0].mxu0
        %1351 = vmatprep.mubr.f32.mxu0 0.0
        %1352 = vmatmul.mubr.f32.gmra.mrb[0].mxu0 %v1234
        %v1353 = vpop.f32.mrb[0].mxu0
        %v1354 = vadd.f32 0.0, %v1353
        %v1355 = vpop.f32.mrb[0].mxu0
        %1356 = vdwg.mxu0
        %v1357 = vsel %vm961, %v1319, -inf
        %1358 = vmax.xlane.f32.xlu0 %v1357
        %v1359 = vpop.xlane.xlu0 %1358
        %v1360 = vsel %vm961, %v1324, -inf
        %1361 = vmax.xlane.f32.xlu0 %v1360
        %v1362 = vpop.xlane.xlu0 %1361
        %v1363 = vsel %vm961, %v1329, -inf
        %1364 = vmax.xlane.f32.xlu0 %v1363
        %v1365 = vpop.xlane.xlu0 %1364
        %v1366 = vsel %vm961, %v1334, -inf
        %1367 = vmax.xlane.f32.xlu0 %v1366
        %v1368 = vpop.xlane.xlu0 %1367
        %v1369 = vsel %vm961, %v1339, -inf
        %1370 = vmax.xlane.f32.xlu0 %v1369
        %v1371 = vpop.xlane.xlu0 %1370
        %v1372 = vsel %vm961, %v1344, -inf
        %1373 = vmax.xlane.f32.xlu0 %v1372
        %v1374 = vpop.xlane.xlu0 %1373
        %v1375 = vsel %vm961, %v1349, -inf
        %1376 = vmax.xlane.f32.xlu0 %v1375
        %v1377 = vpop.xlane.xlu0 %1376
        %v1378 = vsel %vm961, %v1354, -inf
        %1379 = vmax.xlane.f32.xlu0 %v1378
        %v1380 = vpop.xlane.xlu0 %1379
        %v1381 = vsub.f32 %v1319, %v1359
        %v1382 = vsub.f32 %v1324, %v1362
        %v1383 = vsub.f32 %v1329, %v1365
        %v1384 = vsub.f32 %v1334, %v1368
        %v1385 = vsub.f32 %v1339, %v1371
        %v1386 = vsub.f32 %v1344, %v1374
        %v1387 = vsub.f32 %v1349, %v1377
        %v1388 = vsub.f32 %v1354, %v1380
        %v1389 = vmul.f32 %v1381, 1.442695
        %v1390 = vpow.pop %v1389
        %v1391 = vmul.f32 %v1382, 1.442695
        %v1392 = vpow.pop %v1391
        %v1393 = vmul.f32 %v1383, 1.442695
        %v1394 = vpow.pop %v1393
        %v1395 = vmul.f32 %v1384, 1.442695
        %v1396 = vpow.pop %v1395
        %v1397 = vmul.f32 %v1385, 1.442695
        %v1398 = vpow.pop %v1397
        %v1399 = vmul.f32 %v1386, 1.442695
        %v1400 = vpow.pop %v1399
        %v1401 = vmul.f32 %v1387, 1.442695
        %v1402 = vpow.pop %v1401
        %v1403 = vmul.f32 %v1388, 1.442695
        %v1404 = vpow.pop %v1403
        %v1405 = vsel %vm961, %v1390, 0.0
        %1406 = vadd.xlane.f32.xlu0 %v1405
        %v1407 = vpop.xlane.xlu0 %1406
        %v1408 = vsel %vm961, %v1392, 0.0
        %1409 = vadd.xlane.f32.xlu0 %v1408
        %v1410 = vpop.xlane.xlu0 %1409
        %v1411 = vsel %vm961, %v1394, 0.0
        %1412 = vadd.xlane.f32.xlu0 %v1411
        %v1413 = vpop.xlane.xlu0 %1412
        %v1414 = vsel %vm961, %v1396, 0.0
        %1415 = vadd.xlane.f32.xlu0 %v1414
        %v1416 = vpop.xlane.xlu0 %1415
        %v1417 = vsel %vm961, %v1398, 0.0
        %1418 = vadd.xlane.f32.xlu0 %v1417
        %v1419 = vpop.xlane.xlu0 %1418
        %v1420 = vsel %vm961, %v1400, 0.0
        %1421 = vadd.xlane.f32.xlu0 %v1420
        %v1422 = vpop.xlane.xlu0 %1421
        %v1423 = vsel %vm961, %v1402, 0.0
        %1424 = vadd.xlane.f32.xlu0 %v1423
        %v1425 = vpop.xlane.xlu0 %1424
        %v1426 = vsel %vm961, %v1404, 0.0
        %1427 = vadd.xlane.f32.xlu0 %v1426
        %v1428 = vpop.xlane.xlu0 %1427
        %v1429 = vrcp.pop %v1407
        %v1430 = vrcp.pop %v1410
        %v1431 = vrcp.pop %v1413
        %v1432 = vrcp.pop %v1416
        %v1433 = vrcp.pop %v1419
        %v1434 = vrcp.pop %v1422
        %v1435 = vrcp.pop %v1425
        %v1436 = vrcp.pop %v1428
        %v1437 = vmul.f32 %v1390, %v1429
        %v1438 = vmul.f32 %v1392, %v1430
        %v1439 = vmul.f32 %v1394, %v1431
        %v1440 = vmul.f32 %v1396, %v1432
        %v1441 = vmul.f32 %v1398, %v1433
        %v1442 = vmul.f32 %v1400, %v1434
        %v1443 = vmul.f32 %v1402, %v1435
        %v1444 = vmul.f32 %v1404, %v1436
        %1453 = vrot.lane.b32.xlu0 %v761, 120
        %v1454 = vpop.permute.xlu0 %1453
        %1455 = vrot.lane.b32.xlu0 %v766, 120
        %v1456 = vpop.permute.xlu0 %1455
        %1457 = vrot.lane.b32.xlu0 %v771, 120
        %v1458 = vpop.permute.xlu0 %1457
        %1459 = vrot.lane.b32.xlu0 %v776, 120
        %v1460 = vpop.permute.xlu0 %1459
        %1461 = vrot.lane.b32.xlu0 %v781, 120
        %v1462 = vpop.permute.xlu0 %1461
        %1463 = vrot.lane.b32.xlu0 %v786, 120
        %v1464 = vpop.permute.xlu0 %1463
        %1465 = vrot.lane.b32.xlu0 %v791, 120
        %v1466 = vpop.permute.xlu0 %1465
        %1467 = vrot.lane.b32.xlu0 %v796, 120
        %v1468 = vpop.permute.xlu0 %1467
        %v1478 = vsel %vm961, %v1437, 0
        %v1481 = vsel %vm961, %v1438, 0
        %v1484 = vsel %vm961, %v1439, 0
        %v1487 = vsel %vm961, %v1440, 0
        %v1490 = vsel %vm961, %v1441, 0
        %v1493 = vsel %vm961, %v1442, 0
        %v1496 = vsel %vm961, %v1443, 0
        %v1499 = vsel %vm961, %v1444, 0
        %1501 = vmatprep.subr.mxu0 0.0
        %1502 = vmatpush1.msra.mxu0 %v1454
        %1503 = vmatprep.subr.mxu0 0.0
        %1504 = vmatpush1.msra.mxu0 %v1456
        %1505 = vmatprep.subr.mxu0 0.0
        %1506 = vmatpush1.msra.mxu0 %v1458
        %1507 = vmatprep.subr.mxu0 0.0
        %1508 = vmatpush1.msra.mxu0 %v1460
        %1509 = vmatprep.subr.mxu0 0.0
        %1510 = vmatpush1.msra.mxu0 %v1462
        %1511 = vmatprep.subr.mxu0 0.0
        %1512 = vmatpush1.msra.mxu0 %v1464
        %1513 = vmatprep.subr.mxu0 0.0
        %1514 = vmatpush1.msra.mxu0 %v1466
        %1515 = vmatprep.subr.mxu0 0.0
        %1516 = vmatpush1.msra.mxu0 %v1468
        %1517 = vmatprep.subr.mxu0 0.0
        %1518 = vmatpush1.msra.mxu0 0.0
        %1519 = vmatprep.subr.mxu0 0.0
        %1520 = vmatpush1.msra.mxu0 0.0
        %1521 = vmatprep.subr.mxu0 0.0
        %1522 = vmatpush1.msra.mxu0 0.0
        %1523 = vmatprep.subr.mxu0 0.0
        %1524 = vmatpush1.msra.mxu0 0.0
        %1525 = vmatprep.subr.mxu0 0.0
        %1526 = vmatpush1.msra.mxu0 0.0
        %1527 = vmatprep.subr.mxu0 0.0
        %1528 = vmatpush1.msra.mxu0 0.0
        %1529 = vmatprep.subr.mxu0 0.0
        %1530 = vmatpush1.msra.mxu0 0.0
        %1531 = vmatprep.subr.mxu0 0.0
        %1532 = vmatpush1.msra.mxu0 0.0
        %1533 = vmatprep.subr.mxu0 0.0
        %1534 = vmatpush1.msra.mxu0 0.0
        %1535 = vmatprep.subr.mxu0 0.0
        %1536 = vmatpush1.msra.mxu0 0.0
        %1537 = vmatprep.subr.mxu0 0.0
        %1538 = vmatpush1.msra.mxu0 0.0
        %1539 = vmatprep.subr.mxu0 0.0
        %1540 = vmatpush1.msra.mxu0 0.0
        %1541 = vmatprep.subr.mxu0 0.0
        %1542 = vmatpush1.msra.mxu0 0.0
        %1543 = vmatprep.subr.mxu0 0.0
        %1544 = vmatpush1.msra.mxu0 0.0
        %1545 = vmatprep.subr.mxu0 0.0
        %1546 = vmatpush1.msra.mxu0 0.0
        %1547 = vmatprep.subr.mxu0 0.0
        %1548 = vmatpush1.msra.mxu0 0.0
        %1549 = vmatprep.subr.mxu0 0.0
        %1550 = vmatpush1.msra.mxu0 0.0
        %1551 = vmatprep.subr.mxu0 0.0
        %1552 = vmatpush1.msra.mxu0 0.0
        %1553 = vmatprep.subr.mxu0 0.0
        %1554 = vmatpush1.msra.mxu0 0.0
        %1555 = vmatprep.subr.mxu0 0.0
        %1556 = vmatpush1.msra.mxu0 0.0
        %1557 = vmatprep.subr.mxu0 0.0
        %1558 = vmatpush1.msra.mxu0 0.0
        %1559 = vmatprep.subr.mxu0 0.0
        %1560 = vmatpush1.msra.mxu0 0.0
        %1561 = vmatprep.subr.mxu0 0.0
        %1562 = vmatpush1.msra.mxu0 0.0
        %1563 = vmatprep.subr.mxu0 0.0
        %1564 = vmatpush1.msra.mxu0 0.0
        %1565 = vmatprep.mubr.f32.mxu0 0.0
        %1566 = vmatmul.mubr.f32.gmra.mrb[0].mxu0 %v1478
        %v1567 = vpop.f32.mrb[0].mxu0
        %v1568 = vadd.f32 0.0, %v1567
        %v1569 = vpop.f32.mrb[0].mxu0
        %1570 = vmatprep.mubr.f32.mxu0 0.0
        %1571 = vmatmul.mubr.f32.gmra.mrb[0].mxu0 %v1481
        %v1572 = vpop.f32.mrb[0].mxu0
        %v1573 = vadd.f32 0.0, %v1572
        %v1574 = vpop.f32.mrb[0].mxu0
        %1575 = vmatprep.mubr.f32.mxu0 0.0
        %1576 = vmatmul.mubr.f32.gmra.mrb[0].mxu0 %v1484
        %v1577 = vpop.f32.mrb[0].mxu0
        %v1578 = vadd.f32 0.0, %v1577
        %v1579 = vpop.f32.mrb[0].mxu0
        %1580 = vmatprep.mubr.f32.mxu0 0.0
        %1581 = vmatmul.mubr.f32.gmra.mrb[0].mxu0 %v1487
        %v1582 = vpop.f32.mrb[0].mxu0
        %v1583 = vadd.f32 0.0, %v1582
        %v1584 = vpop.f32.mrb[0].mxu0
        %1585 = vmatprep.mubr.f32.mxu0 0.0
        %1586 = vmatmul.mubr.f32.gmra.mrb[0].mxu0 %v1490
        %v1587 = vpop.f32.mrb[0].mxu0
        %v1588 = vadd.f32 0.0, %v1587
        %v1589 = vpop.f32.mrb[0].mxu0
        %1590 = vmatprep.mubr.f32.mxu0 0.0
        %1591 = vmatmul.mubr.f32.gmra.mrb[0].mxu0 %v1493
        %v1592 = vpop.f32.mrb[0].mxu0
        %v1593 = vadd.f32 0.0, %v1592
        %v1594 = vpop.f32.mrb[0].mxu0
        %1595 = vmatprep.mubr.f32.mxu0 0.0
        %1596 = vmatmul.mubr.f32.gmra.mrb[0].mxu0 %v1496
        %v1597 = vpop.f32.mrb[0].mxu0
        %v1598 = vadd.f32 0.0, %v1597
        %v1599 = vpop.f32.mrb[0].mxu0
        %1600 = vmatprep.mubr.f32.mxu0 0.0
        %1601 = vmatmul.mubr.f32.gmra.mrb[0].mxu0 %v1499
        %v1602 = vpop.f32.mrb[0].mxu0
        %v1603 = vadd.f32 0.0, %v1602
        %v1604 = vpop.f32.mrb[0].mxu0
        %1605 = vdwg.mxu0
        %v1606 = vld [vmem:[%s6 + $0x8] sm:$0xff]
        %v1608 = vsel %vm807, %v1568, 0
        %v1611 = vsel %vm807, %v1573, 0
        %v1614 = vsel %vm807, %v1578, 0
        %v1617 = vsel %vm807, %v1583, 0
        %v1620 = vsel %vm807, %v1588, 0
        %v1623 = vsel %vm807, %v1593, 0
        %v1626 = vsel %vm807, %v1598, 0
        %v1629 = vsel %vm807, %v1603, 0
        %1631 = vmatprep.subr.mxu0 0.0
        %1632 = vmatpush1.msra.mxu0 %v1606
        %1633 = vmatprep.subr.mxu0 0.0
        %1634 = vmatpush1.msra.mxu0 0.0
        %1635 = vmatprep.subr.mxu0 0.0
        %1636 = vmatpush1.msra.mxu0 0.0
        %1637 = vmatprep.subr.mxu0 0.0
        %1638 = vmatpush1.msra.mxu0 0.0
        %1639 = vmatprep.subr.mxu0 0.0
        %1640 = vmatpush1.msra.mxu0 0.0
        %1641 = vmatprep.subr.mxu0 0.0
        %1642 = vmatpush1.msra.mxu0 0.0
        %1643 = vmatprep.subr.mxu0 0.0
        %1644 = vmatpush1.msra.mxu0 0.0
        %1645 = vmatprep.subr.mxu0 0.0
        %1646 = vmatpush1.msra.mxu0 0.0
        %1647 = vmatprep.subr.mxu0 0.0
        %1648 = vmatpush1.msra.mxu0 0.0
        %1649 = vmatprep.subr.mxu0 0.0
        %1650 = vmatpush1.msra.mxu0 0.0
        %1651 = vmatprep.subr.mxu0 0.0
        %1652 = vmatpush1.msra.mxu0 0.0
        %1653 = vmatprep.subr.mxu0 0.0
        %1654 = vmatpush1.msra.mxu0 0.0
        %1655 = vmatprep.subr.mxu0 0.0
        %1656 = vmatpush1.msra.mxu0 0.0
        %1657 = vmatprep.subr.mxu0 0.0
        %1658 = vmatpush1.msra.mxu0 0.0
        %1659 = vmatprep.subr.mxu0 0.0
        %1660 = vmatpush1.msra.mxu0 0.0
        %1661 = vmatprep.subr.mxu0 0.0
        %1662 = vmatpush1.msra.mxu0 0.0
        %1663 = vmatprep.subr.mxu0 0.0
        %1664 = vmatpush1.msra.mxu0 0.0
        %1665 = vmatprep.subr.mxu0 0.0
        %1666 = vmatpush1.msra.mxu0 0.0
        %1667 = vmatprep.subr.mxu0 0.0
        %1668 = vmatpush1.msra.mxu0 0.0
        %1669 = vmatprep.subr.mxu0 0.0
        %1670 = vmatpush1.msra.mxu0 0.0
        %1671 = vmatprep.subr.mxu0 0.0
        %1672 = vmatpush1.msra.mxu0 0.0
        %1673 = vmatprep.subr.mxu0 0.0
        %1674 = vmatpush1.msra.mxu0 0.0
        %1675 = vmatprep.subr.mxu0 0.0
        %1676 = vmatpush1.msra.mxu0 0.0
        %1677 = vmatprep.subr.mxu0 0.0
        %1678 = vmatpush1.msra.mxu0 0.0
        %1679 = vmatprep.subr.mxu0 0.0
        %1680 = vmatpush1.msra.mxu0 0.0
        %1681 = vmatprep.subr.mxu0 0.0
        %1682 = vmatpush1.msra.mxu0 0.0
        %1683 = vmatprep.subr.mxu0 0.0
        %1684 = vmatpush1.msra.mxu0 0.0
        %1685 = vmatprep.subr.mxu0 0.0
        %1686 = vmatpush1.msra.mxu0 0.0
        %1687 = vmatprep.subr.mxu0 0.0
        %1688 = vmatpush1.msra.mxu0 0.0
        %1689 = vmatprep.subr.mxu0 0.0
        %1690 = vmatpush1.msra.mxu0 0.0
        %1691 = vmatprep.subr.mxu0 0.0
        %1692 = vmatpush1.msra.mxu0 0.0
        %1693 = vmatprep.subr.mxu0 0.0
        %1694 = vmatpush1.msra.mxu0 0.0
        %1695 = vmatprep.mubr.f32.mxu0 0.0
        %1696 = vmatmul.mubr.f32.gmra.mrb[0].mxu0 %v1608
        %v1697 = vpop.f32.mrb[0].mxu0
        %v1698 = vadd.f32 0.0, %v1697
        %v1699 = vpop.f32.mrb[0].mxu0
        %1700 = vmatprep.mubr.f32.mxu0 0.0
        %1701 = vmatmul.mubr.f32.gmra.mrb[0].mxu0 %v1611
        %v1702 = vpop.f32.mrb[0].mxu0
        %v1703 = vadd.f32 0.0, %v1702
        %v1704 = vpop.f32.mrb[0].mxu0
        %1705 = vmatprep.mubr.f32.mxu0 0.0
        %1706 = vmatmul.mubr.f32.gmra.mrb[0].mxu0 %v1614
        %v1707 = vpop.f32.mrb[0].mxu0
        %v1708 = vadd.f32 0.0, %v1707
        %v1709 = vpop.f32.mrb[0].mxu0
        %1710 = vmatprep.mubr.f32.mxu0 0.0
        %1711 = vmatmul.mubr.f32.gmra.mrb[0].mxu0 %v1617
        %v1712 = vpop.f32.mrb[0].mxu0
        %v1713 = vadd.f32 0.0, %v1712
        %v1714 = vpop.f32.mrb[0].mxu0
        %1715 = vmatprep.mubr.f32.mxu0 0.0
        %1716 = vmatmul.mubr.f32.gmra.mrb[0].mxu0 %v1620
        %v1717 = vpop.f32.mrb[0].mxu0
        %v1718 = vadd.f32 0.0, %v1717
        %v1719 = vpop.f32.mrb[0].mxu0
        %1720 = vmatprep.mubr.f32.mxu0 0.0
        %1721 = vmatmul.mubr.f32.gmra.mrb[0].mxu0 %v1623
        %v1722 = vpop.f32.mrb[0].mxu0
        %v1723 = vadd.f32 0.0, %v1722
        %v1724 = vpop.f32.mrb[0].mxu0
        %1725 = vmatprep.mubr.f32.mxu0 0.0
        %1726 = vmatmul.mubr.f32.gmra.mrb[0].mxu0 %v1626
        %v1727 = vpop.f32.mrb[0].mxu0
        %v1728 = vadd.f32 0.0, %v1727
        %v1729 = vpop.f32.mrb[0].mxu0
        %1730 = vmatprep.mubr.f32.mxu0 0.0
        %1731 = vmatmul.mubr.f32.gmra.mrb[0].mxu0 %v1629
        %v1732 = vpop.f32.mrb[0].mxu0
        %v1733 = vadd.f32 0.0, %v1732
        %v1734 = vpop.f32.mrb[0].mxu0
        %1735 = vdwg.mxu0
        %v1737 = vsel %vm807, %v1141, 0
        %v1740 = vsel %vm807, %v1146, 0
        %v1743 = vsel %vm807, %v1151, 0
        %v1746 = vsel %vm807, %v1156, 0
        %v1749 = vsel %vm807, %v1161, 0
        %v1752 = vsel %vm807, %v1166, 0
        %v1755 = vsel %vm807, %v1171, 0
        %v1758 = vsel %vm807, %v1176, 0
        %1760 = vmatprep.subr.mxu0 0.0
        %1761 = vmatpush1.msra.mxu0 %v1179
        %1762 = vmatprep.subr.mxu0 0.0
        %1763 = vmatpush1.msra.mxu0 0.0
        %1764 = vmatprep.subr.mxu0 0.0
        %1765 = vmatpush1.msra.mxu0 0.0
        %1766 = vmatprep.subr.mxu0 0.0
        %1767 = vmatpush1.msra.mxu0 0.0
        %1768 = vmatprep.subr.mxu0 0.0
        %1769 = vmatpush1.msra.mxu0 0.0
        %1770 = vmatprep.subr.mxu0 0.0
        %1771 = vmatpush1.msra.mxu0 0.0
        %1772 = vmatprep.subr.mxu0 0.0
        %1773 = vmatpush1.msra.mxu0 0.0
        %1774 = vmatprep.subr.mxu0 0.0
        %1775 = vmatpush1.msra.mxu0 0.0
        %1776 = vmatprep.subr.mxu0 0.0
        %1777 = vmatpush1.msra.mxu0 0.0
        %1778 = vmatprep.subr.mxu0 0.0
        %1779 = vmatpush1.msra.mxu0 0.0
        %1780 = vmatprep.subr.mxu0 0.0
        %1781 = vmatpush1.msra.mxu0 0.0
        %1782 = vmatprep.subr.mxu0 0.0
        %1783 = vmatpush1.msra.mxu0 0.0
        %1784 = vmatprep.subr.mxu0 0.0
        %1785 = vmatpush1.msra.mxu0 0.0
        %1786 = vmatprep.subr.mxu0 0.0
        %1787 = vmatpush1.msra.mxu0 0.0
        %1788 = vmatprep.subr.mxu0 0.0
        %1789 = vmatpush1.msra.mxu0 0.0
        %1790 = vmatprep.subr.mxu0 0.0
        %1791 = vmatpush1.msra.mxu0 0.0
        %1792 = vmatprep.subr.mxu0 0.0
        %1793 = vmatpush1.msra.mxu0 0.0
        %1794 = vmatprep.subr.mxu0 0.0
        %1795 = vmatpush1.msra.mxu0 0.0
        %1796 = vmatprep.subr.mxu0 0.0
        %1797 = vmatpush1.msra.mxu0 0.0
        %1798 = vmatprep.subr.mxu0 0.0
        %1799 = vmatpush1.msra.mxu0 0.0
        %1800 = vmatprep.subr.mxu0 0.0
        %1801 = vmatpush1.msra.mxu0 0.0
        %1802 = vmatprep.subr.mxu0 0.0
        %1803 = vmatpush1.msra.mxu0 0.0
        %1804 = vmatprep.subr.mxu0 0.0
        %1805 = vmatpush1.msra.mxu0 0.0
        %1806 = vmatprep.subr.mxu0 0.0
        %1807 = vmatpush1.msra.mxu0 0.0
        %1808 = vmatprep.subr.mxu0 0.0
        %1809 = vmatpush1.msra.mxu0 0.0
        %1810 = vmatprep.subr.mxu0 0.0
        %1811 = vmatpush1.msra.mxu0 0.0
        %1812 = vmatprep.subr.mxu0 0.0
        %1813 = vmatpush1.msra.mxu0 0.0
        %1814 = vmatprep.subr.mxu0 0.0
        %1815 = vmatpush1.msra.mxu0 0.0
        %1816 = vmatprep.subr.mxu0 0.0
        %1817 = vmatpush1.msra.mxu0 0.0
        %1818 = vmatprep.subr.mxu0 0.0
        %1819 = vmatpush1.msra.mxu0 0.0
        %1820 = vmatprep.subr.mxu0 0.0
        %1821 = vmatpush1.msra.mxu0 0.0
        %1822 = vmatprep.subr.mxu0 0.0
        %1823 = vmatpush1.msra.mxu0 0.0
        %1824 = vmatprep.mubr.f32.mxu0 0.0
        %1825 = vmatmul.mubr.f32.gmra.mrb[0].mxu0 %v1737
        %v1826 = vpop.f32.mrb[0].mxu0
        %v1827 = vadd.f32 %v1698, %v1826
        %v1828 = vpop.f32.mrb[0].mxu0
        %1829 = vmatprep.mubr.f32.mxu0 0.0
        %1830 = vmatmul.mubr.f32.gmra.mrb[0].mxu0 %v1740
        %v1831 = vpop.f32.mrb[0].mxu0
        %v1832 = vadd.f32 %v1703, %v1831
        %v1833 = vpop.f32.mrb[0].mxu0
        %1834 = vmatprep.mubr.f32.mxu0 0.0
        %1835 = vmatmul.mubr.f32.gmra.mrb[0].mxu0 %v1743
        %v1836 = vpop.f32.mrb[0].mxu0
        %v1837 = vadd.f32 %v1708, %v1836
        %v1838 = vpop.f32.mrb[0].mxu0
        %1839 = vmatprep.mubr.f32.mxu0 0.0
        %1840 = vmatmul.mubr.f32.gmra.mrb[0].mxu0 %v1746
        %v1841 = vpop.f32.mrb[0].mxu0
        %v1842 = vadd.f32 %v1713, %v1841
        %v1843 = vpop.f32.mrb[0].mxu0
        %1844 = vmatprep.mubr.f32.mxu0 0.0
        %1845 = vmatmul.mubr.f32.gmra.mrb[0].mxu0 %v1749
        %v1846 = vpop.f32.mrb[0].mxu0
        %v1847 = vadd.f32 %v1718, %v1846
        %v1848 = vpop.f32.mrb[0].mxu0
        %1849 = vmatprep.mubr.f32.mxu0 0.0
        %1850 = vmatmul.mubr.f32.gmra.mrb[0].mxu0 %v1752
        %v1851 = vpop.f32.mrb[0].mxu0
        %v1852 = vadd.f32 %v1723, %v1851
        %v1853 = vpop.f32.mrb[0].mxu0
        %1854 = vmatprep.mubr.f32.mxu0 0.0
        %1855 = vmatmul.mubr.f32.gmra.mrb[0].mxu0 %v1755
        %v1856 = vpop.f32.mrb[0].mxu0
        %v1857 = vadd.f32 %v1728, %v1856
        %v1858 = vpop.f32.mrb[0].mxu0
        %1859 = vmatprep.mubr.f32.mxu0 0.0
        %1860 = vmatmul.mubr.f32.gmra.mrb[0].mxu0 %v1758
        %v1861 = vpop.f32.mrb[0].mxu0
        %v1862 = vadd.f32 %v1733, %v1861
        %v1863 = vpop.f32.mrb[0].mxu0
        %1864 = vdwg.mxu0
        %s1865 = scalar_lea.vmem %s364, 64 [#allocation6]
        %1866 = vst.msk [vmem:[%s1865] sm:$0xff] %vm961, %v1437
        %1867 = vst.msk [vmem:[%s1865 + $0x8] sm:$0xff] %vm961, %v1438
        %1868 = vst.msk [vmem:[%s1865 + $0x10] sm:$0xff] %vm961, %v1439
        %1869 = vst.msk [vmem:[%s1865 + $0x18] sm:$0xff] %vm961, %v1440
        %1870 = vst.msk [vmem:[%s1865 + $0x20] sm:$0xff] %vm961, %v1441
        %1871 = vst.msk [vmem:[%s1865 + $0x28] sm:$0xff] %vm961, %v1442
        %1872 = vst.msk [vmem:[%s1865 + $0x30] sm:$0xff] %vm961, %v1443
        %1873 = vst.msk [vmem:[%s1865 + $0x38] sm:$0xff] %vm961, %v1444
        %1874 = vrot.lane.b32.xlu0 %v799, 112
        %v1875 = vpop.permute.xlu0 %1874
        %1876 = vrot.lane.b32.xlu0 %v800, 112
        %v1877 = vpop.permute.xlu0 %1876
        %1878 = vrot.lane.b32.xlu0 %v801, 112
        %v1879 = vpop.permute.xlu0 %1878
        %1880 = vrot.lane.b32.xlu0 %v802, 112
        %v1881 = vpop.permute.xlu0 %1880
        %1882 = vrot.lane.b32.xlu0 %v803, 112
        %v1883 = vpop.permute.xlu0 %1882
        %1884 = vrot.lane.b32.xlu0 %v804, 112
        %v1885 = vpop.permute.xlu0 %1884
        %1886 = vrot.lane.b32.xlu0 %v805, 112
        %v1887 = vpop.permute.xlu0 %1886
        %1888 = vrot.lane.b32.xlu0 %v806, 112
        %v1889 = vpop.permute.xlu0 %1888
        %1890 = vrot.lane.b32.xlu0 %v628, 112
        %v1891 = vpop.permute.xlu0 %1890
        %1892 = vrot.lane.b32.xlu0 %v633, 112
        %v1893 = vpop.permute.xlu0 %1892
        %1894 = vrot.lane.b32.xlu0 %v638, 112
        %v1895 = vpop.permute.xlu0 %1894
        %1896 = vrot.lane.b32.xlu0 %v643, 112
        %v1897 = vpop.permute.xlu0 %1896
        %1898 = vrot.lane.b32.xlu0 %v648, 112
        %v1899 = vpop.permute.xlu0 %1898
        %1900 = vrot.lane.b32.xlu0 %v653, 112
        %v1901 = vpop.permute.xlu0 %1900
        %1902 = vrot.lane.b32.xlu0 %v658, 112
        %v1903 = vpop.permute.xlu0 %1902
        %1904 = vrot.lane.b32.xlu0 %v663, 112
        %v1905 = vpop.permute.xlu0 %1904
        %v1906 = vsel %vm807, %v1875, 0
        %v1908 = vsel %vm807, %v1877, 0
        %v1910 = vsel %vm807, %v1879, 0
        %v1912 = vsel %vm807, %v1881, 0
        %v1914 = vsel %vm807, %v1883, 0
        %v1916 = vsel %vm807, %v1885, 0
        %v1918 = vsel %vm807, %v1887, 0
        %v1920 = vsel %vm807, %v1889, 0
        %v1922 = vsel %vm807, %v1891, 0
        %v1924 = vsel %vm807, %v1893, 0
        %v1926 = vsel %vm807, %v1895, 0
        %v1928 = vsel %vm807, %v1897, 0
        %v1930 = vsel %vm807, %v1899, 0
        %v1932 = vsel %vm807, %v1901, 0
        %v1934 = vsel %vm807, %v1903, 0
        %v1936 = vsel %vm807, %v1905, 0
        %1938 = vmatprep.subr.mxu0 0.0
        %1939 = vmatpush1.xpose.msra.mxu0 %v1922
        %1940 = vmatprep.subr.mxu0 0.0
        %1941 = vmatpush1.xpose.msra.mxu0 %v1924
        %1942 = vmatprep.subr.mxu0 0.0
        %1943 = vmatpush1.xpose.msra.mxu0 %v1926
        %1944 = vmatprep.subr.mxu0 0.0
        %1945 = vmatpush1.xpose.msra.mxu0 %v1928
        %1946 = vmatprep.subr.mxu0 0.0
        %1947 = vmatpush1.xpose.msra.mxu0 %v1930
        %1948 = vmatprep.subr.mxu0 0.0
        %1949 = vmatpush1.xpose.msra.mxu0 %v1932
        %1950 = vmatprep.subr.mxu0 0.0
        %1951 = vmatpush1.xpose.msra.mxu0 %v1934
        %1952 = vmatprep.subr.mxu0 0.0
        %1953 = vmatpush1.xpose.msra.mxu0 %v1936
        %1954 = vmatprep.subr.mxu0 0.0
        %1955 = vmatpush1.xpose.msra.mxu0 0.0
        %1956 = vmatprep.subr.mxu0 0.0
        %1957 = vmatpush1.xpose.msra.mxu0 0.0
        %1958 = vmatprep.subr.mxu0 0.0
        %1959 = vmatpush1.xpose.msra.mxu0 0.0
        %1960 = vmatprep.subr.mxu0 0.0
        %1961 = vmatpush1.xpose.msra.mxu0 0.0
        %1962 = vmatprep.subr.mxu0 0.0
        %1963 = vmatpush1.xpose.msra.mxu0 0.0
        %1964 = vmatprep.subr.mxu0 0.0
        %1965 = vmatpush1.xpose.msra.mxu0 0.0
        %1966 = vmatprep.subr.mxu0 0.0
        %1967 = vmatpush1.xpose.msra.mxu0 0.0
        %1968 = vmatprep.subr.mxu0 0.0
        %1969 = vmatpush1.xpose.msra.mxu0 0.0
        %1970 = vmatprep.subr.mxu0 0.0
        %1971 = vmatpush1.xpose.msra.mxu0 0.0
        %1972 = vmatprep.subr.mxu0 0.0
        %1973 = vmatpush1.xpose.msra.mxu0 0.0
        %1974 = vmatprep.subr.mxu0 0.0
        %1975 = vmatpush1.xpose.msra.mxu0 0.0
        %1976 = vmatprep.subr.mxu0 0.0
        %1977 = vmatpush1.xpose.msra.mxu0 0.0
        %1978 = vmatprep.subr.mxu0 0.0
        %1979 = vmatpush1.xpose.msra.mxu0 0.0
        %1980 = vmatprep.subr.mxu0 0.0
        %1981 = vmatpush1.xpose.msra.mxu0 0.0
        %1982 = vmatprep.subr.mxu0 0.0
        %1983 = vmatpush1.xpose.msra.mxu0 0.0
        %1984 = vmatprep.subr.mxu0 0.0
        %1985 = vmatpush1.xpose.msra.mxu0 0.0
        %1986 = vmatprep.subr.mxu0 0.0
        %1987 = vmatpush1.xpose.msra.mxu0 0.0
        %1988 = vmatprep.subr.mxu0 0.0
        %1989 = vmatpush1.xpose.msra.mxu0 0.0
        %1990 = vmatprep.subr.mxu0 0.0
        %1991 = vmatpush1.xpose.msra.mxu0 0.0
        %1992 = vmatprep.subr.mxu0 0.0
        %1993 = vmatpush1.xpose.msra.mxu0 0.0
        %1994 = vmatprep.subr.mxu0 0.0
        %1995 = vmatpush1.xpose.msra.mxu0 0.0
        %1996 = vmatprep.subr.mxu0 0.0
        %1997 = vmatpush1.xpose.msra.mxu0 0.0
        %1998 = vmatprep.subr.mxu0 0.0
        %1999 = vmatpush1.xpose.msra.mxu0 0.0
        %2000 = vmatprep.subr.mxu0 0.0
        %2001 = vmatpush1.xpose.msra.mxu0 0.0
        %2002 = vmatprep.mubr.f32.mxu0 0.0
        %2003 = vmatmul.mubr.f32.gmra.mrb[0].mxu0 %v1906
        %v2004 = vpop.f32.mrb[0].mxu0
        %v2005 = vadd.f32 0.0, %v2004
        %v2006 = vpop.f32.mrb[0].mxu0
        %2007 = vmatprep.mubr.f32.mxu0 0.0
        %2008 = vmatmul.mubr.f32.gmra.mrb[0].mxu0 %v1908
        %v2009 = vpop.f32.mrb[0].mxu0
        %v2010 = vadd.f32 0.0, %v2009
        %v2011 = vpop.f32.mrb[0].mxu0
        %2012 = vmatprep.mubr.f32.mxu0 0.0
        %2013 = vmatmul.mubr.f32.gmra.mrb[0].mxu0 %v1910
        %v2014 = vpop.f32.mrb[0].mxu0
        %v2015 = vadd.f32 0.0, %v2014
        %v2016 = vpop.f32.mrb[0].mxu0
        %2017 = vmatprep.mubr.f32.mxu0 0.0
        %2018 = vmatmul.mubr.f32.gmra.mrb[0].mxu0 %v1912
        %v2019 = vpop.f32.mrb[0].mxu0
        %v2020 = vadd.f32 0.0, %v2019
        %v2021 = vpop.f32.mrb[0].mxu0
        %2022 = vmatprep.mubr.f32.mxu0 0.0
        %2023 = vmatmul.mubr.f32.gmra.mrb[0].mxu0 %v1914
        %v2024 = vpop.f32.mrb[0].mxu0
        %v2025 = vadd.f32 0.0, %v2024
        %v2026 = vpop.f32.mrb[0].mxu0
        %2027 = vmatprep.mubr.f32.mxu0 0.0
        %2028 = vmatmul.mubr.f32.gmra.mrb[0].mxu0 %v1916
        %v2029 = vpop.f32.mrb[0].mxu0
        %v2030 = vadd.f32 0.0, %v2029
        %v2031 = vpop.f32.mrb[0].mxu0
        %2032 = vmatprep.mubr.f32.mxu0 0.0
        %2033 = vmatmul.mubr.f32.gmra.mrb[0].mxu0 %v1918
        %v2034 = vpop.f32.mrb[0].mxu0
        %v2035 = vadd.f32 0.0, %v2034
        %v2036 = vpop.f32.mrb[0].mxu0
        %2037 = vmatprep.mubr.f32.mxu0 0.0
        %2038 = vmatmul.mubr.f32.gmra.mrb[0].mxu0 %v1920
        %v2039 = vpop.f32.mrb[0].mxu0
        %v2040 = vadd.f32 0.0, %v2039
        %v2041 = vpop.f32.mrb[0].mxu0
        %2042 = vdwg.mxu0
        %v2043 = vsel %vm961, %v2005, -inf
        %2044 = vmax.xlane.f32.xlu0 %v2043
        %v2045 = vpop.xlane.xlu0 %2044
        %v2046 = vsel %vm961, %v2010, -inf
        %2047 = vmax.xlane.f32.xlu0 %v2046
        %v2048 = vpop.xlane.xlu0 %2047
        %v2049 = vsel %vm961, %v2015, -inf
        %2050 = vmax.xlane.f32.xlu0 %v2049
        %v2051 = vpop.xlane.xlu0 %2050
        %v2052 = vsel %vm961, %v2020, -inf
        %2053 = vmax.xlane.f32.xlu0 %v2052
        %v2054 = vpop.xlane.xlu0 %2053
        %v2055 = vsel %vm961, %v2025, -inf
        %2056 = vmax.xlane.f32.xlu0 %v2055
        %v2057 = vpop.xlane.xlu0 %2056
        %v2058 = vsel %vm961, %v2030, -inf
        %2059 = vmax.xlane.f32.xlu0 %v2058
        %v2060 = vpop.xlane.xlu0 %2059
        %v2061 = vsel %vm961, %v2035, -inf
        %2062 = vmax.xlane.f32.xlu0 %v2061
        %v2063 = vpop.xlane.xlu0 %2062
        %v2064 = vsel %vm961, %v2040, -inf
        %2065 = vmax.xlane.f32.xlu0 %v2064
        %v2066 = vpop.xlane.xlu0 %2065
        %v2067 = vsub.f32 %v2005, %v2045
        %v2068 = vsub.f32 %v2010, %v2048
        %v2069 = vsub.f32 %v2015, %v2051
        %v2070 = vsub.f32 %v2020, %v2054
        %v2071 = vsub.f32 %v2025, %v2057
        %v2072 = vsub.f32 %v2030, %v2060
        %v2073 = vsub.f32 %v2035, %v2063
        %v2074 = vsub.f32 %v2040, %v2066
        %v2075 = vmul.f32 %v2067, 1.442695
        %v2076 = vpow.pop %v2075
        %v2077 = vmul.f32 %v2068, 1.442695
        %v2078 = vpow.pop %v2077
        %v2079 = vmul.f32 %v2069, 1.442695
        %v2080 = vpow.pop %v2079
        %v2081 = vmul.f32 %v2070, 1.442695
        %v2082 = vpow.pop %v2081
        %v2083 = vmul.f32 %v2071, 1.442695
        %v2084 = vpow.pop %v2083
        %v2085 = vmul.f32 %v2072, 1.442695
        %v2086 = vpow.pop %v2085
        %v2087 = vmul.f32 %v2073, 1.442695
        %v2088 = vpow.pop %v2087
        %v2089 = vmul.f32 %v2074, 1.442695
        %v2090 = vpow.pop %v2089
        %v2091 = vsel %vm961, %v2076, 0.0
        %2092 = vadd.xlane.f32.xlu0 %v2091
        %v2093 = vpop.xlane.xlu0 %2092
        %v2094 = vsel %vm961, %v2078, 0.0
        %2095 = vadd.xlane.f32.xlu0 %v2094
        %v2096 = vpop.xlane.xlu0 %2095
        %v2097 = vsel %vm961, %v2080, 0.0
        %2098 = vadd.xlane.f32.xlu0 %v2097
        %v2099 = vpop.xlane.xlu0 %2098
        %v2100 = vsel %vm961, %v2082, 0.0
        %2101 = vadd.xlane.f32.xlu0 %v2100
        %v2102 = vpop.xlane.xlu0 %2101
        %v2103 = vsel %vm961, %v2084, 0.0
        %2104 = vadd.xlane.f32.xlu0 %v2103
        %v2105 = vpop.xlane.xlu0 %2104
        %v2106 = vsel %vm961, %v2086, 0.0
        %2107 = vadd.xlane.f32.xlu0 %v2106
        %v2108 = vpop.xlane.xlu0 %2107
        %v2109 = vsel %vm961, %v2088, 0.0
        %2110 = vadd.xlane.f32.xlu0 %v2109
        %v2111 = vpop.xlane.xlu0 %2110
        %v2112 = vsel %vm961, %v2090, 0.0
        %2113 = vadd.xlane.f32.xlu0 %v2112
        %v2114 = vpop.xlane.xlu0 %2113
        %v2115 = vrcp.pop %v2093
        %v2116 = vrcp.pop %v2096
        %v2117 = vrcp.pop %v2099
        %v2118 = vrcp.pop %v2102
        %v2119 = vrcp.pop %v2105
        %v2120 = vrcp.pop %v2108
        %v2121 = vrcp.pop %v2111
        %v2122 = vrcp.pop %v2114
        %v2123 = vmul.f32 %v2076, %v2115
        %v2124 = vmul.f32 %v2078, %v2116
        %v2125 = vmul.f32 %v2080, %v2117
        %v2126 = vmul.f32 %v2082, %v2118
        %v2127 = vmul.f32 %v2084, %v2119
        %v2128 = vmul.f32 %v2086, %v2120
        %v2129 = vmul.f32 %v2088, %v2121
        %v2130 = vmul.f32 %v2090, %v2122
        %2131 = vrot.lane.b32.xlu0 %v761, 112
        %v2132 = vpop.permute.xlu0 %2131
        %2133 = vrot.lane.b32.xlu0 %v766, 112
        %v2134 = vpop.permute.xlu0 %2133
        %2135 = vrot.lane.b32.xlu0 %v771, 112
        %v2136 = vpop.permute.xlu0 %2135
        %2137 = vrot.lane.b32.xlu0 %v776, 112
        %v2138 = vpop.permute.xlu0 %2137
        %2139 = vrot.lane.b32.xlu0 %v781, 112
        %v2140 = vpop.permute.xlu0 %2139
        %2141 = vrot.lane.b32.xlu0 %v786, 112
        %v2142 = vpop.permute.xlu0 %2141
        %2143 = vrot.lane.b32.xlu0 %v791, 112
        %v2144 = vpop.permute.xlu0 %2143
        %2145 = vrot.lane.b32.xlu0 %v796, 112
        %v2146 = vpop.permute.xlu0 %2145
        %v2156 = vsel %vm961, %v2123, 0
        %v2159 = vsel %vm961, %v2124, 0
        %v2162 = vsel %vm961, %v2125, 0
        %v2165 = vsel %vm961, %v2126, 0
        %v2168 = vsel %vm961, %v2127, 0
        %v2171 = vsel %vm961, %v2128, 0
        %v2174 = vsel %vm961, %v2129, 0
        %v2177 = vsel %vm961, %v2130, 0
        %2179 = vmatprep.subr.mxu0 0.0
        %2180 = vmatpush1.msra.mxu0 %v2132
        %2181 = vmatprep.subr.mxu0 0.0
        %2182 = vmatpush1.msra.mxu0 %v2134
        %2183 = vmatprep.subr.mxu0 0.0
        %2184 = vmatpush1.msra.mxu0 %v2136
        %2185 = vmatprep.subr.mxu0 0.0
        %2186 = vmatpush1.msra.mxu0 %v2138
        %2187 = vmatprep.subr.mxu0 0.0
        %2188 = vmatpush1.msra.mxu0 %v2140
        %2189 = vmatprep.subr.mxu0 0.0
        %2190 = vmatpush1.msra.mxu0 %v2142
        %2191 = vmatprep.subr.mxu0 0.0
        %2192 = vmatpush1.msra.mxu0 %v2144
        %2193 = vmatprep.subr.mxu0 0.0
        %2194 = vmatpush1.msra.mxu0 %v2146
        %2195 = vmatprep.subr.mxu0 0.0
        %2196 = vmatpush1.msra.mxu0 0.0
        %2197 = vmatprep.subr.mxu0 0.0
        %2198 = vmatpush1.msra.mxu0 0.0
        %2199 = vmatprep.subr.mxu0 0.0
        %2200 = vmatpush1.msra.mxu0 0.0
        %2201 = vmatprep.subr.mxu0 0.0
        %2202 = vmatpush1.msra.mxu0 0.0
        %2203 = vmatprep.subr.mxu0 0.0
        %2204 = vmatpush1.msra.mxu0 0.0
        %2205 = vmatprep.subr.mxu0 0.0
        %2206 = vmatpush1.msra.mxu0 0.0
        %2207 = vmatprep.subr.mxu0 0.0
        %2208 = vmatpush1.msra.mxu0 0.0
        %2209 = vmatprep.subr.mxu0 0.0
        %2210 = vmatpush1.msra.mxu0 0.0
        %2211 = vmatprep.subr.mxu0 0.0
        %2212 = vmatpush1.msra.mxu0 0.0
        %2213 = vmatprep.subr.mxu0 0.0
        %2214 = vmatpush1.msra.mxu0 0.0
        %2215 = vmatprep.subr.mxu0 0.0
        %2216 = vmatpush1.msra.mxu0 0.0
        %2217 = vmatprep.subr.mxu0 0.0
        %2218 = vmatpush1.msra.mxu0 0.0
        %2219 = vmatprep.subr.mxu0 0.0
        %2220 = vmatpush1.msra.mxu0 0.0
        %2221 = vmatprep.subr.mxu0 0.0
        %2222 = vmatpush1.msra.mxu0 0.0
        %2223 = vmatprep.subr.mxu0 0.0
        %2224 = vmatpush1.msra.mxu0 0.0
        %2225 = vmatprep.subr.mxu0 0.0
        %2226 = vmatpush1.msra.mxu0 0.0
        %2227 = vmatprep.subr.mxu0 0.0
        %2228 = vmatpush1.msra.mxu0 0.0
        %2229 = vmatprep.subr.mxu0 0.0
        %2230 = vmatpush1.msra.mxu0 0.0
        %2231 = vmatprep.subr.mxu0 0.0
        %2232 = vmatpush1.msra.mxu0 0.0
        %2233 = vmatprep.subr.mxu0 0.0
        %2234 = vmatpush1.msra.mxu0 0.0
        %2235 = vmatprep.subr.mxu0 0.0
        %2236 = vmatpush1.msra.mxu0 0.0
        %2237 = vmatprep.subr.mxu0 0.0
        %2238 = vmatpush1.msra.mxu0 0.0
        %2239 = vmatprep.subr.mxu0 0.0
        %2240 = vmatpush1.msra.mxu0 0.0
        %2241 = vmatprep.subr.mxu0 0.0
        %2242 = vmatpush1.msra.mxu0 0.0
        %2243 = vmatprep.mubr.f32.mxu0 0.0
        %2244 = vmatmul.mubr.f32.gmra.mrb[0].mxu0 %v2156
        %v2245 = vpop.f32.mrb[0].mxu0
        %v2246 = vadd.f32 0.0, %v2245
        %v2247 = vpop.f32.mrb[0].mxu0
        %2248 = vmatprep.mubr.f32.mxu0 0.0
        %2249 = vmatmul.mubr.f32.gmra.mrb[0].mxu0 %v2159
        %v2250 = vpop.f32.mrb[0].mxu0
        %v2251 = vadd.f32 0.0, %v2250
        %v2252 = vpop.f32.mrb[0].mxu0
        %2253 = vmatprep.mubr.f32.mxu0 0.0
        %2254 = vmatmul.mubr.f32.gmra.mrb[0].mxu0 %v2162
        %v2255 = vpop.f32.mrb[0].mxu0
        %v2256 = vadd.f32 0.0, %v2255
        %v2257 = vpop.f32.mrb[0].mxu0
        %2258 = vmatprep.mubr.f32.mxu0 0.0
        %2259 = vmatmul.mubr.f32.gmra.mrb[0].mxu0 %v2165
        %v2260 = vpop.f32.mrb[0].mxu0
        %v2261 = vadd.f32 0.0, %v2260
        %v2262 = vpop.f32.mrb[0].mxu0
        %2263 = vmatprep.mubr.f32.mxu0 0.0
        %2264 = vmatmul.mubr.f32.gmra.mrb[0].mxu0 %v2168
        %v2265 = vpop.f32.mrb[0].mxu0
        %v2266 = vadd.f32 0.0, %v2265
        %v2267 = vpop.f32.mrb[0].mxu0
        %2268 = vmatprep.mubr.f32.mxu0 0.0
        %2269 = vmatmul.mubr.f32.gmra.mrb[0].mxu0 %v2171
        %v2270 = vpop.f32.mrb[0].mxu0
        %v2271 = vadd.f32 0.0, %v2270
        %v2272 = vpop.f32.mrb[0].mxu0
        %2273 = vmatprep.mubr.f32.mxu0 0.0
        %2274 = vmatmul.mubr.f32.gmra.mrb[0].mxu0 %v2174
        %v2275 = vpop.f32.mrb[0].mxu0
        %v2276 = vadd.f32 0.0, %v2275
        %v2277 = vpop.f32.mrb[0].mxu0
        %2278 = vmatprep.mubr.f32.mxu0 0.0
        %2279 = vmatmul.mubr.f32.gmra.mrb[0].mxu0 %v2177
        %v2280 = vpop.f32.mrb[0].mxu0
        %v2281 = vadd.f32 0.0, %v2280
        %v2282 = vpop.f32.mrb[0].mxu0
        %2283 = vdwg.mxu0
        %v2284 = vld [vmem:[%s6 + $0x10] sm:$0xff]
        %v2286 = vsel %vm807, %v2246, 0
        %v2289 = vsel %vm807, %v2251, 0
        %v2292 = vsel %vm807, %v2256, 0
        %v2295 = vsel %vm807, %v2261, 0
        %v2298 = vsel %vm807, %v2266, 0
        %v2301 = vsel %vm807, %v2271, 0
        %v2304 = vsel %vm807, %v2276, 0
        %v2307 = vsel %vm807, %v2281, 0
        %2309 = vmatprep.subr.mxu0 0.0
        %2310 = vmatpush1.msra.mxu0 %v2284
        %2311 = vmatprep.subr.mxu0 0.0
        %2312 = vmatpush1.msra.mxu0 0.0
        %2313 = vmatprep.subr.mxu0 0.0
        %2314 = vmatpush1.msra.mxu0 0.0
        %2315 = vmatprep.subr.mxu0 0.0
        %2316 = vmatpush1.msra.mxu0 0.0
        %2317 = vmatprep.subr.mxu0 0.0
        %2318 = vmatpush1.msra.mxu0 0.0
        %2319 = vmatprep.subr.mxu0 0.0
        %2320 = vmatpush1.msra.mxu0 0.0
        %2321 = vmatprep.subr.mxu0 0.0
        %2322 = vmatpush1.msra.mxu0 0.0
        %2323 = vmatprep.subr.mxu0 0.0
        %2324 = vmatpush1.msra.mxu0 0.0
        %2325 = vmatprep.subr.mxu0 0.0
        %2326 = vmatpush1.msra.mxu0 0.0
        %2327 = vmatprep.subr.mxu0 0.0
        %2328 = vmatpush1.msra.mxu0 0.0
        %2329 = vmatprep.subr.mxu0 0.0
        %2330 = vmatpush1.msra.mxu0 0.0
        %2331 = vmatprep.subr.mxu0 0.0
        %2332 = vmatpush1.msra.mxu0 0.0
        %2333 = vmatprep.subr.mxu0 0.0
        %2334 = vmatpush1.msra.mxu0 0.0
        %2335 = vmatprep.subr.mxu0 0.0
        %2336 = vmatpush1.msra.mxu0 0.0
        %2337 = vmatprep.subr.mxu0 0.0
        %2338 = vmatpush1.msra.mxu0 0.0
        %2339 = vmatprep.subr.mxu0 0.0
        %2340 = vmatpush1.msra.mxu0 0.0
        %2341 = vmatprep.subr.mxu0 0.0
        %2342 = vmatpush1.msra.mxu0 0.0
        %2343 = vmatprep.subr.mxu0 0.0
        %2344 = vmatpush1.msra.mxu0 0.0
        %2345 = vmatprep.subr.mxu0 0.0
        %2346 = vmatpush1.msra.mxu0 0.0
        %2347 = vmatprep.subr.mxu0 0.0
        %2348 = vmatpush1.msra.mxu0 0.0
        %2349 = vmatprep.subr.mxu0 0.0
        %2350 = vmatpush1.msra.mxu0 0.0
        %2351 = vmatprep.subr.mxu0 0.0
        %2352 = vmatpush1.msra.mxu0 0.0
        %2353 = vmatprep.subr.mxu0 0.0
        %2354 = vmatpush1.msra.mxu0 0.0
        %2355 = vmatprep.subr.mxu0 0.0
        %2356 = vmatpush1.msra.mxu0 0.0
        %2357 = vmatprep.subr.mxu0 0.0
        %2358 = vmatpush1.msra.mxu0 0.0
        %2359 = vmatprep.subr.mxu0 0.0
        %2360 = vmatpush1.msra.mxu0 0.0
        %2361 = vmatprep.subr.mxu0 0.0
        %2362 = vmatpush1.msra.mxu0 0.0
        %2363 = vmatprep.subr.mxu0 0.0
        %2364 = vmatpush1.msra.mxu0 0.0
        %2365 = vmatprep.subr.mxu0 0.0
        %2366 = vmatpush1.msra.mxu0 0.0
        %2367 = vmatprep.subr.mxu0 0.0
        %2368 = vmatpush1.msra.mxu0 0.0
        %2369 = vmatprep.subr.mxu0 0.0
        %2370 = vmatpush1.msra.mxu0 0.0
        %2371 = vmatprep.subr.mxu0 0.0
        %2372 = vmatpush1.msra.mxu0 0.0
        %2373 = vmatprep.mubr.f32.mxu0 0.0
        %2374 = vmatmul.mubr.f32.gmra.mrb[0].mxu0 %v2286
        %v2375 = vpop.f32.mrb[0].mxu0
        %v2376 = vadd.f32 0.0, %v2375
        %v2377 = vpop.f32.mrb[0].mxu0
        %2378 = vmatprep.mubr.f32.mxu0 0.0
        %2379 = vmatmul.mubr.f32.gmra.mrb[0].mxu0 %v2289
        %v2380 = vpop.f32.mrb[0].mxu0
        %v2381 = vadd.f32 0.0, %v2380
        %v2382 = vpop.f32.mrb[0].mxu0
        %2383 = vmatprep.mubr.f32.mxu0 0.0
        %2384 = vmatmul.mubr.f32.gmra.mrb[0].mxu0 %v2292
        %v2385 = vpop.f32.mrb[0].mxu0
        %v2386 = vadd.f32 0.0, %v2385
        %v2387 = vpop.f32.mrb[0].mxu0
        %2388 = vmatprep.mubr.f32.mxu0 0.0
        %2389 = vmatmul.mubr.f32.gmra.mrb[0].mxu0 %v2295
        %v2390 = vpop.f32.mrb[0].mxu0
        %v2391 = vadd.f32 0.0, %v2390
        %v2392 = vpop.f32.mrb[0].mxu0
        %2393 = vmatprep.mubr.f32.mxu0 0.0
        %2394 = vmatmul.mubr.f32.gmra.mrb[0].mxu0 %v2298
        %v2395 = vpop.f32.mrb[0].mxu0
        %v2396 = vadd.f32 0.0, %v2395
        %v2397 = vpop.f32.mrb[0].mxu0
        %2398 = vmatprep.mubr.f32.mxu0 0.0
        %2399 = vmatmul.mubr.f32.gmra.mrb[0].mxu0 %v2301
        %v2400 = vpop.f32.mrb[0].mxu0
        %v2401 = vadd.f32 0.0, %v2400
        %v2402 = vpop.f32.mrb[0].mxu0
        %2403 = vmatprep.mubr.f32.mxu0 0.0
        %2404 = vmatmul.mubr.f32.gmra.mrb[0].mxu0 %v2304
        %v2405 = vpop.f32.mrb[0].mxu0
        %v2406 = vadd.f32 0.0, %v2405
        %v2407 = vpop.f32.mrb[0].mxu0
        %2408 = vmatprep.mubr.f32.mxu0 0.0
        %2409 = vmatmul.mubr.f32.gmra.mrb[0].mxu0 %v2307
        %v2410 = vpop.f32.mrb[0].mxu0
        %v2411 = vadd.f32 0.0, %v2410
        %v2412 = vpop.f32.mrb[0].mxu0
        %2413 = vdwg.mxu0
        %v2414 = vadd.f32 %v1827, %v2376
        %v2415 = vadd.f32 %v1832, %v2381
        %v2416 = vadd.f32 %v1837, %v2386
        %v2417 = vadd.f32 %v1842, %v2391
        %v2418 = vadd.f32 %v1847, %v2396
        %v2419 = vadd.f32 %v1852, %v2401
        %v2420 = vadd.f32 %v1857, %v2406
        %v2421 = vadd.f32 %v1862, %v2411
        %s2422 = scalar_lea.vmem %s364, 128 [#allocation6]
        %2423 = vst.msk [vmem:[%s2422] sm:$0xff] %vm961, %v2123
        %2424 = vst.msk [vmem:[%s2422 + $0x8] sm:$0xff] %vm961, %v2124
        %2425 = vst.msk [vmem:[%s2422 + $0x10] sm:$0xff] %vm961, %v2125
        %2426 = vst.msk [vmem:[%s2422 + $0x18] sm:$0xff] %vm961, %v2126
        %2427 = vst.msk [vmem:[%s2422 + $0x20] sm:$0xff] %vm961, %v2127
        %2428 = vst.msk [vmem:[%s2422 + $0x28] sm:$0xff] %vm961, %v2128
        %2429 = vst.msk [vmem:[%s2422 + $0x30] sm:$0xff] %vm961, %v2129
        %2430 = vst.msk [vmem:[%s2422 + $0x38] sm:$0xff] %vm961, %v2130
        %2431 = vrot.lane.b32.xlu0 %v799, 104
        %v2432 = vpop.permute.xlu0 %2431
        %2433 = vrot.lane.b32.xlu0 %v800, 104
        %v2434 = vpop.permute.xlu0 %2433
        %2435 = vrot.lane.b32.xlu0 %v801, 104
        %v2436 = vpop.permute.xlu0 %2435
        %2437 = vrot.lane.b32.xlu0 %v802, 104
        %v2438 = vpop.permute.xlu0 %2437
        %2439 = vrot.lane.b32.xlu0 %v803, 104
        %v2440 = vpop.permute.xlu0 %2439
        %2441 = vrot.lane.b32.xlu0 %v804, 104
        %v2442 = vpop.permute.xlu0 %2441
        %2443 = vrot.lane.b32.xlu0 %v805, 104
        %v2444 = vpop.permute.xlu0 %2443
        %2445 = vrot.lane.b32.xlu0 %v806, 104
        %v2446 = vpop.permute.xlu0 %2445
        %2447 = vrot.lane.b32.xlu0 %v628, 104
        %v2448 = vpop.permute.xlu0 %2447
        %2449 = vrot.lane.b32.xlu0 %v633, 104
        %v2450 = vpop.permute.xlu0 %2449
        %2451 = vrot.lane.b32.xlu0 %v638, 104
        %v2452 = vpop.permute.xlu0 %2451
        %2453 = vrot.lane.b32.xlu0 %v643, 104
        %v2454 = vpop.permute.xlu0 %2453
        %2455 = vrot.lane.b32.xlu0 %v648, 104
        %v2456 = vpop.permute.xlu0 %2455
        %2457 = vrot.lane.b32.xlu0 %v653, 104
        %v2458 = vpop.permute.xlu0 %2457
        %2459 = vrot.lane.b32.xlu0 %v658, 104
        %v2460 = vpop.permute.xlu0 %2459
        %2461 = vrot.lane.b32.xlu0 %v663, 104
        %v2462 = vpop.permute.xlu0 %2461
        %v2463 = vsel %vm807, %v2432, 0
        %v2465 = vsel %vm807, %v2434, 0
        %v2467 = vsel %vm807, %v2436, 0
        %v2469 = vsel %vm807, %v2438, 0
        %v2471 = vsel %vm807, %v2440, 0
        %v2473 = vsel %vm807, %v2442, 0
        %v2475 = vsel %vm807, %v2444, 0
        %v2477 = vsel %vm807, %v2446, 0
        %v2479 = vsel %vm807, %v2448, 0
        %v2481 = vsel %vm807, %v2450, 0
        %v2483 = vsel %vm807, %v2452, 0
        %v2485 = vsel %vm807, %v2454, 0
        %v2487 = vsel %vm807, %v2456, 0
        %v2489 = vsel %vm807, %v2458, 0
        %v2491 = vsel %vm807, %v2460, 0
        %v2493 = vsel %vm807, %v2462, 0
        %2495 = vmatprep.subr.mxu0 0.0
        %2496 = vmatpush1.xpose.msra.mxu0 %v2479
        %2497 = vmatprep.subr.mxu0 0.0
        %2498 = vmatpush1.xpose.msra.mxu0 %v2481
        %2499 = vmatprep.subr.mxu0 0.0
        %2500 = vmatpush1.xpose.msra.mxu0 %v2483
        %2501 = vmatprep.subr.mxu0 0.0
        %2502 = vmatpush1.xpose.msra.mxu0 %v2485
        %2503 = vmatprep.subr.mxu0 0.0
        %2504 = vmatpush1.xpose.msra.mxu0 %v2487
        %2505 = vmatprep.subr.mxu0 0.0
        %2506 = vmatpush1.xpose.msra.mxu0 %v2489
        %2507 = vmatprep.subr.mxu0 0.0
        %2508 = vmatpush1.xpose.msra.mxu0 %v2491
        %2509 = vmatprep.subr.mxu0 0.0
        %2510 = vmatpush1.xpose.msra.mxu0 %v2493
        %2511 = vmatprep.subr.mxu0 0.0
        %2512 = vmatpush1.xpose.msra.mxu0 0.0
        %2513 = vmatprep.subr.mxu0 0.0
        %2514 = vmatpush1.xpose.msra.mxu0 0.0
        %2515 = vmatprep.subr.mxu0 0.0
        %2516 = vmatpush1.xpose.msra.mxu0 0.0
        %2517 = vmatprep.subr.mxu0 0.0
        %2518 = vmatpush1.xpose.msra.mxu0 0.0
        %2519 = vmatprep.subr.mxu0 0.0
        %2520 = vmatpush1.xpose.msra.mxu0 0.0
        %2521 = vmatprep.subr.mxu0 0.0
        %2522 = vmatpush1.xpose.msra.mxu0 0.0
        %2523 = vmatprep.subr.mxu0 0.0
        %2524 = vmatpush1.xpose.msra.mxu0 0.0
        %2525 = vmatprep.subr.mxu0 0.0
        %2526 = vmatpush1.xpose.msra.mxu0 0.0
        %2527 = vmatprep.subr.mxu0 0.0
        %2528 = vmatpush1.xpose.msra.mxu0 0.0
        %2529 = vmatprep.subr.mxu0 0.0
        %2530 = vmatpush1.xpose.msra.mxu0 0.0
        %2531 = vmatprep.subr.mxu0 0.0
        %2532 = vmatpush1.xpose.msra.mxu0 0.0
        %2533 = vmatprep.subr.mxu0 0.0
        %2534 = vmatpush1.xpose.msra.mxu0 0.0
        %2535 = vmatprep.subr.mxu0 0.0
        %2536 = vmatpush1.xpose.msra.mxu0 0.0
        %2537 = vmatprep.subr.mxu0 0.0
        %2538 = vmatpush1.xpose.msra.mxu0 0.0
        %2539 = vmatprep.subr.mxu0 0.0
        %2540 = vmatpush1.xpose.msra.mxu0 0.0
        %2541 = vmatprep.subr.mxu0 0.0
        %2542 = vmatpush1.xpose.msra.mxu0 0.0
        %2543 = vmatprep.subr.mxu0 0.0
        %2544 = vmatpush1.xpose.msra.mxu0 0.0
        %2545 = vmatprep.subr.mxu0 0.0
        %2546 = vmatpush1.xpose.msra.mxu0 0.0
        %2547 = vmatprep.subr.mxu0 0.0
        %2548 = vmatpush1.xpose.msra.mxu0 0.0
        %2549 = vmatprep.subr.mxu0 0.0
        %2550 = vmatpush1.xpose.msra.mxu0 0.0
        %2551 = vmatprep.subr.mxu0 0.0
        %2552 = vmatpush1.xpose.msra.mxu0 0.0
        %2553 = vmatprep.subr.mxu0 0.0
        %2554 = vmatpush1.xpose.msra.mxu0 0.0
        %2555 = vmatprep.subr.mxu0 0.0
        %2556 = vmatpush1.xpose.msra.mxu0 0.0
        %2557 = vmatprep.subr.mxu0 0.0
        %2558 = vmatpush1.xpose.msra.mxu0 0.0
        %2559 = vmatprep.mubr.f32.mxu0 0.0
        %2560 = vmatmul.mubr.f32.gmra.mrb[0].mxu0 %v2463
        %v2561 = vpop.f32.mrb[0].mxu0
        %v2562 = vadd.f32 0.0, %v2561
        %v2563 = vpop.f32.mrb[0].mxu0
        %2564 = vmatprep.mubr.f32.mxu0 0.0
        %2565 = vmatmul.mubr.f32.gmra.mrb[0].mxu0 %v2465
        %v2566 = vpop.f32.mrb[0].mxu0
        %v2567 = vadd.f32 0.0, %v2566
        %v2568 = vpop.f32.mrb[0].mxu0
        %2569 = vmatprep.mubr.f32.mxu0 0.0
        %2570 = vmatmul.mubr.f32.gmra.mrb[0].mxu0 %v2467
        %v2571 = vpop.f32.mrb[0].mxu0
        %v2572 = vadd.f32 0.0, %v2571
        %v2573 = vpop.f32.mrb[0].mxu0
        %2574 = vmatprep.mubr.f32.mxu0 0.0
        %2575 = vmatmul.mubr.f32.gmra.mrb[0].mxu0 %v2469
        %v2576 = vpop.f32.mrb[0].mxu0
        %v2577 = vadd.f32 0.0, %v2576
        %v2578 = vpop.f32.mrb[0].mxu0
        %2579 = vmatprep.mubr.f32.mxu0 0.0
        %2580 = vmatmul.mubr.f32.gmra.mrb[0].mxu0 %v2471
        %v2581 = vpop.f32.mrb[0].mxu0
        %v2582 = vadd.f32 0.0, %v2581
        %v2583 = vpop.f32.mrb[0].mxu0
        %2584 = vmatprep.mubr.f32.mxu0 0.0
        %2585 = vmatmul.mubr.f32.gmra.mrb[0].mxu0 %v2473
        %v2586 = vpop.f32.mrb[0].mxu0
        %v2587 = vadd.f32 0.0, %v2586
        %v2588 = vpop.f32.mrb[0].mxu0
        %2589 = vmatprep.mubr.f32.mxu0 0.0
        %2590 = vmatmul.mubr.f32.gmra.mrb[0].mxu0 %v2475
        %v2591 = vpop.f32.mrb[0].mxu0
        %v2592 = vadd.f32 0.0, %v2591
        %v2593 = vpop.f32.mrb[0].mxu0
        %2594 = vmatprep.mubr.f32.mxu0 0.0
        %2595 = vmatmul.mubr.f32.gmra.mrb[0].mxu0 %v2477
        %v2596 = vpop.f32.mrb[0].mxu0
        %v2597 = vadd.f32 0.0, %v2596
        %v2598 = vpop.f32.mrb[0].mxu0
        %2599 = vdwg.mxu0
        %v2600 = vsel %vm961, %v2562, -inf
        %2601 = vmax.xlane.f32.xlu0 %v2600
        %v2602 = vpop.xlane.xlu0 %2601
        %v2603 = vsel %vm961, %v2567, -inf
        %2604 = vmax.xlane.f32.xlu0 %v2603
        %v2605 = vpop.xlane.xlu0 %2604
        %v2606 = vsel %vm961, %v2572, -inf
        %2607 = vmax.xlane.f32.xlu0 %v2606
        %v2608 = vpop.xlane.xlu0 %2607
        %v2609 = vsel %vm961, %v2577, -inf
        %2610 = vmax.xlane.f32.xlu0 %v2609
        %v2611 = vpop.xlane.xlu0 %2610
        %v2612 = vsel %vm961, %v2582, -inf
        %2613 = vmax.xlane.f32.xlu0 %v2612
        %v2614 = vpop.xlane.xlu0 %2613
        %v2615 = vsel %vm961, %v2587, -inf
        %2616 = vmax.xlane.f32.xlu0 %v2615
        %v2617 = vpop.xlane.xlu0 %2616
        %v2618 = vsel %vm961, %v2592, -inf
        %2619 = vmax.xlane.f32.xlu0 %v2618
        %v2620 = vpop.xlane.xlu0 %2619
        %v2621 = vsel %vm961, %v2597, -inf
        %2622 = vmax.xlane.f32.xlu0 %v2621
        %v2623 = vpop.xlane.xlu0 %2622
        %v2624 = vsub.f32 %v2562, %v2602
        %v2625 = vsub.f32 %v2567, %v2605
        %v2626 = vsub.f32 %v2572, %v2608
        %v2627 = vsub.f32 %v2577, %v2611
        %v2628 = vsub.f32 %v2582, %v2614
        %v2629 = vsub.f32 %v2587, %v2617
        %v2630 = vsub.f32 %v2592, %v2620
        %v2631 = vsub.f32 %v2597, %v2623
        %v2632 = vmul.f32 %v2624, 1.442695
        %v2633 = vpow.pop %v2632
        %v2634 = vmul.f32 %v2625, 1.442695
        %v2635 = vpow.pop %v2634
        %v2636 = vmul.f32 %v2626, 1.442695
        %v2637 = vpow.pop %v2636
        %v2638 = vmul.f32 %v2627, 1.442695
        %v2639 = vpow.pop %v2638
        %v2640 = vmul.f32 %v2628, 1.442695
        %v2641 = vpow.pop %v2640
        %v2642 = vmul.f32 %v2629, 1.442695
        %v2643 = vpow.pop %v2642
        %v2644 = vmul.f32 %v2630, 1.442695
        %v2645 = vpow.pop %v2644
        %v2646 = vmul.f32 %v2631, 1.442695
        %v2647 = vpow.pop %v2646
        %v2648 = vsel %vm961, %v2633, 0.0
        %2649 = vadd.xlane.f32.xlu0 %v2648
        %v2650 = vpop.xlane.xlu0 %2649
        %v2651 = vsel %vm961, %v2635, 0.0
        %2652 = vadd.xlane.f32.xlu0 %v2651
        %v2653 = vpop.xlane.xlu0 %2652
        %v2654 = vsel %vm961, %v2637, 0.0
        %2655 = vadd.xlane.f32.xlu0 %v2654
        %v2656 = vpop.xlane.xlu0 %2655
        %v2657 = vsel %vm961, %v2639, 0.0
        %2658 = vadd.xlane.f32.xlu0 %v2657
        %v2659 = vpop.xlane.xlu0 %2658
        %v2660 = vsel %vm961, %v2641, 0.0
        %2661 = vadd.xlane.f32.xlu0 %v2660
        %v2662 = vpop.xlane.xlu0 %2661
        %v2663 = vsel %vm961, %v2643, 0.0
        %2664 = vadd.xlane.f32.xlu0 %v2663
        %v2665 = vpop.xlane.xlu0 %2664
        %v2666 = vsel %vm961, %v2645, 0.0
        %2667 = vadd.xlane.f32.xlu0 %v2666
        %v2668 = vpop.xlane.xlu0 %2667
        %v2669 = vsel %vm961, %v2647, 0.0
        %2670 = vadd.xlane.f32.xlu0 %v2669
        %v2671 = vpop.xlane.xlu0 %2670
        %v2672 = vrcp.pop %v2650
        %v2673 = vrcp.pop %v2653
        %v2674 = vrcp.pop %v2656
        %v2675 = vrcp.pop %v2659
        %v2676 = vrcp.pop %v2662
        %v2677 = vrcp.pop %v2665
        %v2678 = vrcp.pop %v2668
        %v2679 = vrcp.pop %v2671
        %v2680 = vmul.f32 %v2633, %v2672
        %v2681 = vmul.f32 %v2635, %v2673
        %v2682 = vmul.f32 %v2637, %v2674
        %v2683 = vmul.f32 %v2639, %v2675
        %v2684 = vmul.f32 %v2641, %v2676
        %v2685 = vmul.f32 %v2643, %v2677
        %v2686 = vmul.f32 %v2645, %v2678
        %v2687 = vmul.f32 %v2647, %v2679
        %2688 = vrot.lane.b32.xlu0 %v761, 104
        %v2689 = vpop.permute.xlu0 %2688
        %2690 = vrot.lane.b32.xlu0 %v766, 104
        %v2691 = vpop.permute.xlu0 %2690
        %2692 = vrot.lane.b32.xlu0 %v771, 104
        %v2693 = vpop.permute.xlu0 %2692
        %2694 = vrot.lane.b32.xlu0 %v776, 104
        %v2695 = vpop.permute.xlu0 %2694
        %2696 = vrot.lane.b32.xlu0 %v781, 104
        %v2697 = vpop.permute.xlu0 %2696
        %2698 = vrot.lane.b32.xlu0 %v786, 104
        %v2699 = vpop.permute.xlu0 %2698
        %2700 = vrot.lane.b32.xlu0 %v791, 104
        %v2701 = vpop.permute.xlu0 %2700
        %2702 = vrot.lane.b32.xlu0 %v796, 104
        %v2703 = vpop.permute.xlu0 %2702
        %v2713 = vsel %vm961, %v2680, 0
        %v2716 = vsel %vm961, %v2681, 0
        %v2719 = vsel %vm961, %v2682, 0
        %v2722 = vsel %vm961, %v2683, 0
        %v2725 = vsel %vm961, %v2684, 0
        %v2728 = vsel %vm961, %v2685, 0
        %v2731 = vsel %vm961, %v2686, 0
        %v2734 = vsel %vm961, %v2687, 0
        %2736 = vmatprep.subr.mxu0 0.0
        %2737 = vmatpush1.msra.mxu0 %v2689
        %2738 = vmatprep.subr.mxu0 0.0
        %2739 = vmatpush1.msra.mxu0 %v2691
        %2740 = vmatprep.subr.mxu0 0.0
        %2741 = vmatpush1.msra.mxu0 %v2693
        %2742 = vmatprep.subr.mxu0 0.0
        %2743 = vmatpush1.msra.mxu0 %v2695
        %2744 = vmatprep.subr.mxu0 0.0
        %2745 = vmatpush1.msra.mxu0 %v2697
        %2746 = vmatprep.subr.mxu0 0.0
        %2747 = vmatpush1.msra.mxu0 %v2699
        %2748 = vmatprep.subr.mxu0 0.0
        %2749 = vmatpush1.msra.mxu0 %v2701
        %2750 = vmatprep.subr.mxu0 0.0
        %2751 = vmatpush1.msra.mxu0 %v2703
        %2752 = vmatprep.subr.mxu0 0.0
        %2753 = vmatpush1.msra.mxu0 0.0
        %2754 = vmatprep.subr.mxu0 0.0
        %2755 = vmatpush1.msra.mxu0 0.0
        %2756 = vmatprep.subr.mxu0 0.0
        %2757 = vmatpush1.msra.mxu0 0.0
        %2758 = vmatprep.subr.mxu0 0.0
        %2759 = vmatpush1.msra.mxu0 0.0
        %2760 = vmatprep.subr.mxu0 0.0
        %2761 = vmatpush1.msra.mxu0 0.0
        %2762 = vmatprep.subr.mxu0 0.0
        %2763 = vmatpush1.msra.mxu0 0.0
        %2764 = vmatprep.subr.mxu0 0.0
        %2765 = vmatpush1.msra.mxu0 0.0
        %2766 = vmatprep.subr.mxu0 0.0
        %2767 = vmatpush1.msra.mxu0 0.0
        %2768 = vmatprep.subr.mxu0 0.0
        %2769 = vmatpush1.msra.mxu0 0.0
        %2770 = vmatprep.subr.mxu0 0.0
        %2771 = vmatpush1.msra.mxu0 0.0
        %2772 = vmatprep.subr.mxu0 0.0
        %2773 = vmatpush1.msra.mxu0 0.0
        %2774 = vmatprep.subr.mxu0 0.0
        %2775 = vmatpush1.msra.mxu0 0.0
        %2776 = vmatprep.subr.mxu0 0.0
        %2777 = vmatpush1.msra.mxu0 0.0
        %2778 = vmatprep.subr.mxu0 0.0
        %2779 = vmatpush1.msra.mxu0 0.0
        %2780 = vmatprep.subr.mxu0 0.0
        %2781 = vmatpush1.msra.mxu0 0.0
        %2782 = vmatprep.subr.mxu0 0.0
        %2783 = vmatpush1.msra.mxu0 0.0
        %2784 = vmatprep.subr.mxu0 0.0
        %2785 = vmatpush1.msra.mxu0 0.0
        %2786 = vmatprep.subr.mxu0 0.0
        %2787 = vmatpush1.msra.mxu0 0.0
        %2788 = vmatprep.subr.mxu0 0.0
        %2789 = vmatpush1.msra.mxu0 0.0
        %2790 = vmatprep.subr.mxu0 0.0
        %2791 = vmatpush1.msra.mxu0 0.0
        %2792 = vmatprep.subr.mxu0 0.0
        %2793 = vmatpush1.msra.mxu0 0.0
        %2794 = vmatprep.subr.mxu0 0.0
        %2795 = vmatpush1.msra.mxu0 0.0
        %2796 = vmatprep.subr.mxu0 0.0
        %2797 = vmatpush1.msra.mxu0 0.0
        %2798 = vmatprep.subr.mxu0 0.0
        %2799 = vmatpush1.msra.mxu0 0.0
        %2800 = vmatprep.mubr.f32.mxu0 0.0
        %2801 = vmatmul.mubr.f32.gmra.mrb[0].mxu0 %v2713
        %v2802 = vpop.f32.mrb[0].mxu0
        %v2803 = vadd.f32 0.0, %v2802
        %v2804 = vpop.f32.mrb[0].mxu0
        %2805 = vmatprep.mubr.f32.mxu0 0.0
        %2806 = vmatmul.mubr.f32.gmra.mrb[0].mxu0 %v2716
        %v2807 = vpop.f32.mrb[0].mxu0
        %v2808 = vadd.f32 0.0, %v2807
        %v2809 = vpop.f32.mrb[0].mxu0
        %2810 = vmatprep.mubr.f32.mxu0 0.0
        %2811 = vmatmul.mubr.f32.gmra.mrb[0].mxu0 %v2719
        %v2812 = vpop.f32.mrb[0].mxu0
        %v2813 = vadd.f32 0.0, %v2812
        %v2814 = vpop.f32.mrb[0].mxu0
        %2815 = vmatprep.mubr.f32.mxu0 0.0
        %2816 = vmatmul.mubr.f32.gmra.mrb[0].mxu0 %v2722
        %v2817 = vpop.f32.mrb[0].mxu0
        %v2818 = vadd.f32 0.0, %v2817
        %v2819 = vpop.f32.mrb[0].mxu0
        %2820 = vmatprep.mubr.f32.mxu0 0.0
        %2821 = vmatmul.mubr.f32.gmra.mrb[0].mxu0 %v2725
        %v2822 = vpop.f32.mrb[0].mxu0
        %v2823 = vadd.f32 0.0, %v2822
        %v2824 = vpop.f32.mrb[0].mxu0
        %2825 = vmatprep.mubr.f32.mxu0 0.0
        %2826 = vmatmul.mubr.f32.gmra.mrb[0].mxu0 %v2728
        %v2827 = vpop.f32.mrb[0].mxu0
        %v2828 = vadd.f32 0.0, %v2827
        %v2829 = vpop.f32.mrb[0].mxu0
        %2830 = vmatprep.mubr.f32.mxu0 0.0
        %2831 = vmatmul.mubr.f32.gmra.mrb[0].mxu0 %v2731
        %v2832 = vpop.f32.mrb[0].mxu0
        %v2833 = vadd.f32 0.0, %v2832
        %v2834 = vpop.f32.mrb[0].mxu0
        %2835 = vmatprep.mubr.f32.mxu0 0.0
        %2836 = vmatmul.mubr.f32.gmra.mrb[0].mxu0 %v2734
        %v2837 = vpop.f32.mrb[0].mxu0
        %v2838 = vadd.f32 0.0, %v2837
        %v2839 = vpop.f32.mrb[0].mxu0
        %2840 = vdwg.mxu0
        %v2841 = vld [vmem:[%s6 + $0x18] sm:$0xff]
        %v2843 = vsel %vm807, %v2803, 0
        %v2846 = vsel %vm807, %v2808, 0
        %v2849 = vsel %vm807, %v2813, 0
        %v2852 = vsel %vm807, %v2818, 0
        %v2855 = vsel %vm807, %v2823, 0
        %v2858 = vsel %vm807, %v2828, 0
        %v2861 = vsel %vm807, %v2833, 0
        %v2864 = vsel %vm807, %v2838, 0
        %2866 = vmatprep.subr.mxu0 0.0
        %2867 = vmatpush1.msra.mxu0 %v2841
        %2868 = vmatprep.subr.mxu0 0.0
        %2869 = vmatpush1.msra.mxu0 0.0
        %2870 = vmatprep.subr.mxu0 0.0
        %2871 = vmatpush1.msra.mxu0 0.0
        %2872 = vmatprep.subr.mxu0 0.0
        %2873 = vmatpush1.msra.mxu0 0.0
        %2874 = vmatprep.subr.mxu0 0.0
        %2875 = vmatpush1.msra.mxu0 0.0
        %2876 = vmatprep.subr.mxu0 0.0
        %2877 = vmatpush1.msra.mxu0 0.0
        %2878 = vmatprep.subr.mxu0 0.0
        %2879 = vmatpush1.msra.mxu0 0.0
        %2880 = vmatprep.subr.mxu0 0.0
        %2881 = vmatpush1.msra.mxu0 0.0
        %2882 = vmatprep.subr.mxu0 0.0
        %2883 = vmatpush1.msra.mxu0 0.0
        %2884 = vmatprep.subr.mxu0 0.0
        %2885 = vmatpush1.msra.mxu0 0.0
        %2886 = vmatprep.subr.mxu0 0.0
        %2887 = vmatpush1.msra.mxu0 0.0
        %2888 = vmatprep.subr.mxu0 0.0
        %2889 = vmatpush1.msra.mxu0 0.0
        %2890 = vmatprep.subr.mxu0 0.0
        %2891 = vmatpush1.msra.mxu0 0.0
        %2892 = vmatprep.subr.mxu0 0.0
        %2893 = vmatpush1.msra.mxu0 0.0
        %2894 = vmatprep.subr.mxu0 0.0
        %2895 = vmatpush1.msra.mxu0 0.0
        %2896 = vmatprep.subr.mxu0 0.0
        %2897 = vmatpush1.msra.mxu0 0.0
        %2898 = vmatprep.subr.mxu0 0.0
        %2899 = vmatpush1.msra.mxu0 0.0
        %2900 = vmatprep.subr.mxu0 0.0
        %2901 = vmatpush1.msra.mxu0 0.0
        %2902 = vmatprep.subr.mxu0 0.0
        %2903 = vmatpush1.msra.mxu0 0.0
        %2904 = vmatprep.subr.mxu0 0.0
        %2905 = vmatpush1.msra.mxu0 0.0
        %2906 = vmatprep.subr.mxu0 0.0
        %2907 = vmatpush1.msra.mxu0 0.0
        %2908 = vmatprep.subr.mxu0 0.0
        %2909 = vmatpush1.msra.mxu0 0.0
        %2910 = vmatprep.subr.mxu0 0.0
        %2911 = vmatpush1.msra.mxu0 0.0
        %2912 = vmatprep.subr.mxu0 0.0
        %2913 = vmatpush1.msra.mxu0 0.0
        %2914 = vmatprep.subr.mxu0 0.0
        %2915 = vmatpush1.msra.mxu0 0.0
        %2916 = vmatprep.subr.mxu0 0.0
        %2917 = vmatpush1.msra.mxu0 0.0
        %2918 = vmatprep.subr.mxu0 0.0
        %2919 = vmatpush1.msra.mxu0 0.0
        %2920 = vmatprep.subr.mxu0 0.0
        %2921 = vmatpush1.msra.mxu0 0.0
        %2922 = vmatprep.subr.mxu0 0.0
        %2923 = vmatpush1.msra.mxu0 0.0
        %2924 = vmatprep.subr.mxu0 0.0
        %2925 = vmatpush1.msra.mxu0 0.0
        %2926 = vmatprep.subr.mxu0 0.0
        %2927 = vmatpush1.msra.mxu0 0.0
        %2928 = vmatprep.subr.mxu0 0.0
        %2929 = vmatpush1.msra.mxu0 0.0
        %2930 = vmatprep.mubr.f32.mxu0 0.0
        %2931 = vmatmul.mubr.f32.gmra.mrb[0].mxu0 %v2843
        %v2932 = vpop.f32.mrb[0].mxu0
        %v2933 = vadd.f32 0.0, %v2932
        %v2934 = vpop.f32.mrb[0].mxu0
        %2935 = vmatprep.mubr.f32.mxu0 0.0
        %2936 = vmatmul.mubr.f32.gmra.mrb[0].mxu0 %v2846
        %v2937 = vpop.f32.mrb[0].mxu0
        %v2938 = vadd.f32 0.0, %v2937
        %v2939 = vpop.f32.mrb[0].mxu0
        %2940 = vmatprep.mubr.f32.mxu0 0.0
        %2941 = vmatmul.mubr.f32.gmra.mrb[0].mxu0 %v2849
        %v2942 = vpop.f32.mrb[0].mxu0
        %v2943 = vadd.f32 0.0, %v2942
        %v2944 = vpop.f32.mrb[0].mxu0
        %2945 = vmatprep.mubr.f32.mxu0 0.0
        %2946 = vmatmul.mubr.f32.gmra.mrb[0].mxu0 %v2852
        %v2947 = vpop.f32.mrb[0].mxu0
        %v2948 = vadd.f32 0.0, %v2947
        %v2949 = vpop.f32.mrb[0].mxu0
        %2950 = vmatprep.mubr.f32.mxu0 0.0
        %2951 = vmatmul.mubr.f32.gmra.mrb[0].mxu0 %v2855
        %v2952 = vpop.f32.mrb[0].mxu0
        %v2953 = vadd.f32 0.0, %v2952
        %v2954 = vpop.f32.mrb[0].mxu0
        %2955 = vmatprep.mubr.f32.mxu0 0.0
        %2956 = vmatmul.mubr.f32.gmra.mrb[0].mxu0 %v2858
        %v2957 = vpop.f32.mrb[0].mxu0
        %v2958 = vadd.f32 0.0, %v2957
        %v2959 = vpop.f32.mrb[0].mxu0
        %2960 = vmatprep.mubr.f32.mxu0 0.0
        %2961 = vmatmul.mubr.f32.gmra.mrb[0].mxu0 %v2861
        %v2962 = vpop.f32.mrb[0].mxu0
        %v2963 = vadd.f32 0.0, %v2962
        %v2964 = vpop.f32.mrb[0].mxu0
        %2965 = vmatprep.mubr.f32.mxu0 0.0
        %2966 = vmatmul.mubr.f32.gmra.mrb[0].mxu0 %v2864
        %v2967 = vpop.f32.mrb[0].mxu0
        %v2968 = vadd.f32 0.0, %v2967
        %v2969 = vpop.f32.mrb[0].mxu0
        %2970 = vdwg.mxu0
        %v2971 = vadd.f32 %v2414, %v2933
        %v2972 = vadd.f32 %v2415, %v2938
        %v2973 = vadd.f32 %v2416, %v2943
        %v2974 = vadd.f32 %v2417, %v2948
        %v2975 = vadd.f32 %v2418, %v2953
        %v2976 = vadd.f32 %v2419, %v2958
        %v2977 = vadd.f32 %v2420, %v2963
        %v2978 = vadd.f32 %v2421, %v2968
        %s2979 = scalar_lea.vmem %s364, 192 [#allocation6]
        %2980 = vst.msk [vmem:[%s2979] sm:$0xff] %vm961, %v2680
        %2981 = vst.msk [vmem:[%s2979 + $0x8] sm:$0xff] %vm961, %v2681
        %2982 = vst.msk [vmem:[%s2979 + $0x10] sm:$0xff] %vm961, %v2682
        %2983 = vst.msk [vmem:[%s2979 + $0x18] sm:$0xff] %vm961, %v2683
        %2984 = vst.msk [vmem:[%s2979 + $0x20] sm:$0xff] %vm961, %v2684
        %2985 = vst.msk [vmem:[%s2979 + $0x28] sm:$0xff] %vm961, %v2685
        %2986 = vst.msk [vmem:[%s2979 + $0x30] sm:$0xff] %vm961, %v2686
        %2987 = vst.msk [vmem:[%s2979 + $0x38] sm:$0xff] %vm961, %v2687
        %2988 = vst.msk [vmem:[%s357] sm:$0xff] %vm403, %v2971
        %2989 = vst.msk [vmem:[%s357 + $0x8] sm:$0xff] %vm403, %v2972
        %2990 = vst.msk [vmem:[%s357 + $0x10] sm:$0xff] %vm403, %v2973
        %2991 = vst.msk [vmem:[%s357 + $0x18] sm:$0xff] %vm403, %v2974
        %2992 = vst.msk [vmem:[%s357 + $0x20] sm:$0xff] %vm403, %v2975
        %2993 = vst.msk [vmem:[%s357 + $0x28] sm:$0xff] %vm403, %v2976
        %2994 = vst.msk [vmem:[%s357 + $0x30] sm:$0xff] %vm403, %v2977
        %2995 = vst.msk [vmem:[%s357 + $0x38] sm:$0xff] %vm403, %v2978
        %s2996 = sand.u32 %s199, 1
        %s2997 = scalar_lea.sflag [#allocation4], %s2996
        %s2998 = sand.u32 %s199, 1
        %s2999 = smul.addr %s2998, 64
        %s3000 = scalar_lea.vmem [#allocation5], %s2999
        %s3001 = sand.u32 %s225, 1
        %s3002 = scalar_lea.sflag [#allocation7], %s3001
        %s3003 = sand.u32 %s225, 1
        %s3004 = smul.addr %s3003, 256
        %s3005 = scalar_lea.vmem [#allocation6], %s3004
        // Predicated region
        $region53: #{our_multihead_attention.1} parent=47 // pred_check
          %p3006 = pneg %p209
        $region54: #{our_multihead_attention.1} parent=47 // pred_check_branch
          %3008 = sbr.rel (%p3006) target = $region56
        $region55: #{our_multihead_attention.1} parent=47 // pred_region
          %s3010 = ssub.s32 1024, 1024
          %3011 = vsyncadd %s2997, %s3010
          %s3012 = smul.addr %s29, 8
          %s3013 = smul.addr %s3012, 128
          %s3014 = scalar_lea.hbm %s7, %s3013
          %s3015 = sshll.u32 %s3000, 4
          %s3016 = int_to_ptr.vmem [resolvable:$true] %s3015
          %3021 = dma.vmem_to_hbm [thread:$0]  %s3016, 1024, %s3014, %s2997, 128, 128, 8
        $region56: #{our_multihead_attention.1} parent=47 // pred_fallthru
          _
        // Predicated region
        $region57: #{our_multihead_attention.1} parent=47 // pred_check
          %p3022 = pneg %p235
        $region58: #{our_multihead_attention.1} parent=47 // pred_check_branch
          %3024 = sbr.rel (%p3022) target = $region60
        $region59: #{our_multihead_attention.1} parent=47 // pred_region
          %s3026 = ssub.s32 4096, 4096
          %3027 = vsyncadd %s3002, %s3026
          %s3028 = smul.addr %s29, 32
          %s3029 = smul.addr %s3028, 128
          %s3030 = scalar_lea.hbm %s8, %s3029
          %s3031 = sshll.u32 %s3005, 4
          %s3032 = int_to_ptr.vmem [resolvable:$true] %s3031
          %3037 = dma.vmem_to_hbm [thread:$0]  %s3032, 4096, %s3030, %s3002, 128, 128, 8
        $region60: #{our_multihead_attention.1} parent=47 // pred_fallthru
          _
      $region48: #{our_multihead_attention.1} parent=5 // pred_fallthru
        _
      %p3038 = scmp.le.s32.totalorder 2, %s24
      // Predicated region
      $region61: #{our_multihead_attention.1} parent=5 // pred_check
        %p3039 = pneg %p3038
      $region62: #{our_multihead_attention.1} parent=5 // pred_check_branch
        %3041 = sbr.rel (%p3039) target = $region64
      $region63: #{our_multihead_attention.1} parent=5 // pred_region
        %s3042 = ssub.s32 %s24, 2
        // Predicated region
        $region65: #{our_multihead_attention.1} parent=63 // pred_check
          %p3043 = pneg %p215
        $region66: #{our_multihead_attention.1} parent=63 // pred_check_branch
          %3045 = sbr.rel (%p3043) target = $region68
        $region67: #{our_multihead_attention.1} parent=63 // pred_region
          %s3046 = sand.u32 %s200, 1
          %s3047 = scalar_lea.sflag [#allocation4], %s3046
          %s3048 = sand.u32 %s200, 1
          %s3049 = smul.addr %s3048, 64
          %s3050 = scalar_lea.vmem [#allocation5], %s3049
          %3051 = dma.done %s3047, 1024
        $region68: #{our_multihead_attention.1} parent=63 // pred_fallthru
          _
        // Predicated region
        $region69: #{our_multihead_attention.1} parent=63 // pred_check
          %p3052 = pneg %p241
        $region70: #{our_multihead_attention.1} parent=63 // pred_check_branch
          %3054 = sbr.rel (%p3052) target = $region72
        $region71: #{our_multihead_attention.1} parent=63 // pred_region
          %s3055 = sand.u32 %s226, 1
          %s3056 = scalar_lea.sflag [#allocation7], %s3055
          %s3057 = sand.u32 %s226, 1
          %s3058 = smul.addr %s3057, 256
          %s3059 = scalar_lea.vmem [#allocation6], %s3058
          %3060 = dma.done %s3056, 4096
        $region72: #{our_multihead_attention.1} parent=63 // pred_fallthru
          _
      $region64: #{our_multihead_attention.1} parent=5 // pred_fallthru
        _
    $region6: #{our_multihead_attention.1} parent=1 // loop_footer
      %s28 = sadd.s32 1, %s24
    $region7: #{our_multihead_attention.1} parent=1 // loop_footer_branch
      %23 = sbr.rel target = $region3
    $region8: #{our_multihead_attention.1} parent=1 // loop_exit
      _
    %3061 = vsyncpa [#allocation3], 1
    %s3062 = scalar_lea.sflag [#allocation3], 1
    %3063 = vsyncpa %s3062, 1
    %3064 = vsyncpa [#allocation4], 1
    %s3065 = scalar_lea.sflag [#allocation4], 1
    %3066 = vsyncpa %s3065, 1
    %3067 = vsyncpa [#allocation7], 1
    %s3068 = scalar_lea.sflag [#allocation7], 1
    %3069 = vsyncpa %s3068, 1

</llo_original>
